<compile_context>
chip_gen: v6e
topology: v6e:2x2x1
jax: 0.10.0
libtpu: 0.0.40
codegen_flags: <defaults>
</compile_context>

<pallas_src>
import functools

import jax
import jax.numpy as jnp
from jax.experimental import pallas as pl
from jax.experimental.pallas import tpu as pltpu

NEG_SLOPE = 0.01  # nn.LeakyReLU() default


def _round_up(x, m):
    return (x + m - 1) // m * m


def charcnn_kernel(idx_ref, w_ref, b_ref, y_ref):
    # idx_ref: (L_pad, TM)        int32  char indices (sentinel >= V marks padding)
    # w_ref:   (L*H, L_pad*Vp)    bf16   block-Toeplitz folded (emb x conv) weight
    # b_ref:   (H, 1)             f32    conv bias
    # y_ref:   (H, TM)            f32    max-pooled output (lane-dense store)
    l_pad, tm = idx_ref.shape
    m_rows, kd = w_ref.shape
    h_dim = b_ref.shape[0]
    n_pos = m_rows // h_dim          # L: valid conv output positions per word
    vp = kd // l_pad                 # padded one-hot width per position

    # ---- one-hot im2col basis: ONE broadcast compare, then a tile-aligned
    #      collapse (L_pad, Vp, TM) -> (L_pad*Vp, TM).  Sentinel indices land in
    #      zero weight columns, reproducing zero conv padding exactly. ----------
    idx = idx_ref[...]
    iota_v = jax.lax.broadcasted_iota(jnp.int32, (l_pad, vp, tm), 1)
    onehot = (idx[:, None, :] == iota_v).astype(jnp.bfloat16)       # (L_pad,Vp,TM)
    onehot = onehot.reshape(l_pad * vp, tm)                         # (L_pad*Vp,TM)

    # ---- whole conv for all L output positions: one full-depth MXU matmul -----
    acc = jnp.dot(w_ref[...], onehot,
                  preferred_element_type=jnp.float32)               # (L*H, TM) f32

    # ---- max over word positions (aligned static sublane slices, pure VPU) ----
    best = acc[0:h_dim]
    for l in range(1, n_pos):
        best = jnp.maximum(best, acc[l * h_dim:(l + 1) * h_dim])

    # ---- bias + LeakyReLU AFTER the max (both commute with the max over L) ----
    z = best + b_ref[...]
    y_ref[...] = jnp.where(z > 0, z, NEG_SLOPE * z).astype(y_ref.dtype)


@functools.partial(jax.jit, static_argnames=("block_rows",))
def charcnn_forward(char_idx, num_chars, emb_w, conv_w, conv_b, *, block_rows=1024):
    """Pallas CharCNN forward.  `num_chars` is accepted for API parity with the
    PyTorch module but unused (the PyTorch forward never reads it either)."""
    del num_chars
    bs, num_words, word_len = char_idx.shape
    V, E = emb_w.shape
    H, E2, K = conv_w.shape                  # PyTorch Conv1d weight layout: (out, in, K)
    assert E2 == E
    pad = (K - 1) // 2
    L = word_len
    L_pad = word_len + 2 * pad
    N = bs * num_words

    # Padded one-hot width: room for the padding sentinel (index V) and a
    # multiple of 16 so the in-kernel (L_pad, Vp, TM) -> (L_pad*Vp, TM) collapse
    # is bf16 sublane-tile aligned (free).
    Vp = _round_up(V + 1, 16)

    # ---- row tiling: multiples of 128 lanes; keep >=2 grid steps when possible
    #      so v7x megacore (2 TensorCores) gets work on both cores. -------------
    rows128 = _round_up(N, 128)
    tm = min(_round_up(block_rows, 128), rows128)
    if rows128 // tm < 2 and rows128 >= 256:
        tm = _round_up(rows128 // 2, 128)
    N_pad = _round_up(N, tm)

    # ---- host-side weight prep: fold embedding into the conv taps and lay the
    #      taps out as a block-Toeplitz matrix over padded word positions:
    #      W_big[l*H + h, p*Vp + v] = sum_e conv_w[h, e, p-l] * emb_w[v, e]
    #      for 0 <= p - l < K, zero elsewhere (including v >= V). ---------------
    F = jnp.einsum('hek,ve->khv', conv_w.astype(jnp.float32),
                   emb_w.astype(jnp.float32),
                   precision=jax.lax.Precision.HIGHEST)              # (K, H, V)
    F = jnp.pad(F, ((0, 0), (0, 0), (0, Vp - V)))                    # (K, H, Vp)
    blk = jnp.transpose(F, (1, 0, 2)).reshape(H, K * Vp)             # (H, K*Vp)
    w_big = jnp.concatenate(
        [jnp.pad(blk, ((0, 0), (l * Vp, (L_pad - K - l) * Vp))) for l in range(L)],
        axis=0).astype(jnp.bfloat16)                                 # (L*H, L_pad*Vp)
    b = conv_b.reshape(H, 1).astype(jnp.float32)

    # ---- stream only int32 char indices (sentinel V -> zero weight column) ----
    idx = char_idx.reshape(N, word_len).astype(jnp.int32)
    idx = jnp.pad(idx, ((0, N_pad - N), (pad, pad)), constant_values=V)
    idx_t = idx.T                                                    # (L_pad, N_pad)

    y_t = pl.pallas_call(
        charcnn_kernel,
        out_shape=jax.ShapeDtypeStruct((H, N_pad), jnp.float32),
        grid_spec=pltpu.PrefetchScalarGridSpec(
            num_scalar_prefetch=0,
            grid=(N_pad // tm,),
            in_specs=[
                pl.BlockSpec((L_pad, tm), lambda i: (0, i)),
                pl.BlockSpec((L * H, L_pad * Vp), lambda i: (0, 0)),
                pl.BlockSpec((H, 1), lambda i: (0, 0)),
            ],
            out_specs=pl.BlockSpec((H, tm), lambda i: (0, i)),
        ),
        compiler_params=pltpu.CompilerParams(
            dimension_semantics=("parallel",),
            vmem_limit_bytes=48 * 1024 * 1024,   # under v7x's 64 MiB physical VMEM
        ),
    )(idx_t, w_big, b)

    return y_t.T[:N].reshape(bs, num_words, H)


def charcnn_reference(char_idx, emb_w, conv_w, conv_b):
    """Pure-JAX f32 reference mirroring the PyTorch NCL conv path."""
    bs, nw, L = char_idx.shape
    H, E, K = conv_w.shape
    pad = (K - 1) // 2
    x = jnp.take(emb_w, char_idx, axis=0).reshape(bs * nw, L, E)
    xt = jnp.transpose(x, (0, 2, 1))                       # (N, E, L)
    h = jax.lax.conv_general_dilated(
        xt, conv_w, window_strides=(1,), padding=[(pad, pad)],
        dimension_numbers=("NCH", "OIH", "NCH"),
        precision=jax.lax.Precision.HIGHEST)
    h = h + conv_b[None, :, None]
    h = jnp.where(h > 0, h, NEG_SLOPE * h)
    return jnp.max(h, axis=2).reshape(bs, nw, H)


if __name__ == "__main__":
    # Small, deterministic synthetic setup (num_layers=1 configuration).
    bs, num_words, word_len = 2, 8, 16
    vocab_size, emb_dim, hidden_dim = 50, 16, 32
    K = 5
    pad_idx = 1

    key = jax.random.PRNGKey(0)
    k_emb, k_w, k_b, k_idx, k_len = jax.random.split(key, 5)

    # nn.Embedding: N(0,1) init with the padding row zeroed.
    emb_w = jax.random.normal(k_emb, (vocab_size, emb_dim), jnp.float32)
    emb_w = emb_w.at[pad_idx].set(0.0)
    # Conv1d weight (out, in, K) and bias — deterministic synthetic init.
    conv_w = 0.1 * jax.random.normal(k_w, (hidden_dim, emb_dim, K), jnp.float32)
    conv_b = 0.1 * jax.random.normal(k_b, (hidden_dim,), jnp.float32)

    char_idx = jax.random.randint(k_idx, (bs, num_words, word_len), 0, vocab_size,
                                  dtype=jnp.int32)
    num_chars = jax.random.randint(k_len, (bs, num_words), 1, word_len + 1,
                                   dtype=jnp.int32)

    y = charcnn_forward(char_idx, num_chars, emb_w, conv_w, conv_b)
    y = jax.block_until_ready(y)

    # Reference is pure f32; the kernel uses bf16 folded weights on the MXU with
    # f32 accumulation, so a few-e-3 level difference is expected.
    y_ref = charcnn_reference(char_idx, emb_w, conv_w, conv_b)

    assert y.shape == (bs, num_words, hidden_dim)
    assert jnp.allclose(y, y_ref, atol=3e-2, rtol=3e-2), "mismatch vs reference"

    # TODO(synk): optional `highway` submodule is None in this config and not implemented.
    # TODO(synk): num_layers > 1 stacked k=3 conv path not implemented (default num_layers=1).
    print("KERNEL_OK")
</pallas_src>

<mosaic_0001>
module attributes {stable_mosaic.version = 11 : i64} {
  func.func @charcnn_kernel(%arg0: i32, %arg1: memref<20x128xi32, #tpu.memory_space<vmem>>, %arg2: memref<512x1280xbf16, #tpu.memory_space<vmem>>, %arg3: memref<32x1xf32, #tpu.memory_space<vmem>>, %arg4: memref<32x128xf32, #tpu.memory_space<vmem>>) attributes {dimension_semantics = [#tpu.dimension_semantics<parallel>], iteration_bounds = array<i64: 1>, scalar_prefetch = 0 : i64, scratch_operands = 0 : i64, tpu.core_type = #tpu.core_type<tc>, window_params = [{transform_indices = @transform_0, window_bounds = array<i64: 20, 128>}, {pipeline_mode = #tpu.pipeline_mode<synchronous>, transform_indices = @transform_1, window_bounds = array<i64: 512, 1280>}, {pipeline_mode = #tpu.pipeline_mode<synchronous>, transform_indices = @transform_2, window_bounds = array<i64: 32, 1>}, {transform_indices = @transform_3, window_bounds = array<i64: 32, 128>}]} {
    %c0 = arith.constant 0 : index
    %c0_0 = arith.constant 0 : index
    %0 = vector.load %arg1[%c0, %c0_0] : memref<20x128xi32, #tpu.memory_space<vmem>>, vector<20x128xi32>
    %1 = tpu.iota {dimensions = array<i32: 1>} : vector<20x64x128xi32>
    %2 = vector.shape_cast %0 : vector<20x128xi32> to vector<20x1x128xi32>
    %3 = vector.broadcast %2 : vector<20x1x128xi32> to vector<20x64x128xi32>
    %4 = arith.cmpi eq, %3, %1 : vector<20x64x128xi32>
    %5 = arith.extui %4 : vector<20x64x128xi1> to vector<20x64x128xi32>
    %6 = arith.sitofp %5 : vector<20x64x128xi32> to vector<20x64x128xf32>
    %7 = arith.truncf %6 : vector<20x64x128xf32> to vector<20x64x128xbf16>
    %8 = vector.shape_cast %7 : vector<20x64x128xbf16> to vector<1280x128xbf16>
    %c0_1 = arith.constant 0 : index
    %c0_2 = arith.constant 0 : index
    %9 = vector.load %arg2[%c0_1, %c0_2] : memref<512x1280xbf16, #tpu.memory_space<vmem>>, vector<512x1280xbf16>
    %cst = arith.constant dense<0.000000e+00> : vector<512x128xf32>
    %10 = tpu.matmul %9, %8, %cst {dimension_numbers = #tpu.dot_dimension_numbers<[1], [0], [0], [1], [0, 0, 1, 1], [], []>} : vector<512x1280xbf16>, vector<1280x128xbf16>, vector<512x128xf32> -> vector<512x128xf32>
    %11 = vector.extract_strided_slice %10 {offsets = [0, 0], sizes = [32, 128], strides = [1, 1]} : vector<512x128xf32> to vector<32x128xf32>
    %12 = vector.extract_strided_slice %10 {offsets = [32, 0], sizes = [32, 128], strides = [1, 1]} : vector<512x128xf32> to vector<32x128xf32>
    %13 = arith.maximumf %11, %12 : vector<32x128xf32>
    %14 = vector.extract_strided_slice %10 {offsets = [64, 0], sizes = [32, 128], strides = [1, 1]} : vector<512x128xf32> to vector<32x128xf32>
    %15 = arith.maximumf %13, %14 : vector<32x128xf32>
    %16 = vector.extract_strided_slice %10 {offsets = [96, 0], sizes = [32, 128], strides = [1, 1]} : vector<512x128xf32> to vector<32x128xf32>
    %17 = arith.maximumf %15, %16 : vector<32x128xf32>
    %18 = vector.extract_strided_slice %10 {offsets = [128, 0], sizes = [32, 128], strides = [1, 1]} : vector<512x128xf32> to vector<32x128xf32>
    %19 = arith.maximumf %17, %18 : vector<32x128xf32>
    %20 = vector.extract_strided_slice %10 {offsets = [160, 0], sizes = [32, 128], strides = [1, 1]} : vector<512x128xf32> to vector<32x128xf32>
    %21 = arith.maximumf %19, %20 : vector<32x128xf32>
    %22 = vector.extract_strided_slice %10 {offsets = [192, 0], sizes = [32, 128], strides = [1, 1]} : vector<512x128xf32> to vector<32x128xf32>
    %23 = arith.maximumf %21, %22 : vector<32x128xf32>
    %24 = vector.extract_strided_slice %10 {offsets = [224, 0], sizes = [32, 128], strides = [1, 1]} : vector<512x128xf32> to vector<32x128xf32>
    %25 = arith.maximumf %23, %24 : vector<32x128xf32>
    %26 = vector.extract_strided_slice %10 {offsets = [256, 0], sizes = [32, 128], strides = [1, 1]} : vector<512x128xf32> to vector<32x128xf32>
    %27 = arith.maximumf %25, %26 : vector<32x128xf32>
    %28 = vector.extract_strided_slice %10 {offsets = [288, 0], sizes = [32, 128], strides = [1, 1]} : vector<512x128xf32> to vector<32x128xf32>
    %29 = arith.maximumf %27, %28 : vector<32x128xf32>
    %30 = vector.extract_strided_slice %10 {offsets = [320, 0], sizes = [32, 128], strides = [1, 1]} : vector<512x128xf32> to vector<32x128xf32>
    %31 = arith.maximumf %29, %30 : vector<32x128xf32>
    %32 = vector.extract_strided_slice %10 {offsets = [352, 0], sizes = [32, 128], strides = [1, 1]} : vector<512x128xf32> to vector<32x128xf32>
    %33 = arith.maximumf %31, %32 : vector<32x128xf32>
    %34 = vector.extract_strided_slice %10 {offsets = [384, 0], sizes = [32, 128], strides = [1, 1]} : vector<512x128xf32> to vector<32x128xf32>
    %35 = arith.maximumf %33, %34 : vector<32x128xf32>
    %36 = vector.extract_strided_slice %10 {offsets = [416, 0], sizes = [32, 128], strides = [1, 1]} : vector<512x128xf32> to vector<32x128xf32>
    %37 = arith.maximumf %35, %36 : vector<32x128xf32>
    %38 = vector.extract_strided_slice %10 {offsets = [448, 0], sizes = [32, 128], strides = [1, 1]} : vector<512x128xf32> to vector<32x128xf32>
    %39 = arith.maximumf %37, %38 : vector<32x128xf32>
    %40 = vector.extract_strided_slice %10 {offsets = [480, 0], sizes = [32, 128], strides = [1, 1]} : vector<512x128xf32> to vector<32x128xf32>
    %41 = arith.maximumf %39, %40 : vector<32x128xf32>
    %c0_3 = arith.constant 0 : index
    %c0_4 = arith.constant 0 : index
    %42 = vector.load %arg3[%c0_3, %c0_4] : memref<32x1xf32, #tpu.memory_space<vmem>>, vector<32x1xf32>
    %43 = vector.broadcast %42 : vector<32x1xf32> to vector<32x128xf32>
    %44 = arith.addf %41, %43 : vector<32x128xf32>
    %cst_5 = arith.constant 0.000000e+00 : f32
    %45 = vector.broadcast %cst_5 : f32 to vector<32x128xf32>
    %46 = arith.cmpf ogt, %44, %45 : vector<32x128xf32>
    %cst_6 = arith.constant 0.00999999977 : f32
    %47 = vector.broadcast %cst_6 : f32 to vector<32x128xf32>
    %48 = arith.mulf %47, %44 : vector<32x128xf32>
    %49 = arith.select %46, %44, %48 : vector<32x128xi1>, vector<32x128xf32>
    %c0_7 = arith.constant 0 : index
    %c0_8 = arith.constant 0 : index
    %50 = vector.load %arg4[%c0_7, %c0_8] : memref<32x128xf32, #tpu.memory_space<vmem>>, vector<32x128xf32>
    tpu.vector_store %arg4[%c0_7, %c0_8], %49 {strides = array<i32>} : memref<32x128xf32, #tpu.memory_space<vmem>>, vector<32x128xf32>,
    return
  }
  func.func @transform_0(%arg0: i32) -> (i32, i32) {
    %c0_i32 = arith.constant 0 : i32
    %c0_i32_0 = arith.constant 0 : i32
    return %c0_i32, %arg0 : i32, i32
  }
  func.func @transform_1(%arg0: i32) -> (i32, i32) {
    %c0_i32 = arith.constant 0 : i32
    %c0_i32_0 = arith.constant 0 : i32
    %c0_i32_1 = arith.constant 0 : i32
    return %c0_i32, %c0_i32_0 : i32, i32
  }
  func.func @transform_2(%arg0: i32) -> (i32, i32) {
    %c0_i32 = arith.constant 0 : i32
    %c0_i32_0 = arith.constant 0 : i32
    %c0_i32_1 = arith.constant 0 : i32
    return %c0_i32, %c0_i32_0 : i32, i32
  }
  func.func @transform_3(%arg0: i32) -> (i32, i32) {
    %c0_i32 = arith.constant 0 : i32
    %c0_i32_0 = arith.constant 0 : i32
    return %c0_i32, %arg0 : i32, i32
  }
}

</mosaic_0001>

<llo_original>
// kernel: charcnn_forward.1
$region0: #{charcnn_forward.1}
  #allocation0 [shape = 'u32[]', space=smem, size = 0x4, offset = 0x4, fixed_abs, tag = 'smem constant byte address 0x4 - core index']
  #allocation1 [shape = 'u32[144,128]{1,0:T(1,128)}', space=vmem, size = 0x12000, scoped, tag = 'internal scratch']
  %s0 = inlined_call_operand.vmem [shape: s32[20,128], index: 0, kind: input, shape index: {}]
  %s1 = inlined_call_operand.vmem [shape: bf16[512,1280], index: 1, kind: input, shape index: {}]
  %s2 = inlined_call_operand.vmem [shape: f32[32,1], index: 2, kind: input, shape index: {}]
  %s3 = inlined_call_operand.vmem [shape: f32[32,128], index: 3, kind: output, shape index: {}]
  %s4 = sld [smem:[#allocation0]]
  $region22: #{charcnn_forward.1} parent=0
    _
  %s6 = ssub.s32 1, %s4
  %s7 = scalar_select 0, %s6, %s4
  // Predicated region
  $region2: #{charcnn_forward.1} parent=0 // pred_check
    _
  $region3: #{charcnn_forward.1} parent=0 // pred_check_branch
    %9 = sbr.rel (0) target = $region5
  $region4: #{charcnn_forward.1} parent=0 // pred_region
    _
  $region5: #{charcnn_forward.1} parent=0 // pred_fallthru
    _
  // Predicated region
  $region6: #{charcnn_forward.1} parent=0 // pred_check
    _
  $region7: #{charcnn_forward.1} parent=0 // pred_check_branch
    %11 = sbr.rel (0) target = $region9
  $region8: #{charcnn_forward.1} parent=0 // pred_region
    _
  $region9: #{charcnn_forward.1} parent=0 // pred_fallthru
    _
  // Predicated region
  $region10: #{charcnn_forward.1} parent=0 // pred_check
    _
  $region11: #{charcnn_forward.1} parent=0 // pred_check_branch
    %13 = sbr.rel (0) target = $region13
  $region12: #{charcnn_forward.1} parent=0 // pred_region
    _
  $region13: #{charcnn_forward.1} parent=0 // pred_fallthru
    _
  %v15 = vld [vmem:[%s0] sm:$0xff]
  %v16 = vld [vmem:[%s0 + $0x8] sm:$0xff]
  %v17 = vld [vmem:[%s0 + $0x10] sm:$0xf]
  %v18 = vlaneseq
  %v19 = vshrl.u32 %v18, 7
  %v20 = vadd.s32 %v19, 8
  %v21 = vadd.s32 %v19, 16
  %v22 = vadd.s32 %v19, 24
  %v23 = vadd.s32 %v19, 32
  %v24 = vadd.s32 %v19, 40
  %v25 = vadd.s32 %v19, 48
  %v26 = vadd.s32 %v19, 56
  %v27 = vcombine.high %v15, %v15
  %v29 = vunpack.c.l.s4 1966171168
  %v30 = vunpack.c.0.s8 %v29
  %v31 = vlaneseq
  %v32 = vshrl.u32 %v31, 7
  %v33 = vsub.s32 %v30, %v32
  %v34 = vrot.slane %v15, %v33
  %v36 = vunpack.c.l.s4 1966171168
  %v37 = vunpack.c.0.s8 %v36
  %v38 = vlaneseq
  %v39 = vshrl.u32 %v38, 7
  %v40 = vsub.s32 %v37, %v39
  %v41 = vrot.slane %v27, %v40
  %v42 = vcombine.high %v34, %v34
  %v43 = vcombine.high %v41, %v41
  %v45 = vunpack.c.l.s4 1966171168
  %v46 = vunpack.c.0.s8 %v45
  %v47 = vlaneseq
  %v48 = vshrl.u32 %v47, 7
  %v49 = vsub.s32 %v46, %v48
  %v50 = vrot.slane %v34, %v49
  %v52 = vunpack.c.l.s4 1966171168
  %v53 = vunpack.c.0.s8 %v52
  %v54 = vlaneseq
  %v55 = vshrl.u32 %v54, 7
  %v56 = vsub.s32 %v53, %v55
  %v57 = vrot.slane %v41, %v56
  %v59 = vunpack.c.l.s4 1966171168
  %v60 = vunpack.c.0.s8 %v59
  %v61 = vlaneseq
  %v62 = vshrl.u32 %v61, 7
  %v63 = vsub.s32 %v60, %v62
  %v64 = vrot.slane %v42, %v63
  %v66 = vunpack.c.l.s4 1966171168
  %v67 = vunpack.c.0.s8 %v66
  %v68 = vlaneseq
  %v69 = vshrl.u32 %v68, 7
  %v70 = vsub.s32 %v67, %v69
  %v71 = vrot.slane %v43, %v70
  %v72 = vcombine.high %v50, %v50
  %v73 = vcombine.high %v57, %v57
  %v74 = vcombine.high %v64, %v64
  %v75 = vcombine.high %v71, %v71
  %v76 = vcombine.high %v16, %v16
  %v78 = vunpack.c.l.s4 1966171168
  %v79 = vunpack.c.0.s8 %v78
  %v80 = vlaneseq
  %v81 = vshrl.u32 %v80, 7
  %v82 = vsub.s32 %v79, %v81
  %v83 = vrot.slane %v16, %v82
  %v85 = vunpack.c.l.s4 1966171168
  %v86 = vunpack.c.0.s8 %v85
  %v87 = vlaneseq
  %v88 = vshrl.u32 %v87, 7
  %v89 = vsub.s32 %v86, %v88
  %v90 = vrot.slane %v76, %v89
  %v91 = vcombine.high %v83, %v83
  %v92 = vcombine.high %v90, %v90
  %v94 = vunpack.c.l.s4 1966171168
  %v95 = vunpack.c.0.s8 %v94
  %v96 = vlaneseq
  %v97 = vshrl.u32 %v96, 7
  %v98 = vsub.s32 %v95, %v97
  %v99 = vrot.slane %v83, %v98
  %v101 = vunpack.c.l.s4 1966171168
  %v102 = vunpack.c.0.s8 %v101
  %v103 = vlaneseq
  %v104 = vshrl.u32 %v103, 7
  %v105 = vsub.s32 %v102, %v104
  %v106 = vrot.slane %v90, %v105
  %v108 = vunpack.c.l.s4 1966171168
  %v109 = vunpack.c.0.s8 %v108
  %v110 = vlaneseq
  %v111 = vshrl.u32 %v110, 7
  %v112 = vsub.s32 %v109, %v111
  %v113 = vrot.slane %v91, %v112
  %v115 = vunpack.c.l.s4 1966171168
  %v116 = vunpack.c.0.s8 %v115
  %v117 = vlaneseq
  %v118 = vshrl.u32 %v117, 7
  %v119 = vsub.s32 %v116, %v118
  %v120 = vrot.slane %v92, %v119
  %v121 = vcombine.high %v99, %v99
  %v122 = vcombine.high %v106, %v106
  %v123 = vcombine.high %v113, %v113
  %v124 = vcombine.high %v120, %v120
  %v126 = vunpack.c.l.s4 1966171168
  %v127 = vunpack.c.0.s8 %v126
  %v128 = vlaneseq
  %v129 = vshrl.u32 %v128, 7
  %v130 = vsub.s32 %v127, %v129
  %v131 = vrot.slane %v17, %v130
  %v132 = vcombine.high %v131, %v131
  %v134 = vunpack.c.l.s4 1966171168
  %v135 = vunpack.c.0.s8 %v134
  %v136 = vlaneseq
  %v137 = vshrl.u32 %v136, 7
  %v138 = vsub.s32 %v135, %v137
  %v139 = vrot.slane %v131, %v138
  %v141 = vunpack.c.l.s4 1966171168
  %v142 = vunpack.c.0.s8 %v141
  %v143 = vlaneseq
  %v144 = vshrl.u32 %v143, 7
  %v145 = vsub.s32 %v142, %v144
  %v146 = vrot.slane %v132, %v145
  %v147 = vcombine.high %v139, %v139
  %v148 = vcombine.high %v146, %v146
  %v149 = vlaneseq
  %v150 = vshrl.u32 %v149, 7
  %v151 = vsub.s32 0, %v150
  %v152 = vrot.slane %v50, %v151
  %v153 = vlaneseq
  %v154 = vshrl.u32 %v153, 7
  %v155 = vsub.s32 0, %v154
  %v156 = vrot.slane %v64, %v155
  %v157 = vlaneseq
  %v158 = vshrl.u32 %v157, 7
  %v159 = vsub.s32 0, %v158
  %v160 = vrot.slane %v72, %v159
  %v161 = vlaneseq
  %v162 = vshrl.u32 %v161, 7
  %v163 = vsub.s32 0, %v162
  %v164 = vrot.slane %v74, %v163
  %v165 = vlaneseq
  %v166 = vshrl.u32 %v165, 7
  %v167 = vsub.s32 0, %v166
  %v168 = vrot.slane %v57, %v167
  %v169 = vlaneseq
  %v170 = vshrl.u32 %v169, 7
  %v171 = vsub.s32 0, %v170
  %v172 = vrot.slane %v71, %v171
  %v173 = vlaneseq
  %v174 = vshrl.u32 %v173, 7
  %v175 = vsub.s32 0, %v174
  %v176 = vrot.slane %v73, %v175
  %v177 = vlaneseq
  %v178 = vshrl.u32 %v177, 7
  %v179 = vsub.s32 0, %v178
  %v180 = vrot.slane %v75, %v179
  %v181 = vlaneseq
  %v182 = vshrl.u32 %v181, 7
  %v183 = vsub.s32 0, %v182
  %v184 = vrot.slane %v99, %v183
  %v185 = vlaneseq
  %v186 = vshrl.u32 %v185, 7
  %v187 = vsub.s32 0, %v186
  %v188 = vrot.slane %v113, %v187
  %v189 = vlaneseq
  %v190 = vshrl.u32 %v189, 7
  %v191 = vsub.s32 0, %v190
  %v192 = vrot.slane %v121, %v191
  %v193 = vlaneseq
  %v194 = vshrl.u32 %v193, 7
  %v195 = vsub.s32 0, %v194
  %v196 = vrot.slane %v123, %v195
  %v197 = vlaneseq
  %v198 = vshrl.u32 %v197, 7
  %v199 = vsub.s32 0, %v198
  %v200 = vrot.slane %v106, %v199
  %v201 = vlaneseq
  %v202 = vshrl.u32 %v201, 7
  %v203 = vsub.s32 0, %v202
  %v204 = vrot.slane %v120, %v203
  %v205 = vlaneseq
  %v206 = vshrl.u32 %v205, 7
  %v207 = vsub.s32 0, %v206
  %v208 = vrot.slane %v122, %v207
  %v209 = vlaneseq
  %v210 = vshrl.u32 %v209, 7
  %v211 = vsub.s32 0, %v210
  %v212 = vrot.slane %v124, %v211
  %v213 = vlaneseq
  %v214 = vshrl.u32 %v213, 7
  %v215 = vsub.s32 0, %v214
  %v216 = vrot.slane %v139, %v215
  %v217 = vlaneseq
  %v218 = vshrl.u32 %v217, 7
  %v219 = vsub.s32 0, %v218
  %v220 = vrot.slane %v146, %v219
  %v221 = vlaneseq
  %v222 = vshrl.u32 %v221, 7
  %v223 = vsub.s32 0, %v222
  %v224 = vrot.slane %v147, %v223
  %v225 = vlaneseq
  %v226 = vshrl.u32 %v225, 7
  %v227 = vsub.s32 0, %v226
  %v228 = vrot.slane %v148, %v227
  %vm229 = vcmp.eq.s32.totalorder %v152, %v19
  %vm230 = vcmp.eq.s32.totalorder %v152, %v20
  %vm231 = vcmp.eq.s32.totalorder %v152, %v21
  %vm232 = vcmp.eq.s32.totalorder %v152, %v22
  %vm233 = vcmp.eq.s32.totalorder %v152, %v23
  %vm234 = vcmp.eq.s32.totalorder %v152, %v24
  %vm235 = vcmp.eq.s32.totalorder %v152, %v25
  %vm236 = vcmp.eq.s32.totalorder %v152, %v26
  %vm237 = vcmp.eq.s32.totalorder %v156, %v19
  %vm238 = vcmp.eq.s32.totalorder %v156, %v20
  %vm239 = vcmp.eq.s32.totalorder %v156, %v21
  %vm240 = vcmp.eq.s32.totalorder %v156, %v22
  %vm241 = vcmp.eq.s32.totalorder %v156, %v23
  %vm242 = vcmp.eq.s32.totalorder %v156, %v24
  %vm243 = vcmp.eq.s32.totalorder %v156, %v25
  %vm244 = vcmp.eq.s32.totalorder %v156, %v26
  %vm245 = vcmp.eq.s32.totalorder %v160, %v19
  %vm246 = vcmp.eq.s32.totalorder %v160, %v20
  %vm247 = vcmp.eq.s32.totalorder %v160, %v21
  %vm248 = vcmp.eq.s32.totalorder %v160, %v22
  %vm249 = vcmp.eq.s32.totalorder %v160, %v23
  %vm250 = vcmp.eq.s32.totalorder %v160, %v24
  %vm251 = vcmp.eq.s32.totalorder %v160, %v25
  %vm252 = vcmp.eq.s32.totalorder %v160, %v26
  %vm253 = vcmp.eq.s32.totalorder %v164, %v19
  %vm254 = vcmp.eq.s32.totalorder %v164, %v20
  %vm255 = vcmp.eq.s32.totalorder %v164, %v21
  %vm256 = vcmp.eq.s32.totalorder %v164, %v22
  %vm257 = vcmp.eq.s32.totalorder %v164, %v23
  %vm258 = vcmp.eq.s32.totalorder %v164, %v24
  %vm259 = vcmp.eq.s32.totalorder %v164, %v25
  %vm260 = vcmp.eq.s32.totalorder %v164, %v26
  %vm261 = vcmp.eq.s32.totalorder %v168, %v19
  %vm262 = vcmp.eq.s32.totalorder %v168, %v20
  %vm263 = vcmp.eq.s32.totalorder %v168, %v21
  %vm264 = vcmp.eq.s32.totalorder %v168, %v22
  %vm265 = vcmp.eq.s32.totalorder %v168, %v23
  %vm266 = vcmp.eq.s32.totalorder %v168, %v24
  %vm267 = vcmp.eq.s32.totalorder %v168, %v25
  %vm268 = vcmp.eq.s32.totalorder %v168, %v26
  %vm269 = vcmp.eq.s32.totalorder %v172, %v19
  %vm270 = vcmp.eq.s32.totalorder %v172, %v20
  %vm271 = vcmp.eq.s32.totalorder %v172, %v21
  %vm272 = vcmp.eq.s32.totalorder %v172, %v22
  %vm273 = vcmp.eq.s32.totalorder %v172, %v23
  %vm274 = vcmp.eq.s32.totalorder %v172, %v24
  %vm275 = vcmp.eq.s32.totalorder %v172, %v25
  %vm276 = vcmp.eq.s32.totalorder %v172, %v26
  %vm277 = vcmp.eq.s32.totalorder %v176, %v19
  %vm278 = vcmp.eq.s32.totalorder %v176, %v20
  %vm279 = vcmp.eq.s32.totalorder %v176, %v21
  %vm280 = vcmp.eq.s32.totalorder %v176, %v22
  %vm281 = vcmp.eq.s32.totalorder %v176, %v23
  %vm282 = vcmp.eq.s32.totalorder %v176, %v24
  %vm283 = vcmp.eq.s32.totalorder %v176, %v25
  %vm284 = vcmp.eq.s32.totalorder %v176, %v26
  %vm285 = vcmp.eq.s32.totalorder %v180, %v19
  %vm286 = vcmp.eq.s32.totalorder %v180, %v20
  %vm287 = vcmp.eq.s32.totalorder %v180, %v21
  %vm288 = vcmp.eq.s32.totalorder %v180, %v22
  %vm289 = vcmp.eq.s32.totalorder %v180, %v23
  %vm290 = vcmp.eq.s32.totalorder %v180, %v24
  %vm291 = vcmp.eq.s32.totalorder %v180, %v25
  %vm292 = vcmp.eq.s32.totalorder %v180, %v26
  %vm293 = vcmp.eq.s32.totalorder %v184, %v19
  %vm294 = vcmp.eq.s32.totalorder %v184, %v20
  %vm295 = vcmp.eq.s32.totalorder %v184, %v21
  %vm296 = vcmp.eq.s32.totalorder %v184, %v22
  %vm297 = vcmp.eq.s32.totalorder %v184, %v23
  %vm298 = vcmp.eq.s32.totalorder %v184, %v24
  %vm299 = vcmp.eq.s32.totalorder %v184, %v25
  %vm300 = vcmp.eq.s32.totalorder %v184, %v26
  %vm301 = vcmp.eq.s32.totalorder %v188, %v19
  %vm302 = vcmp.eq.s32.totalorder %v188, %v20
  %vm303 = vcmp.eq.s32.totalorder %v188, %v21
  %vm304 = vcmp.eq.s32.totalorder %v188, %v22
  %vm305 = vcmp.eq.s32.totalorder %v188, %v23
  %vm306 = vcmp.eq.s32.totalorder %v188, %v24
  %vm307 = vcmp.eq.s32.totalorder %v188, %v25
  %vm308 = vcmp.eq.s32.totalorder %v188, %v26
  %vm309 = vcmp.eq.s32.totalorder %v192, %v19
  %vm310 = vcmp.eq.s32.totalorder %v192, %v20
  %vm311 = vcmp.eq.s32.totalorder %v192, %v21
  %vm312 = vcmp.eq.s32.totalorder %v192, %v22
  %vm313 = vcmp.eq.s32.totalorder %v192, %v23
  %vm314 = vcmp.eq.s32.totalorder %v192, %v24
  %vm315 = vcmp.eq.s32.totalorder %v192, %v25
  %vm316 = vcmp.eq.s32.totalorder %v192, %v26
  %vm317 = vcmp.eq.s32.totalorder %v196, %v19
  %vm318 = vcmp.eq.s32.totalorder %v196, %v20
  %vm319 = vcmp.eq.s32.totalorder %v196, %v21
  %vm320 = vcmp.eq.s32.totalorder %v196, %v22
  %vm321 = vcmp.eq.s32.totalorder %v196, %v23
  %vm322 = vcmp.eq.s32.totalorder %v196, %v24
  %vm323 = vcmp.eq.s32.totalorder %v196, %v25
  %vm324 = vcmp.eq.s32.totalorder %v196, %v26
  %vm325 = vcmp.eq.s32.totalorder %v200, %v19
  %vm326 = vcmp.eq.s32.totalorder %v200, %v20
  %vm327 = vcmp.eq.s32.totalorder %v200, %v21
  %vm328 = vcmp.eq.s32.totalorder %v200, %v22
  %vm329 = vcmp.eq.s32.totalorder %v200, %v23
  %vm330 = vcmp.eq.s32.totalorder %v200, %v24
  %vm331 = vcmp.eq.s32.totalorder %v200, %v25
  %vm332 = vcmp.eq.s32.totalorder %v200, %v26
  %vm333 = vcmp.eq.s32.totalorder %v204, %v19
  %vm334 = vcmp.eq.s32.totalorder %v204, %v20
  %vm335 = vcmp.eq.s32.totalorder %v204, %v21
  %vm336 = vcmp.eq.s32.totalorder %v204, %v22
  %vm337 = vcmp.eq.s32.totalorder %v204, %v23
  %vm338 = vcmp.eq.s32.totalorder %v204, %v24
  %vm339 = vcmp.eq.s32.totalorder %v204, %v25
  %vm340 = vcmp.eq.s32.totalorder %v204, %v26
  %vm341 = vcmp.eq.s32.totalorder %v208, %v19
  %vm342 = vcmp.eq.s32.totalorder %v208, %v20
  %vm343 = vcmp.eq.s32.totalorder %v208, %v21
  %vm344 = vcmp.eq.s32.totalorder %v208, %v22
  %vm345 = vcmp.eq.s32.totalorder %v208, %v23
  %vm346 = vcmp.eq.s32.totalorder %v208, %v24
  %vm347 = vcmp.eq.s32.totalorder %v208, %v25
  %vm348 = vcmp.eq.s32.totalorder %v208, %v26
  %vm349 = vcmp.eq.s32.totalorder %v212, %v19
  %vm350 = vcmp.eq.s32.totalorder %v212, %v20
  %vm351 = vcmp.eq.s32.totalorder %v212, %v21
  %vm352 = vcmp.eq.s32.totalorder %v212, %v22
  %vm353 = vcmp.eq.s32.totalorder %v212, %v23
  %vm354 = vcmp.eq.s32.totalorder %v212, %v24
  %vm355 = vcmp.eq.s32.totalorder %v212, %v25
  %vm356 = vcmp.eq.s32.totalorder %v212, %v26
  %vm357 = vcmp.eq.s32.totalorder %v216, %v19
  %vm358 = vcmp.eq.s32.totalorder %v216, %v20
  %vm359 = vcmp.eq.s32.totalorder %v216, %v21
  %vm360 = vcmp.eq.s32.totalorder %v216, %v22
  %vm361 = vcmp.eq.s32.totalorder %v216, %v23
  %vm362 = vcmp.eq.s32.totalorder %v216, %v24
  %vm363 = vcmp.eq.s32.totalorder %v216, %v25
  %vm364 = vcmp.eq.s32.totalorder %v216, %v26
  %vm365 = vcmp.eq.s32.totalorder %v220, %v19
  %vm366 = vcmp.eq.s32.totalorder %v220, %v20
  %vm367 = vcmp.eq.s32.totalorder %v220, %v21
  %vm368 = vcmp.eq.s32.totalorder %v220, %v22
  %vm369 = vcmp.eq.s32.totalorder %v220, %v23
  %vm370 = vcmp.eq.s32.totalorder %v220, %v24
  %vm371 = vcmp.eq.s32.totalorder %v220, %v25
  %vm372 = vcmp.eq.s32.totalorder %v220, %v26
  %vm373 = vcmp.eq.s32.totalorder %v224, %v19
  %vm374 = vcmp.eq.s32.totalorder %v224, %v20
  %vm375 = vcmp.eq.s32.totalorder %v224, %v21
  %vm376 = vcmp.eq.s32.totalorder %v224, %v22
  %vm377 = vcmp.eq.s32.totalorder %v224, %v23
  %vm378 = vcmp.eq.s32.totalorder %v224, %v24
  %vm379 = vcmp.eq.s32.totalorder %v224, %v25
  %vm380 = vcmp.eq.s32.totalorder %v224, %v26
  %vm381 = vcmp.eq.s32.totalorder %v228, %v19
  %vm382 = vcmp.eq.s32.totalorder %v228, %v20
  %vm383 = vcmp.eq.s32.totalorder %v228, %v21
  %vm384 = vcmp.eq.s32.totalorder %v228, %v22
  %vm385 = vcmp.eq.s32.totalorder %v228, %v23
  %vm386 = vcmp.eq.s32.totalorder %v228, %v24
  %vm387 = vcmp.eq.s32.totalorder %v228, %v25
  %vm388 = vcmp.eq.s32.totalorder %v228, %v26
  %v389 = vsel %vm229, 1, 0
  %v390 = vsel %vm230, 1, 0
  %v391 = vsel %vm231, 1, 0
  %v392 = vsel %vm232, 1, 0
  %v393 = vsel %vm233, 1, 0
  %v394 = vsel %vm234, 1, 0
  %v395 = vsel %vm235, 1, 0
  %v396 = vsel %vm236, 1, 0
  %v397 = vsel %vm237, 1, 0
  %v398 = vsel %vm238, 1, 0
  %v399 = vsel %vm239, 1, 0
  %v400 = vsel %vm240, 1, 0
  %v401 = vsel %vm241, 1, 0
  %v402 = vsel %vm242, 1, 0
  %v403 = vsel %vm243, 1, 0
  %v404 = vsel %vm244, 1, 0
  %v405 = vsel %vm245, 1, 0
  %v406 = vsel %vm246, 1, 0
  %v407 = vsel %vm247, 1, 0
  %v408 = vsel %vm248, 1, 0
  %v409 = vsel %vm249, 1, 0
  %v410 = vsel %vm250, 1, 0
  %v411 = vsel %vm251, 1, 0
  %v412 = vsel %vm252, 1, 0
  %v413 = vsel %vm253, 1, 0
  %v414 = vsel %vm254, 1, 0
  %v415 = vsel %vm255, 1, 0
  %v416 = vsel %vm256, 1, 0
  %v417 = vsel %vm257, 1, 0
  %v418 = vsel %vm258, 1, 0
  %v419 = vsel %vm259, 1, 0
  %v420 = vsel %vm260, 1, 0
  %v421 = vsel %vm261, 1, 0
  %v422 = vsel %vm262, 1, 0
  %v423 = vsel %vm263, 1, 0
  %v424 = vsel %vm264, 1, 0
  %v425 = vsel %vm265, 1, 0
  %v426 = vsel %vm266, 1, 0
  %v427 = vsel %vm267, 1, 0
  %v428 = vsel %vm268, 1, 0
  %v429 = vsel %vm269, 1, 0
  %v430 = vsel %vm270, 1, 0
  %v431 = vsel %vm271, 1, 0
  %v432 = vsel %vm272, 1, 0
  %v433 = vsel %vm273, 1, 0
  %v434 = vsel %vm274, 1, 0
  %v435 = vsel %vm275, 1, 0
  %v436 = vsel %vm276, 1, 0
  %v437 = vsel %vm277, 1, 0
  %v438 = vsel %vm278, 1, 0
  %v439 = vsel %vm279, 1, 0
  %v440 = vsel %vm280, 1, 0
  %v441 = vsel %vm281, 1, 0
  %v442 = vsel %vm282, 1, 0
  %v443 = vsel %vm283, 1, 0
  %v444 = vsel %vm284, 1, 0
  %v445 = vsel %vm285, 1, 0
  %v446 = vsel %vm286, 1, 0
  %v447 = vsel %vm287, 1, 0
  %v448 = vsel %vm288, 1, 0
  %v449 = vsel %vm289, 1, 0
  %v450 = vsel %vm290, 1, 0
  %v451 = vsel %vm291, 1, 0
  %v452 = vsel %vm292, 1, 0
  %v453 = vsel %vm293, 1, 0
  %v454 = vsel %vm294, 1, 0
  %v455 = vsel %vm295, 1, 0
  %v456 = vsel %vm296, 1, 0
  %v457 = vsel %vm297, 1, 0
  %v458 = vsel %vm298, 1, 0
  %v459 = vsel %vm299, 1, 0
  %v460 = vsel %vm300, 1, 0
  %v461 = vsel %vm301, 1, 0
  %v462 = vsel %vm302, 1, 0
  %v463 = vsel %vm303, 1, 0
  %v464 = vsel %vm304, 1, 0
  %v465 = vsel %vm305, 1, 0
  %v466 = vsel %vm306, 1, 0
  %v467 = vsel %vm307, 1, 0
  %v468 = vsel %vm308, 1, 0
  %v469 = vsel %vm309, 1, 0
  %v470 = vsel %vm310, 1, 0
  %v471 = vsel %vm311, 1, 0
  %v472 = vsel %vm312, 1, 0
  %v473 = vsel %vm313, 1, 0
  %v474 = vsel %vm314, 1, 0
  %v475 = vsel %vm315, 1, 0
  %v476 = vsel %vm316, 1, 0
  %v477 = vsel %vm317, 1, 0
  %v478 = vsel %vm318, 1, 0
  %v479 = vsel %vm319, 1, 0
  %v480 = vsel %vm320, 1, 0
  %v481 = vsel %vm321, 1, 0
  %v482 = vsel %vm322, 1, 0
  %v483 = vsel %vm323, 1, 0
  %v484 = vsel %vm324, 1, 0
  %v485 = vsel %vm325, 1, 0
  %v486 = vsel %vm326, 1, 0
  %v487 = vsel %vm327, 1, 0
  %v488 = vsel %vm328, 1, 0
  %v489 = vsel %vm329, 1, 0
  %v490 = vsel %vm330, 1, 0
  %v491 = vsel %vm331, 1, 0
  %v492 = vsel %vm332, 1, 0
  %v493 = vsel %vm333, 1, 0
  %v494 = vsel %vm334, 1, 0
  %v495 = vsel %vm335, 1, 0
  %v496 = vsel %vm336, 1, 0
  %v497 = vsel %vm337, 1, 0
  %v498 = vsel %vm338, 1, 0
  %v499 = vsel %vm339, 1, 0
  %v500 = vsel %vm340, 1, 0
  %v501 = vsel %vm341, 1, 0
  %v502 = vsel %vm342, 1, 0
  %v503 = vsel %vm343, 1, 0
  %v504 = vsel %vm344, 1, 0
  %v505 = vsel %vm345, 1, 0
  %v506 = vsel %vm346, 1, 0
  %v507 = vsel %vm347, 1, 0
  %v508 = vsel %vm348, 1, 0
  %v509 = vsel %vm349, 1, 0
  %v510 = vsel %vm350, 1, 0
  %v511 = vsel %vm351, 1, 0
  %v512 = vsel %vm352, 1, 0
  %v513 = vsel %vm353, 1, 0
  %v514 = vsel %vm354, 1, 0
  %v515 = vsel %vm355, 1, 0
  %v516 = vsel %vm356, 1, 0
  %v517 = vsel %vm357, 1, 0
  %v518 = vsel %vm358, 1, 0
  %v519 = vsel %vm359, 1, 0
  %v520 = vsel %vm360, 1, 0
  %v521 = vsel %vm361, 1, 0
  %v522 = vsel %vm362, 1, 0
  %v523 = vsel %vm363, 1, 0
  %v524 = vsel %vm364, 1, 0
  %v525 = vsel %vm365, 1, 0
  %v526 = vsel %vm366, 1, 0
  %v527 = vsel %vm367, 1, 0
  %v528 = vsel %vm368, 1, 0
  %v529 = vsel %vm369, 1, 0
  %v530 = vsel %vm370, 1, 0
  %v531 = vsel %vm371, 1, 0
  %v532 = vsel %vm372, 1, 0
  %v533 = vsel %vm373, 1, 0
  %v534 = vsel %vm374, 1, 0
  %v535 = vsel %vm375, 1, 0
  %v536 = vsel %vm376, 1, 0
  %v537 = vsel %vm377, 1, 0
  %v538 = vsel %vm378, 1, 0
  %v539 = vsel %vm379, 1, 0
  %v540 = vsel %vm380, 1, 0
  %v541 = vsel %vm381, 1, 0
  %v542 = vsel %vm382, 1, 0
  %v543 = vsel %vm383, 1, 0
  %v544 = vsel %vm384, 1, 0
  %v545 = vsel %vm385, 1, 0
  %v546 = vsel %vm386, 1, 0
  %v547 = vsel %vm387, 1, 0
  %v548 = vsel %vm388, 1, 0
  %v549 = vcvt.s32.f32 %v389
  %v550 = vcvt.s32.f32 %v390
  %v551 = vcvt.s32.f32 %v391
  %v552 = vcvt.s32.f32 %v392
  %v553 = vcvt.s32.f32 %v393
  %v554 = vcvt.s32.f32 %v394
  %v555 = vcvt.s32.f32 %v395
  %v556 = vcvt.s32.f32 %v396
  %v557 = vcvt.s32.f32 %v397
  %v558 = vcvt.s32.f32 %v398
  %v559 = vcvt.s32.f32 %v399
  %v560 = vcvt.s32.f32 %v400
  %v561 = vcvt.s32.f32 %v401
  %v562 = vcvt.s32.f32 %v402
  %v563 = vcvt.s32.f32 %v403
  %v564 = vcvt.s32.f32 %v404
  %v565 = vcvt.s32.f32 %v405
  %v566 = vcvt.s32.f32 %v406
  %v567 = vcvt.s32.f32 %v407
  %v568 = vcvt.s32.f32 %v408
  %v569 = vcvt.s32.f32 %v409
  %v570 = vcvt.s32.f32 %v410
  %v571 = vcvt.s32.f32 %v411
  %v572 = vcvt.s32.f32 %v412
  %v573 = vcvt.s32.f32 %v413
  %v574 = vcvt.s32.f32 %v414
  %v575 = vcvt.s32.f32 %v415
  %v576 = vcvt.s32.f32 %v416
  %v577 = vcvt.s32.f32 %v417
  %v578 = vcvt.s32.f32 %v418
  %v579 = vcvt.s32.f32 %v419
  %v580 = vcvt.s32.f32 %v420
  %v581 = vcvt.s32.f32 %v421
  %v582 = vcvt.s32.f32 %v422
  %v583 = vcvt.s32.f32 %v423
  %v584 = vcvt.s32.f32 %v424
  %v585 = vcvt.s32.f32 %v425
  %v586 = vcvt.s32.f32 %v426
  %v587 = vcvt.s32.f32 %v427
  %v588 = vcvt.s32.f32 %v428
  %v589 = vcvt.s32.f32 %v429
  %v590 = vcvt.s32.f32 %v430
  %v591 = vcvt.s32.f32 %v431
  %v592 = vcvt.s32.f32 %v432
  %v593 = vcvt.s32.f32 %v433
  %v594 = vcvt.s32.f32 %v434
  %v595 = vcvt.s32.f32 %v435
  %v596 = vcvt.s32.f32 %v436
  %v597 = vcvt.s32.f32 %v437
  %v598 = vcvt.s32.f32 %v438
  %v599 = vcvt.s32.f32 %v439
  %v600 = vcvt.s32.f32 %v440
  %v601 = vcvt.s32.f32 %v441
  %v602 = vcvt.s32.f32 %v442
  %v603 = vcvt.s32.f32 %v443
  %v604 = vcvt.s32.f32 %v444
  %v605 = vcvt.s32.f32 %v445
  %v606 = vcvt.s32.f32 %v446
  %v607 = vcvt.s32.f32 %v447
  %v608 = vcvt.s32.f32 %v448
  %v609 = vcvt.s32.f32 %v449
  %v610 = vcvt.s32.f32 %v450
  %v611 = vcvt.s32.f32 %v451
  %v612 = vcvt.s32.f32 %v452
  %v613 = vcvt.s32.f32 %v453
  %v614 = vcvt.s32.f32 %v454
  %v615 = vcvt.s32.f32 %v455
  %v616 = vcvt.s32.f32 %v456
  %v617 = vcvt.s32.f32 %v457
  %v618 = vcvt.s32.f32 %v458
  %v619 = vcvt.s32.f32 %v459
  %v620 = vcvt.s32.f32 %v460
  %v621 = vcvt.s32.f32 %v461
  %v622 = vcvt.s32.f32 %v462
  %v623 = vcvt.s32.f32 %v463
  %v624 = vcvt.s32.f32 %v464
  %v625 = vcvt.s32.f32 %v465
  %v626 = vcvt.s32.f32 %v466
  %v627 = vcvt.s32.f32 %v467
  %v628 = vcvt.s32.f32 %v468
  %v629 = vcvt.s32.f32 %v469
  %v630 = vcvt.s32.f32 %v470
  %v631 = vcvt.s32.f32 %v471
  %v632 = vcvt.s32.f32 %v472
  %v633 = vcvt.s32.f32 %v473
  %v634 = vcvt.s32.f32 %v474
  %v635 = vcvt.s32.f32 %v475
  %v636 = vcvt.s32.f32 %v476
  %v637 = vcvt.s32.f32 %v477
  %v638 = vcvt.s32.f32 %v478
  %v639 = vcvt.s32.f32 %v479
  %v640 = vcvt.s32.f32 %v480
  %v641 = vcvt.s32.f32 %v481
  %v642 = vcvt.s32.f32 %v482
  %v643 = vcvt.s32.f32 %v483
  %v644 = vcvt.s32.f32 %v484
  %v645 = vcvt.s32.f32 %v485
  %v646 = vcvt.s32.f32 %v486
  %v647 = vcvt.s32.f32 %v487
  %v648 = vcvt.s32.f32 %v488
  %v649 = vcvt.s32.f32 %v489
  %v650 = vcvt.s32.f32 %v490
  %v651 = vcvt.s32.f32 %v491
  %v652 = vcvt.s32.f32 %v492
  %v653 = vcvt.s32.f32 %v493
  %v654 = vcvt.s32.f32 %v494
  %v655 = vcvt.s32.f32 %v495
  %v656 = vcvt.s32.f32 %v496
  %v657 = vcvt.s32.f32 %v497
  %v658 = vcvt.s32.f32 %v498
  %v659 = vcvt.s32.f32 %v499
  %v660 = vcvt.s32.f32 %v500
  %v661 = vcvt.s32.f32 %v501
  %v662 = vcvt.s32.f32 %v502
  %v663 = vcvt.s32.f32 %v503
  %v664 = vcvt.s32.f32 %v504
  %v665 = vcvt.s32.f32 %v505
  %v666 = vcvt.s32.f32 %v506
  %v667 = vcvt.s32.f32 %v507
  %v668 = vcvt.s32.f32 %v508
  %v669 = vcvt.s32.f32 %v509
  %v670 = vcvt.s32.f32 %v510
  %v671 = vcvt.s32.f32 %v511
  %v672 = vcvt.s32.f32 %v512
  %v673 = vcvt.s32.f32 %v513
  %v674 = vcvt.s32.f32 %v514
  %v675 = vcvt.s32.f32 %v515
  %v676 = vcvt.s32.f32 %v516
  %v677 = vcvt.s32.f32 %v517
  %v678 = vcvt.s32.f32 %v518
  %v679 = vcvt.s32.f32 %v519
  %v680 = vcvt.s32.f32 %v520
  %v681 = vcvt.s32.f32 %v521
  %v682 = vcvt.s32.f32 %v522
  %v683 = vcvt.s32.f32 %v523
  %v684 = vcvt.s32.f32 %v524
  %v685 = vcvt.s32.f32 %v525
  %v686 = vcvt.s32.f32 %v526
  %v687 = vcvt.s32.f32 %v527
  %v688 = vcvt.s32.f32 %v528
  %v689 = vcvt.s32.f32 %v529
  %v690 = vcvt.s32.f32 %v530
  %v691 = vcvt.s32.f32 %v531
  %v692 = vcvt.s32.f32 %v532
  %v693 = vcvt.s32.f32 %v533
  %v694 = vcvt.s32.f32 %v534
  %v695 = vcvt.s32.f32 %v535
  %v696 = vcvt.s32.f32 %v536
  %v697 = vcvt.s32.f32 %v537
  %v698 = vcvt.s32.f32 %v538
  %v699 = vcvt.s32.f32 %v539
  %v700 = vcvt.s32.f32 %v540
  %v701 = vcvt.s32.f32 %v541
  %v702 = vcvt.s32.f32 %v542
  %v703 = vcvt.s32.f32 %v543
  %v704 = vcvt.s32.f32 %v544
  %v705 = vcvt.s32.f32 %v545
  %v706 = vcvt.s32.f32 %v546
  %v707 = vcvt.s32.f32 %v547
  %v708 = vcvt.s32.f32 %v548
  %v709 = vpack.c.bf16 %v550, %v549
  %v710 = vpack.c.bf16 %v552, %v551
  %v711 = vpack.c.bf16 %v554, %v553
  %v712 = vpack.c.bf16 %v556, %v555
  %v713 = vpack.c.bf16 %v558, %v557
  %v714 = vpack.c.bf16 %v560, %v559
  %v715 = vpack.c.bf16 %v562, %v561
  %v716 = vpack.c.bf16 %v564, %v563
  %v717 = vpack.c.bf16 %v566, %v565
  %v718 = vpack.c.bf16 %v568, %v567
  %v719 = vpack.c.bf16 %v570, %v569
  %v720 = vpack.c.bf16 %v572, %v571
  %v721 = vpack.c.bf16 %v574, %v573
  %v722 = vpack.c.bf16 %v576, %v575
  %v723 = vpack.c.bf16 %v578, %v577
  %v724 = vpack.c.bf16 %v580, %v579
  %v725 = vpack.c.bf16 %v582, %v581
  %v726 = vpack.c.bf16 %v584, %v583
  %v727 = vpack.c.bf16 %v586, %v585
  %v728 = vpack.c.bf16 %v588, %v587
  %v729 = vpack.c.bf16 %v590, %v589
  %v730 = vpack.c.bf16 %v592, %v591
  %v731 = vpack.c.bf16 %v594, %v593
  %v732 = vpack.c.bf16 %v596, %v595
  %v733 = vpack.c.bf16 %v598, %v597
  %v734 = vpack.c.bf16 %v600, %v599
  %v735 = vpack.c.bf16 %v602, %v601
  %v736 = vpack.c.bf16 %v604, %v603
  %v737 = vpack.c.bf16 %v606, %v605
  %v738 = vpack.c.bf16 %v608, %v607
  %v739 = vpack.c.bf16 %v610, %v609
  %v740 = vpack.c.bf16 %v612, %v611
  %v741 = vpack.c.bf16 %v614, %v613
  %v742 = vpack.c.bf16 %v616, %v615
  %v743 = vpack.c.bf16 %v618, %v617
  %v744 = vpack.c.bf16 %v620, %v619
  %v745 = vpack.c.bf16 %v622, %v621
  %v746 = vpack.c.bf16 %v624, %v623
  %v747 = vpack.c.bf16 %v626, %v625
  %v748 = vpack.c.bf16 %v628, %v627
  %v749 = vpack.c.bf16 %v630, %v629
  %v750 = vpack.c.bf16 %v632, %v631
  %v751 = vpack.c.bf16 %v634, %v633
  %v752 = vpack.c.bf16 %v636, %v635
  %v753 = vpack.c.bf16 %v638, %v637
  %v754 = vpack.c.bf16 %v640, %v639
  %v755 = vpack.c.bf16 %v642, %v641
  %v756 = vpack.c.bf16 %v644, %v643
  %v757 = vpack.c.bf16 %v646, %v645
  %v758 = vpack.c.bf16 %v648, %v647
  %v759 = vpack.c.bf16 %v650, %v649
  %v760 = vpack.c.bf16 %v652, %v651
  %v761 = vpack.c.bf16 %v654, %v653
  %v762 = vpack.c.bf16 %v656, %v655
  %v763 = vpack.c.bf16 %v658, %v657
  %v764 = vpack.c.bf16 %v660, %v659
  %v765 = vpack.c.bf16 %v662, %v661
  %v766 = vpack.c.bf16 %v664, %v663
  %v767 = vpack.c.bf16 %v666, %v665
  %v768 = vpack.c.bf16 %v668, %v667
  %v769 = vpack.c.bf16 %v670, %v669
  %v770 = vpack.c.bf16 %v672, %v671
  %v771 = vpack.c.bf16 %v674, %v673
  %v772 = vpack.c.bf16 %v676, %v675
  %v773 = vpack.c.bf16 %v678, %v677
  %v774 = vpack.c.bf16 %v680, %v679
  %v775 = vpack.c.bf16 %v682, %v681
  %v776 = vpack.c.bf16 %v684, %v683
  %v777 = vpack.c.bf16 %v686, %v685
  %v778 = vpack.c.bf16 %v688, %v687
  %v779 = vpack.c.bf16 %v690, %v689
  %v780 = vpack.c.bf16 %v692, %v691
  %v781 = vpack.c.bf16 %v694, %v693
  %v782 = vpack.c.bf16 %v696, %v695
  %v783 = vpack.c.bf16 %v698, %v697
  %v784 = vpack.c.bf16 %v700, %v699
  %v785 = vpack.c.bf16 %v702, %v701
  %v786 = vpack.c.bf16 %v704, %v703
  %v787 = vpack.c.bf16 %v706, %v705
  %v788 = vpack.c.bf16 %v708, %v707
  %v789 = vld [vmem:[%s1] sm:$0xff]
  %v790 = vld [vmem:[%s1 + $0x8] sm:$0xff]
  %v791 = vld [vmem:[%s1 + $0x10] sm:$0xff]
  %v792 = vld [vmem:[%s1 + $0x18] sm:$0xff]
  %v793 = vld [vmem:[%s1 + $0x20] sm:$0xff]
  %v794 = vld [vmem:[%s1 + $0x28] sm:$0xff]
  %v795 = vld [vmem:[%s1 + $0x30] sm:$0xff]
  %v796 = vld [vmem:[%s1 + $0x38] sm:$0xff]
  %v797 = vld [vmem:[%s1 + $0x40] sm:$0xff]
  %v798 = vld [vmem:[%s1 + $0x48] sm:$0xff]
  %v799 = vld [vmem:[%s1 + $0x50] sm:$0xff]
  %v800 = vld [vmem:[%s1 + $0x58] sm:$0xff]
  %v801 = vld [vmem:[%s1 + $0x60] sm:$0xff]
  %v802 = vld [vmem:[%s1 + $0x68] sm:$0xff]
  %v803 = vld [vmem:[%s1 + $0x70] sm:$0xff]
  %v804 = vld [vmem:[%s1 + $0x78] sm:$0xff]
  %v805 = vld [vmem:[%s1 + $0x80] sm:$0xff]
  %v806 = vld [vmem:[%s1 + $0x88] sm:$0xff]
  %v807 = vld [vmem:[%s1 + $0x90] sm:$0xff]
  %v808 = vld [vmem:[%s1 + $0x98] sm:$0xff]
  %v809 = vld [vmem:[%s1 + $0xa0] sm:$0xff]
  %v810 = vld [vmem:[%s1 + $0xa8] sm:$0xff]
  %v811 = vld [vmem:[%s1 + $0xb0] sm:$0xff]
  %v812 = vld [vmem:[%s1 + $0xb8] sm:$0xff]
  %v813 = vld [vmem:[%s1 + $0xc0] sm:$0xff]
  %v814 = vld [vmem:[%s1 + $0xc8] sm:$0xff]
  %v815 = vld [vmem:[%s1 + $0xd0] sm:$0xff]
  %v816 = vld [vmem:[%s1 + $0xd8] sm:$0xff]
  %v817 = vld [vmem:[%s1 + $0xe0] sm:$0xff]
  %v818 = vld [vmem:[%s1 + $0xe8] sm:$0xff]
  %v819 = vld [vmem:[%s1 + $0xf0] sm:$0xff]
  %v820 = vld [vmem:[%s1 + $0xf8] sm:$0xff]
  %v821 = vld [vmem:[%s1 + $0x100] sm:$0xff]
  %v822 = vld [vmem:[%s1 + $0x108] sm:$0xff]
  %v823 = vld [vmem:[%s1 + $0x110] sm:$0xff]
  %v824 = vld [vmem:[%s1 + $0x118] sm:$0xff]
  %v825 = vld [vmem:[%s1 + $0x120] sm:$0xff]
  %v826 = vld [vmem:[%s1 + $0x128] sm:$0xff]
  %v827 = vld [vmem:[%s1 + $0x130] sm:$0xff]
  %v828 = vld [vmem:[%s1 + $0x138] sm:$0xff]
  %v829 = vld [vmem:[%s1 + $0x140] sm:$0xff]
  %v830 = vld [vmem:[%s1 + $0x148] sm:$0xff]
  %v831 = vld [vmem:[%s1 + $0x150] sm:$0xff]
  %v832 = vld [vmem:[%s1 + $0x158] sm:$0xff]
  %v833 = vld [vmem:[%s1 + $0x160] sm:$0xff]
  %v834 = vld [vmem:[%s1 + $0x168] sm:$0xff]
  %v835 = vld [vmem:[%s1 + $0x170] sm:$0xff]
  %v836 = vld [vmem:[%s1 + $0x178] sm:$0xff]
  %v837 = vld [vmem:[%s1 + $0x180] sm:$0xff]
  %v838 = vld [vmem:[%s1 + $0x188] sm:$0xff]
  %v839 = vld [vmem:[%s1 + $0x190] sm:$0xff]
  %v840 = vld [vmem:[%s1 + $0x198] sm:$0xff]
  %v841 = vld [vmem:[%s1 + $0x1a0] sm:$0xff]
  %v842 = vld [vmem:[%s1 + $0x1a8] sm:$0xff]
  %v843 = vld [vmem:[%s1 + $0x1b0] sm:$0xff]
  %v844 = vld [vmem:[%s1 + $0x1b8] sm:$0xff]
  %v845 = vld [vmem:[%s1 + $0x1c0] sm:$0xff]
  %v846 = vld [vmem:[%s1 + $0x1c8] sm:$0xff]
  %v847 = vld [vmem:[%s1 + $0x1d0] sm:$0xff]
  %v848 = vld [vmem:[%s1 + $0x1d8] sm:$0xff]
  %v849 = vld [vmem:[%s1 + $0x1e0] sm:$0xff]
  %v850 = vld [vmem:[%s1 + $0x1e8] sm:$0xff]
  %v851 = vld [vmem:[%s1 + $0x1f0] sm:$0xff]
  %v852 = vld [vmem:[%s1 + $0x1f8] sm:$0xff]
  %v853 = vld [vmem:[%s1 + $0x200] sm:$0xff]
  %v854 = vld [vmem:[%s1 + $0x208] sm:$0xff]
  %v855 = vld [vmem:[%s1 + $0x210] sm:$0xff]
  %v856 = vld [vmem:[%s1 + $0x218] sm:$0xff]
  %v857 = vld [vmem:[%s1 + $0x220] sm:$0xff]
  %v858 = vld [vmem:[%s1 + $0x228] sm:$0xff]
  %v859 = vld [vmem:[%s1 + $0x230] sm:$0xff]
  %v860 = vld [vmem:[%s1 + $0x238] sm:$0xff]
  %v861 = vld [vmem:[%s1 + $0x240] sm:$0xff]
  %v862 = vld [vmem:[%s1 + $0x248] sm:$0xff]
  %v863 = vld [vmem:[%s1 + $0x250] sm:$0xff]
  %v864 = vld [vmem:[%s1 + $0x258] sm:$0xff]
  %v865 = vld [vmem:[%s1 + $0x260] sm:$0xff]
  %v866 = vld [vmem:[%s1 + $0x268] sm:$0xff]
  %v867 = vld [vmem:[%s1 + $0x270] sm:$0xff]
  %v868 = vld [vmem:[%s1 + $0x278] sm:$0xff]
  %v869 = vld [vmem:[%s1 + $0x280] sm:$0xff]
  %v870 = vld [vmem:[%s1 + $0x288] sm:$0xff]
  %v871 = vld [vmem:[%s1 + $0x290] sm:$0xff]
  %v872 = vld [vmem:[%s1 + $0x298] sm:$0xff]
  %v873 = vld [vmem:[%s1 + $0x2a0] sm:$0xff]
  %v874 = vld [vmem:[%s1 + $0x2a8] sm:$0xff]
  %v875 = vld [vmem:[%s1 + $0x2b0] sm:$0xff]
  %v876 = vld [vmem:[%s1 + $0x2b8] sm:$0xff]
  %v877 = vld [vmem:[%s1 + $0x2c0] sm:$0xff]
  %v878 = vld [vmem:[%s1 + $0x2c8] sm:$0xff]
  %v879 = vld [vmem:[%s1 + $0x2d0] sm:$0xff]
  %v880 = vld [vmem:[%s1 + $0x2d8] sm:$0xff]
  %v881 = vld [vmem:[%s1 + $0x2e0] sm:$0xff]
  %v882 = vld [vmem:[%s1 + $0x2e8] sm:$0xff]
  %v883 = vld [vmem:[%s1 + $0x2f0] sm:$0xff]
  %v884 = vld [vmem:[%s1 + $0x2f8] sm:$0xff]
  %v885 = vld [vmem:[%s1 + $0x300] sm:$0xff]
  %v886 = vld [vmem:[%s1 + $0x308] sm:$0xff]
  %v887 = vld [vmem:[%s1 + $0x310] sm:$0xff]
  %v888 = vld [vmem:[%s1 + $0x318] sm:$0xff]
  %v889 = vld [vmem:[%s1 + $0x320] sm:$0xff]
  %v890 = vld [vmem:[%s1 + $0x328] sm:$0xff]
  %v891 = vld [vmem:[%s1 + $0x330] sm:$0xff]
  %v892 = vld [vmem:[%s1 + $0x338] sm:$0xff]
  %v893 = vld [vmem:[%s1 + $0x340] sm:$0xff]
  %v894 = vld [vmem:[%s1 + $0x348] sm:$0xff]
  %v895 = vld [vmem:[%s1 + $0x350] sm:$0xff]
  %v896 = vld [vmem:[%s1 + $0x358] sm:$0xff]
  %v897 = vld [vmem:[%s1 + $0x360] sm:$0xff]
  %v898 = vld [vmem:[%s1 + $0x368] sm:$0xff]
  %v899 = vld [vmem:[%s1 + $0x370] sm:$0xff]
  %v900 = vld [vmem:[%s1 + $0x378] sm:$0xff]
  %v901 = vld [vmem:[%s1 + $0x380] sm:$0xff]
  %v902 = vld [vmem:[%s1 + $0x388] sm:$0xff]
  %v903 = vld [vmem:[%s1 + $0x390] sm:$0xff]
  %v904 = vld [vmem:[%s1 + $0x398] sm:$0xff]
  %v905 = vld [vmem:[%s1 + $0x3a0] sm:$0xff]
  %v906 = vld [vmem:[%s1 + $0x3a8] sm:$0xff]
  %v907 = vld [vmem:[%s1 + $0x3b0] sm:$0xff]
  %v908 = vld [vmem:[%s1 + $0x3b8] sm:$0xff]
  %v909 = vld [vmem:[%s1 + $0x3c0] sm:$0xff]
  %v910 = vld [vmem:[%s1 + $0x3c8] sm:$0xff]
  %v911 = vld [vmem:[%s1 + $0x3d0] sm:$0xff]
  %v912 = vld [vmem:[%s1 + $0x3d8] sm:$0xff]
  %v913 = vld [vmem:[%s1 + $0x3e0] sm:$0xff]
  %v914 = vld [vmem:[%s1 + $0x3e8] sm:$0xff]
  %v915 = vld [vmem:[%s1 + $0x3f0] sm:$0xff]
  %v916 = vld [vmem:[%s1 + $0x3f8] sm:$0xff]
  %v917 = vld [vmem:[%s1 + $0x400] sm:$0xff]
  %v918 = vld [vmem:[%s1 + $0x408] sm:$0xff]
  %v919 = vld [vmem:[%s1 + $0x410] sm:$0xff]
  %v920 = vld [vmem:[%s1 + $0x418] sm:$0xff]
  %v921 = vld [vmem:[%s1 + $0x420] sm:$0xff]
  %v922 = vld [vmem:[%s1 + $0x428] sm:$0xff]
  %v923 = vld [vmem:[%s1 + $0x430] sm:$0xff]
  %v924 = vld [vmem:[%s1 + $0x438] sm:$0xff]
  %v925 = vld [vmem:[%s1 + $0x440] sm:$0xff]
  %v926 = vld [vmem:[%s1 + $0x448] sm:$0xff]
  %v927 = vld [vmem:[%s1 + $0x450] sm:$0xff]
  %v928 = vld [vmem:[%s1 + $0x458] sm:$0xff]
  %v929 = vld [vmem:[%s1 + $0x460] sm:$0xff]
  %v930 = vld [vmem:[%s1 + $0x468] sm:$0xff]
  %v931 = vld [vmem:[%s1 + $0x470] sm:$0xff]
  %v932 = vld [vmem:[%s1 + $0x478] sm:$0xff]
  %v933 = vld [vmem:[%s1 + $0x480] sm:$0xff]
  %v934 = vld [vmem:[%s1 + $0x488] sm:$0xff]
  %v935 = vld [vmem:[%s1 + $0x490] sm:$0xff]
  %v936 = vld [vmem:[%s1 + $0x498] sm:$0xff]
  %v937 = vld [vmem:[%s1 + $0x4a0] sm:$0xff]
  %v938 = vld [vmem:[%s1 + $0x4a8] sm:$0xff]
  %v939 = vld [vmem:[%s1 + $0x4b0] sm:$0xff]
  %v940 = vld [vmem:[%s1 + $0x4b8] sm:$0xff]
  %v941 = vld [vmem:[%s1 + $0x4c0] sm:$0xff]
  %v942 = vld [vmem:[%s1 + $0x4c8] sm:$0xff]
  %v943 = vld [vmem:[%s1 + $0x4d0] sm:$0xff]
  %v944 = vld [vmem:[%s1 + $0x4d8] sm:$0xff]
  %v945 = vld [vmem:[%s1 + $0x4e0] sm:$0xff]
  %v946 = vld [vmem:[%s1 + $0x4e8] sm:$0xff]
  %v947 = vld [vmem:[%s1 + $0x4f0] sm:$0xff]
  %v948 = vld [vmem:[%s1 + $0x4f8] sm:$0xff]
  %v949 = vld [vmem:[%s1 + $0x500] sm:$0xff]
  %v950 = vld [vmem:[%s1 + $0x508] sm:$0xff]
  %v951 = vld [vmem:[%s1 + $0x510] sm:$0xff]
  %v952 = vld [vmem:[%s1 + $0x518] sm:$0xff]
  %v953 = vld [vmem:[%s1 + $0x520] sm:$0xff]
  %v954 = vld [vmem:[%s1 + $0x528] sm:$0xff]
  %v955 = vld [vmem:[%s1 + $0x530] sm:$0xff]
  %v956 = vld [vmem:[%s1 + $0x538] sm:$0xff]
  %v957 = vld [vmem:[%s1 + $0x540] sm:$0xff]
  %v958 = vld [vmem:[%s1 + $0x548] sm:$0xff]
  %v959 = vld [vmem:[%s1 + $0x550] sm:$0xff]
  %v960 = vld [vmem:[%s1 + $0x558] sm:$0xff]
  %v961 = vld [vmem:[%s1 + $0x560] sm:$0xff]
  %v962 = vld [vmem:[%s1 + $0x568] sm:$0xff]
  %v963 = vld [vmem:[%s1 + $0x570] sm:$0xff]
  %v964 = vld [vmem:[%s1 + $0x578] sm:$0xff]
  %v965 = vld [vmem:[%s1 + $0x580] sm:$0xff]
  %v966 = vld [vmem:[%s1 + $0x588] sm:$0xff]
  %v967 = vld [vmem:[%s1 + $0x590] sm:$0xff]
  %v968 = vld [vmem:[%s1 + $0x598] sm:$0xff]
  %v969 = vld [vmem:[%s1 + $0x5a0] sm:$0xff]
  %v970 = vld [vmem:[%s1 + $0x5a8] sm:$0xff]
  %v971 = vld [vmem:[%s1 + $0x5b0] sm:$0xff]
  %v972 = vld [vmem:[%s1 + $0x5b8] sm:$0xff]
  %v973 = vld [vmem:[%s1 + $0x5c0] sm:$0xff]
  %v974 = vld [vmem:[%s1 + $0x5c8] sm:$0xff]
  %v975 = vld [vmem:[%s1 + $0x5d0] sm:$0xff]
  %v976 = vld [vmem:[%s1 + $0x5d8] sm:$0xff]
  %v977 = vld [vmem:[%s1 + $0x5e0] sm:$0xff]
  %v978 = vld [vmem:[%s1 + $0x5e8] sm:$0xff]
  %v979 = vld [vmem:[%s1 + $0x5f0] sm:$0xff]
  %v980 = vld [vmem:[%s1 + $0x5f8] sm:$0xff]
  %v981 = vld [vmem:[%s1 + $0x600] sm:$0xff]
  %v982 = vld [vmem:[%s1 + $0x608] sm:$0xff]
  %v983 = vld [vmem:[%s1 + $0x610] sm:$0xff]
  %v984 = vld [vmem:[%s1 + $0x618] sm:$0xff]
  %v985 = vld [vmem:[%s1 + $0x620] sm:$0xff]
  %v986 = vld [vmem:[%s1 + $0x628] sm:$0xff]
  %v987 = vld [vmem:[%s1 + $0x630] sm:$0xff]
  %v988 = vld [vmem:[%s1 + $0x638] sm:$0xff]
  %v989 = vld [vmem:[%s1 + $0x640] sm:$0xff]
  %v990 = vld [vmem:[%s1 + $0x648] sm:$0xff]
  %v991 = vld [vmem:[%s1 + $0x650] sm:$0xff]
  %v992 = vld [vmem:[%s1 + $0x658] sm:$0xff]
  %v993 = vld [vmem:[%s1 + $0x660] sm:$0xff]
  %v994 = vld [vmem:[%s1 + $0x668] sm:$0xff]
  %v995 = vld [vmem:[%s1 + $0x670] sm:$0xff]
  %v996 = vld [vmem:[%s1 + $0x678] sm:$0xff]
  %v997 = vld [vmem:[%s1 + $0x680] sm:$0xff]
  %v998 = vld [vmem:[%s1 + $0x688] sm:$0xff]
  %v999 = vld [vmem:[%s1 + $0x690] sm:$0xff]
  %v1000 = vld [vmem:[%s1 + $0x698] sm:$0xff]
  %v1001 = vld [vmem:[%s1 + $0x6a0] sm:$0xff]
  %v1002 = vld [vmem:[%s1 + $0x6a8] sm:$0xff]
  %v1003 = vld [vmem:[%s1 + $0x6b0] sm:$0xff]
  %v1004 = vld [vmem:[%s1 + $0x6b8] sm:$0xff]
  %v1005 = vld [vmem:[%s1 + $0x6c0] sm:$0xff]
  %v1006 = vld [vmem:[%s1 + $0x6c8] sm:$0xff]
  %v1007 = vld [vmem:[%s1 + $0x6d0] sm:$0xff]
  %v1008 = vld [vmem:[%s1 + $0x6d8] sm:$0xff]
  %v1009 = vld [vmem:[%s1 + $0x6e0] sm:$0xff]
  %v1010 = vld [vmem:[%s1 + $0x6e8] sm:$0xff]
  %v1011 = vld [vmem:[%s1 + $0x6f0] sm:$0xff]
  %v1012 = vld [vmem:[%s1 + $0x6f8] sm:$0xff]
  %v1013 = vld [vmem:[%s1 + $0x700] sm:$0xff]
  %v1014 = vld [vmem:[%s1 + $0x708] sm:$0xff]
  %v1015 = vld [vmem:[%s1 + $0x710] sm:$0xff]
  %v1016 = vld [vmem:[%s1 + $0x718] sm:$0xff]
  %v1017 = vld [vmem:[%s1 + $0x720] sm:$0xff]
  %v1018 = vld [vmem:[%s1 + $0x728] sm:$0xff]
  %v1019 = vld [vmem:[%s1 + $0x730] sm:$0xff]
  %v1020 = vld [vmem:[%s1 + $0x738] sm:$0xff]
  %v1021 = vld [vmem:[%s1 + $0x740] sm:$0xff]
  %v1022 = vld [vmem:[%s1 + $0x748] sm:$0xff]
  %v1023 = vld [vmem:[%s1 + $0x750] sm:$0xff]
  %v1024 = vld [vmem:[%s1 + $0x758] sm:$0xff]
  %v1025 = vld [vmem:[%s1 + $0x760] sm:$0xff]
  %v1026 = vld [vmem:[%s1 + $0x768] sm:$0xff]
  %v1027 = vld [vmem:[%s1 + $0x770] sm:$0xff]
  %v1028 = vld [vmem:[%s1 + $0x778] sm:$0xff]
  %v1029 = vld [vmem:[%s1 + $0x780] sm:$0xff]
  %v1030 = vld [vmem:[%s1 + $0x788] sm:$0xff]
  %v1031 = vld [vmem:[%s1 + $0x790] sm:$0xff]
  %v1032 = vld [vmem:[%s1 + $0x798] sm:$0xff]
  %v1033 = vld [vmem:[%s1 + $0x7a0] sm:$0xff]
  %v1034 = vld [vmem:[%s1 + $0x7a8] sm:$0xff]
  %v1035 = vld [vmem:[%s1 + $0x7b0] sm:$0xff]
  %v1036 = vld [vmem:[%s1 + $0x7b8] sm:$0xff]
  %v1037 = vld [vmem:[%s1 + $0x7c0] sm:$0xff]
  %v1038 = vld [vmem:[%s1 + $0x7c8] sm:$0xff]
  %v1039 = vld [vmem:[%s1 + $0x7d0] sm:$0xff]
  %v1040 = vld [vmem:[%s1 + $0x7d8] sm:$0xff]
  %v1041 = vld [vmem:[%s1 + $0x7e0] sm:$0xff]
  %v1042 = vld [vmem:[%s1 + $0x7e8] sm:$0xff]
  %v1043 = vld [vmem:[%s1 + $0x7f0] sm:$0xff]
  %v1044 = vld [vmem:[%s1 + $0x7f8] sm:$0xff]
  %v1045 = vld [vmem:[%s1 + $0x800] sm:$0xff]
  %v1046 = vld [vmem:[%s1 + $0x808] sm:$0xff]
  %v1047 = vld [vmem:[%s1 + $0x810] sm:$0xff]
  %v1048 = vld [vmem:[%s1 + $0x818] sm:$0xff]
  %v1049 = vld [vmem:[%s1 + $0x820] sm:$0xff]
  %v1050 = vld [vmem:[%s1 + $0x828] sm:$0xff]
  %v1051 = vld [vmem:[%s1 + $0x830] sm:$0xff]
  %v1052 = vld [vmem:[%s1 + $0x838] sm:$0xff]
  %v1053 = vld [vmem:[%s1 + $0x840] sm:$0xff]
  %v1054 = vld [vmem:[%s1 + $0x848] sm:$0xff]
  %v1055 = vld [vmem:[%s1 + $0x850] sm:$0xff]
  %v1056 = vld [vmem:[%s1 + $0x858] sm:$0xff]
  %v1057 = vld [vmem:[%s1 + $0x860] sm:$0xff]
  %v1058 = vld [vmem:[%s1 + $0x868] sm:$0xff]
  %v1059 = vld [vmem:[%s1 + $0x870] sm:$0xff]
  %v1060 = vld [vmem:[%s1 + $0x878] sm:$0xff]
  %v1061 = vld [vmem:[%s1 + $0x880] sm:$0xff]
  %v1062 = vld [vmem:[%s1 + $0x888] sm:$0xff]
  %v1063 = vld [vmem:[%s1 + $0x890] sm:$0xff]
  %v1064 = vld [vmem:[%s1 + $0x898] sm:$0xff]
  %v1065 = vld [vmem:[%s1 + $0x8a0] sm:$0xff]
  %v1066 = vld [vmem:[%s1 + $0x8a8] sm:$0xff]
  %v1067 = vld [vmem:[%s1 + $0x8b0] sm:$0xff]
  %v1068 = vld [vmem:[%s1 + $0x8b8] sm:$0xff]
  %v1069 = vld [vmem:[%s1 + $0x8c0] sm:$0xff]
  %v1070 = vld [vmem:[%s1 + $0x8c8] sm:$0xff]
  %v1071 = vld [vmem:[%s1 + $0x8d0] sm:$0xff]
  %v1072 = vld [vmem:[%s1 + $0x8d8] sm:$0xff]
  %v1073 = vld [vmem:[%s1 + $0x8e0] sm:$0xff]
  %v1074 = vld [vmem:[%s1 + $0x8e8] sm:$0xff]
  %v1075 = vld [vmem:[%s1 + $0x8f0] sm:$0xff]
  %v1076 = vld [vmem:[%s1 + $0x8f8] sm:$0xff]
  %v1077 = vld [vmem:[%s1 + $0x900] sm:$0xff]
  %v1078 = vld [vmem:[%s1 + $0x908] sm:$0xff]
  %v1079 = vld [vmem:[%s1 + $0x910] sm:$0xff]
  %v1080 = vld [vmem:[%s1 + $0x918] sm:$0xff]
  %v1081 = vld [vmem:[%s1 + $0x920] sm:$0xff]
  %v1082 = vld [vmem:[%s1 + $0x928] sm:$0xff]
  %v1083 = vld [vmem:[%s1 + $0x930] sm:$0xff]
  %v1084 = vld [vmem:[%s1 + $0x938] sm:$0xff]
  %v1085 = vld [vmem:[%s1 + $0x940] sm:$0xff]
  %v1086 = vld [vmem:[%s1 + $0x948] sm:$0xff]
  %v1087 = vld [vmem:[%s1 + $0x950] sm:$0xff]
  %v1088 = vld [vmem:[%s1 + $0x958] sm:$0xff]
  %v1089 = vld [vmem:[%s1 + $0x960] sm:$0xff]
  %v1090 = vld [vmem:[%s1 + $0x968] sm:$0xff]
  %v1091 = vld [vmem:[%s1 + $0x970] sm:$0xff]
  %v1092 = vld [vmem:[%s1 + $0x978] sm:$0xff]
  %v1093 = vld [vmem:[%s1 + $0x980] sm:$0xff]
  %v1094 = vld [vmem:[%s1 + $0x988] sm:$0xff]
  %v1095 = vld [vmem:[%s1 + $0x990] sm:$0xff]
  %v1096 = vld [vmem:[%s1 + $0x998] sm:$0xff]
  %v1097 = vld [vmem:[%s1 + $0x9a0] sm:$0xff]
  %v1098 = vld [vmem:[%s1 + $0x9a8] sm:$0xff]
  %v1099 = vld [vmem:[%s1 + $0x9b0] sm:$0xff]
  %v1100 = vld [vmem:[%s1 + $0x9b8] sm:$0xff]
  %v1101 = vld [vmem:[%s1 + $0x9c0] sm:$0xff]
  %v1102 = vld [vmem:[%s1 + $0x9c8] sm:$0xff]
  %v1103 = vld [vmem:[%s1 + $0x9d0] sm:$0xff]
  %v1104 = vld [vmem:[%s1 + $0x9d8] sm:$0xff]
  %v1105 = vld [vmem:[%s1 + $0x9e0] sm:$0xff]
  %v1106 = vld [vmem:[%s1 + $0x9e8] sm:$0xff]
  %v1107 = vld [vmem:[%s1 + $0x9f0] sm:$0xff]
  %v1108 = vld [vmem:[%s1 + $0x9f8] sm:$0xff]
  %v1429 = vunpack.c.l.b16 %v789
  %v1430 = vunpack.c.h.b16 %v789
  %v1431 = vunpack.c.l.b16 %v790
  %v1432 = vunpack.c.h.b16 %v790
  %v1433 = vunpack.c.l.b16 %v791
  %v1434 = vunpack.c.h.b16 %v791
  %v1435 = vunpack.c.l.b16 %v792
  %v1436 = vunpack.c.h.b16 %v792
  %v1437 = vunpack.c.l.b16 %v793
  %v1438 = vunpack.c.h.b16 %v793
  %v1439 = vunpack.c.l.b16 %v794
  %v1440 = vunpack.c.h.b16 %v794
  %v1441 = vunpack.c.l.b16 %v795
  %v1442 = vunpack.c.h.b16 %v795
  %v1443 = vunpack.c.l.b16 %v796
  %v1444 = vunpack.c.h.b16 %v796
  %v1445 = vunpack.c.l.b16 %v797
  %v1446 = vunpack.c.h.b16 %v797
  %v1447 = vunpack.c.l.b16 %v798
  %v1448 = vunpack.c.h.b16 %v798
  %v1449 = vunpack.c.l.b16 %v799
  %v1450 = vunpack.c.h.b16 %v799
  %v1451 = vunpack.c.l.b16 %v800
  %v1452 = vunpack.c.h.b16 %v800
  %v1453 = vunpack.c.l.b16 %v801
  %v1454 = vunpack.c.h.b16 %v801
  %v1455 = vunpack.c.l.b16 %v802
  %v1456 = vunpack.c.h.b16 %v802
  %v1457 = vunpack.c.l.b16 %v803
  %v1458 = vunpack.c.h.b16 %v803
  %v1459 = vunpack.c.l.b16 %v804
  %v1460 = vunpack.c.h.b16 %v804
  %v1461 = vunpack.c.l.b16 %v805
  %v1462 = vunpack.c.h.b16 %v805
  %v1463 = vunpack.c.l.b16 %v806
  %v1464 = vunpack.c.h.b16 %v806
  %v1465 = vunpack.c.l.b16 %v807
  %v1466 = vunpack.c.h.b16 %v807
  %v1467 = vunpack.c.l.b16 %v808
  %v1468 = vunpack.c.h.b16 %v808
  %v1469 = vunpack.c.l.b16 %v809
  %v1470 = vunpack.c.h.b16 %v809
  %v1471 = vunpack.c.l.b16 %v810
  %v1472 = vunpack.c.h.b16 %v810
  %v1473 = vunpack.c.l.b16 %v811
  %v1474 = vunpack.c.h.b16 %v811
  %v1475 = vunpack.c.l.b16 %v812
  %v1476 = vunpack.c.h.b16 %v812
  %v1477 = vunpack.c.l.b16 %v813
  %v1478 = vunpack.c.h.b16 %v813
  %v1479 = vunpack.c.l.b16 %v814
  %v1480 = vunpack.c.h.b16 %v814
  %v1481 = vunpack.c.l.b16 %v815
  %v1482 = vunpack.c.h.b16 %v815
  %v1483 = vunpack.c.l.b16 %v816
  %v1484 = vunpack.c.h.b16 %v816
  %v1485 = vunpack.c.l.b16 %v817
  %v1486 = vunpack.c.h.b16 %v817
  %v1487 = vunpack.c.l.b16 %v818
  %v1488 = vunpack.c.h.b16 %v818
  %v1489 = vunpack.c.l.b16 %v819
  %v1490 = vunpack.c.h.b16 %v819
  %v1491 = vunpack.c.l.b16 %v820
  %v1492 = vunpack.c.h.b16 %v820
  %v1493 = vunpack.c.l.b16 %v821
  %v1494 = vunpack.c.h.b16 %v821
  %v1495 = vunpack.c.l.b16 %v822
  %v1496 = vunpack.c.h.b16 %v822
  %v1497 = vunpack.c.l.b16 %v823
  %v1498 = vunpack.c.h.b16 %v823
  %v1499 = vunpack.c.l.b16 %v824
  %v1500 = vunpack.c.h.b16 %v824
  %v1501 = vunpack.c.l.b16 %v825
  %v1502 = vunpack.c.h.b16 %v825
  %v1503 = vunpack.c.l.b16 %v826
  %v1504 = vunpack.c.h.b16 %v826
  %v1505 = vunpack.c.l.b16 %v827
  %v1506 = vunpack.c.h.b16 %v827
  %v1507 = vunpack.c.l.b16 %v828
  %v1508 = vunpack.c.h.b16 %v828
  %v1509 = vunpack.c.l.b16 %v829
  %v1510 = vunpack.c.h.b16 %v829
  %v1511 = vunpack.c.l.b16 %v830
  %v1512 = vunpack.c.h.b16 %v830
  %v1513 = vunpack.c.l.b16 %v831
  %v1514 = vunpack.c.h.b16 %v831
  %v1515 = vunpack.c.l.b16 %v832
  %v1516 = vunpack.c.h.b16 %v832
  %v1517 = vunpack.c.l.b16 %v833
  %v1518 = vunpack.c.h.b16 %v833
  %v1519 = vunpack.c.l.b16 %v834
  %v1520 = vunpack.c.h.b16 %v834
  %v1521 = vunpack.c.l.b16 %v835
  %v1522 = vunpack.c.h.b16 %v835
  %v1523 = vunpack.c.l.b16 %v836
  %v1524 = vunpack.c.h.b16 %v836
  %v1525 = vunpack.c.l.b16 %v837
  %v1526 = vunpack.c.h.b16 %v837
  %v1527 = vunpack.c.l.b16 %v838
  %v1528 = vunpack.c.h.b16 %v838
  %v1529 = vunpack.c.l.b16 %v839
  %v1530 = vunpack.c.h.b16 %v839
  %v1531 = vunpack.c.l.b16 %v840
  %v1532 = vunpack.c.h.b16 %v840
  %v1533 = vunpack.c.l.b16 %v841
  %v1534 = vunpack.c.h.b16 %v841
  %v1535 = vunpack.c.l.b16 %v842
  %v1536 = vunpack.c.h.b16 %v842
  %v1537 = vunpack.c.l.b16 %v843
  %v1538 = vunpack.c.h.b16 %v843
  %v1539 = vunpack.c.l.b16 %v844
  %v1540 = vunpack.c.h.b16 %v844
  %v1541 = vunpack.c.l.b16 %v845
  %v1542 = vunpack.c.h.b16 %v845
  %v1543 = vunpack.c.l.b16 %v846
  %v1544 = vunpack.c.h.b16 %v846
  %v1545 = vunpack.c.l.b16 %v847
  %v1546 = vunpack.c.h.b16 %v847
  %v1547 = vunpack.c.l.b16 %v848
  %v1548 = vunpack.c.h.b16 %v848
  %v1549 = vunpack.c.l.b16 %v849
  %v1550 = vunpack.c.h.b16 %v849
  %v1551 = vunpack.c.l.b16 %v850
  %v1552 = vunpack.c.h.b16 %v850
  %v1553 = vunpack.c.l.b16 %v851
  %v1554 = vunpack.c.h.b16 %v851
  %v1555 = vunpack.c.l.b16 %v852
  %v1556 = vunpack.c.h.b16 %v852
  %v1557 = vunpack.c.l.b16 %v853
  %v1558 = vunpack.c.h.b16 %v853
  %v1559 = vunpack.c.l.b16 %v854
  %v1560 = vunpack.c.h.b16 %v854
  %v1561 = vunpack.c.l.b16 %v855
  %v1562 = vunpack.c.h.b16 %v855
  %v1563 = vunpack.c.l.b16 %v856
  %v1564 = vunpack.c.h.b16 %v856
  %v1565 = vunpack.c.l.b16 %v857
  %v1566 = vunpack.c.h.b16 %v857
  %v1567 = vunpack.c.l.b16 %v858
  %v1568 = vunpack.c.h.b16 %v858
  %v1569 = vunpack.c.l.b16 %v859
  %v1570 = vunpack.c.h.b16 %v859
  %v1571 = vunpack.c.l.b16 %v860
  %v1572 = vunpack.c.h.b16 %v860
  %v1573 = vunpack.c.l.b16 %v861
  %v1574 = vunpack.c.h.b16 %v861
  %v1575 = vunpack.c.l.b16 %v862
  %v1576 = vunpack.c.h.b16 %v862
  %v1577 = vunpack.c.l.b16 %v863
  %v1578 = vunpack.c.h.b16 %v863
  %v1579 = vunpack.c.l.b16 %v864
  %v1580 = vunpack.c.h.b16 %v864
  %v1581 = vunpack.c.l.b16 %v865
  %v1582 = vunpack.c.h.b16 %v865
  %v1583 = vunpack.c.l.b16 %v866
  %v1584 = vunpack.c.h.b16 %v866
  %v1585 = vunpack.c.l.b16 %v867
  %v1586 = vunpack.c.h.b16 %v867
  %v1587 = vunpack.c.l.b16 %v868
  %v1588 = vunpack.c.h.b16 %v868
  %v1589 = vunpack.c.l.b16 %v869
  %v1590 = vunpack.c.h.b16 %v869
  %v1591 = vunpack.c.l.b16 %v870
  %v1592 = vunpack.c.h.b16 %v870
  %v1593 = vunpack.c.l.b16 %v871
  %v1594 = vunpack.c.h.b16 %v871
  %v1595 = vunpack.c.l.b16 %v872
  %v1596 = vunpack.c.h.b16 %v872
  %v1597 = vunpack.c.l.b16 %v873
  %v1598 = vunpack.c.h.b16 %v873
  %v1599 = vunpack.c.l.b16 %v874
  %v1600 = vunpack.c.h.b16 %v874
  %v1601 = vunpack.c.l.b16 %v875
  %v1602 = vunpack.c.h.b16 %v875
  %v1603 = vunpack.c.l.b16 %v876
  %v1604 = vunpack.c.h.b16 %v876
  %v1605 = vunpack.c.l.b16 %v877
  %v1606 = vunpack.c.h.b16 %v877
  %v1607 = vunpack.c.l.b16 %v878
  %v1608 = vunpack.c.h.b16 %v878
  %v1609 = vunpack.c.l.b16 %v879
  %v1610 = vunpack.c.h.b16 %v879
  %v1611 = vunpack.c.l.b16 %v880
  %v1612 = vunpack.c.h.b16 %v880
  %v1613 = vunpack.c.l.b16 %v881
  %v1614 = vunpack.c.h.b16 %v881
  %v1615 = vunpack.c.l.b16 %v882
  %v1616 = vunpack.c.h.b16 %v882
  %v1617 = vunpack.c.l.b16 %v883
  %v1618 = vunpack.c.h.b16 %v883
  %v1619 = vunpack.c.l.b16 %v884
  %v1620 = vunpack.c.h.b16 %v884
  %v1621 = vunpack.c.l.b16 %v885
  %v1622 = vunpack.c.h.b16 %v885
  %v1623 = vunpack.c.l.b16 %v886
  %v1624 = vunpack.c.h.b16 %v886
  %v1625 = vunpack.c.l.b16 %v887
  %v1626 = vunpack.c.h.b16 %v887
  %v1627 = vunpack.c.l.b16 %v888
  %v1628 = vunpack.c.h.b16 %v888
  %v1629 = vunpack.c.l.b16 %v889
  %v1630 = vunpack.c.h.b16 %v889
  %v1631 = vunpack.c.l.b16 %v890
  %v1632 = vunpack.c.h.b16 %v890
  %v1633 = vunpack.c.l.b16 %v891
  %v1634 = vunpack.c.h.b16 %v891
  %v1635 = vunpack.c.l.b16 %v892
  %v1636 = vunpack.c.h.b16 %v892
  %v1637 = vunpack.c.l.b16 %v893
  %v1638 = vunpack.c.h.b16 %v893
  %v1639 = vunpack.c.l.b16 %v894
  %v1640 = vunpack.c.h.b16 %v894
  %v1641 = vunpack.c.l.b16 %v895
  %v1642 = vunpack.c.h.b16 %v895
  %v1643 = vunpack.c.l.b16 %v896
  %v1644 = vunpack.c.h.b16 %v896
  %v1645 = vunpack.c.l.b16 %v897
  %v1646 = vunpack.c.h.b16 %v897
  %v1647 = vunpack.c.l.b16 %v898
  %v1648 = vunpack.c.h.b16 %v898
  %v1649 = vunpack.c.l.b16 %v899
  %v1650 = vunpack.c.h.b16 %v899
  %v1651 = vunpack.c.l.b16 %v900
  %v1652 = vunpack.c.h.b16 %v900
  %v1653 = vunpack.c.l.b16 %v901
  %v1654 = vunpack.c.h.b16 %v901
  %v1655 = vunpack.c.l.b16 %v902
  %v1656 = vunpack.c.h.b16 %v902
  %v1657 = vunpack.c.l.b16 %v903
  %v1658 = vunpack.c.h.b16 %v903
  %v1659 = vunpack.c.l.b16 %v904
  %v1660 = vunpack.c.h.b16 %v904
  %v1661 = vunpack.c.l.b16 %v905
  %v1662 = vunpack.c.h.b16 %v905
  %v1663 = vunpack.c.l.b16 %v906
  %v1664 = vunpack.c.h.b16 %v906
  %v1665 = vunpack.c.l.b16 %v907
  %v1666 = vunpack.c.h.b16 %v907
  %v1667 = vunpack.c.l.b16 %v908
  %v1668 = vunpack.c.h.b16 %v908
  %v1669 = vunpack.c.l.b16 %v909
  %v1670 = vunpack.c.h.b16 %v909
  %v1671 = vunpack.c.l.b16 %v910
  %v1672 = vunpack.c.h.b16 %v910
  %v1673 = vunpack.c.l.b16 %v911
  %v1674 = vunpack.c.h.b16 %v911
  %v1675 = vunpack.c.l.b16 %v912
  %v1676 = vunpack.c.h.b16 %v912
  %v1677 = vunpack.c.l.b16 %v913
  %v1678 = vunpack.c.h.b16 %v913
  %v1679 = vunpack.c.l.b16 %v914
  %v1680 = vunpack.c.h.b16 %v914
  %v1681 = vunpack.c.l.b16 %v915
  %v1682 = vunpack.c.h.b16 %v915
  %v1683 = vunpack.c.l.b16 %v916
  %v1684 = vunpack.c.h.b16 %v916
  %v1685 = vunpack.c.l.b16 %v917
  %v1686 = vunpack.c.h.b16 %v917
  %v1687 = vunpack.c.l.b16 %v918
  %v1688 = vunpack.c.h.b16 %v918
  %v1689 = vunpack.c.l.b16 %v919
  %v1690 = vunpack.c.h.b16 %v919
  %v1691 = vunpack.c.l.b16 %v920
  %v1692 = vunpack.c.h.b16 %v920
  %v1693 = vunpack.c.l.b16 %v921
  %v1694 = vunpack.c.h.b16 %v921
  %v1695 = vunpack.c.l.b16 %v922
  %v1696 = vunpack.c.h.b16 %v922
  %v1697 = vunpack.c.l.b16 %v923
  %v1698 = vunpack.c.h.b16 %v923
  %v1699 = vunpack.c.l.b16 %v924
  %v1700 = vunpack.c.h.b16 %v924
  %v1701 = vunpack.c.l.b16 %v925
  %v1702 = vunpack.c.h.b16 %v925
  %v1703 = vunpack.c.l.b16 %v926
  %v1704 = vunpack.c.h.b16 %v926
  %v1705 = vunpack.c.l.b16 %v927
  %v1706 = vunpack.c.h.b16 %v927
  %v1707 = vunpack.c.l.b16 %v928
  %v1708 = vunpack.c.h.b16 %v928
  %v1709 = vunpack.c.l.b16 %v929
  %v1710 = vunpack.c.h.b16 %v929
  %v1711 = vunpack.c.l.b16 %v930
  %v1712 = vunpack.c.h.b16 %v930
  %v1713 = vunpack.c.l.b16 %v931
  %v1714 = vunpack.c.h.b16 %v931
  %v1715 = vunpack.c.l.b16 %v932
  %v1716 = vunpack.c.h.b16 %v932
  %v1717 = vunpack.c.l.b16 %v933
  %v1718 = vunpack.c.h.b16 %v933
  %v1719 = vunpack.c.l.b16 %v934
  %v1720 = vunpack.c.h.b16 %v934
  %v1721 = vunpack.c.l.b16 %v935
  %v1722 = vunpack.c.h.b16 %v935
  %v1723 = vunpack.c.l.b16 %v936
  %v1724 = vunpack.c.h.b16 %v936
  %v1725 = vunpack.c.l.b16 %v937
  %v1726 = vunpack.c.h.b16 %v937
  %v1727 = vunpack.c.l.b16 %v938
  %v1728 = vunpack.c.h.b16 %v938
  %v1729 = vunpack.c.l.b16 %v939
  %v1730 = vunpack.c.h.b16 %v939
  %v1731 = vunpack.c.l.b16 %v940
  %v1732 = vunpack.c.h.b16 %v940
  %v1733 = vunpack.c.l.b16 %v941
  %v1734 = vunpack.c.h.b16 %v941
  %v1735 = vunpack.c.l.b16 %v942
  %v1736 = vunpack.c.h.b16 %v942
  %v1737 = vunpack.c.l.b16 %v943
  %v1738 = vunpack.c.h.b16 %v943
  %v1739 = vunpack.c.l.b16 %v944
  %v1740 = vunpack.c.h.b16 %v944
  %v1741 = vunpack.c.l.b16 %v945
  %v1742 = vunpack.c.h.b16 %v945
  %v1743 = vunpack.c.l.b16 %v946
  %v1744 = vunpack.c.h.b16 %v946
  %v1745 = vunpack.c.l.b16 %v947
  %v1746 = vunpack.c.h.b16 %v947
  %v1747 = vunpack.c.l.b16 %v948
  %v1748 = vunpack.c.h.b16 %v948
  %v1749 = vunpack.c.l.b16 %v949
  %v1750 = vunpack.c.h.b16 %v949
  %v1751 = vunpack.c.l.b16 %v950
  %v1752 = vunpack.c.h.b16 %v950
  %v1753 = vunpack.c.l.b16 %v951
  %v1754 = vunpack.c.h.b16 %v951
  %v1755 = vunpack.c.l.b16 %v952
  %v1756 = vunpack.c.h.b16 %v952
  %v1757 = vunpack.c.l.b16 %v953
  %v1758 = vunpack.c.h.b16 %v953
  %v1759 = vunpack.c.l.b16 %v954
  %v1760 = vunpack.c.h.b16 %v954
  %v1761 = vunpack.c.l.b16 %v955
  %v1762 = vunpack.c.h.b16 %v955
  %v1763 = vunpack.c.l.b16 %v956
  %v1764 = vunpack.c.h.b16 %v956
  %v1765 = vunpack.c.l.b16 %v957
  %v1766 = vunpack.c.h.b16 %v957
  %v1767 = vunpack.c.l.b16 %v958
  %v1768 = vunpack.c.h.b16 %v958
  %v1769 = vunpack.c.l.b16 %v959
  %v1770 = vunpack.c.h.b16 %v959
  %v1771 = vunpack.c.l.b16 %v960
  %v1772 = vunpack.c.h.b16 %v960
  %v1773 = vunpack.c.l.b16 %v961
  %v1774 = vunpack.c.h.b16 %v961
  %v1775 = vunpack.c.l.b16 %v962
  %v1776 = vunpack.c.h.b16 %v962
  %v1777 = vunpack.c.l.b16 %v963
  %v1778 = vunpack.c.h.b16 %v963
  %v1779 = vunpack.c.l.b16 %v964
  %v1780 = vunpack.c.h.b16 %v964
  %v1781 = vunpack.c.l.b16 %v965
  %v1782 = vunpack.c.h.b16 %v965
  %v1783 = vunpack.c.l.b16 %v966
  %v1784 = vunpack.c.h.b16 %v966
  %v1785 = vunpack.c.l.b16 %v967
  %v1786 = vunpack.c.h.b16 %v967
  %v1787 = vunpack.c.l.b16 %v968
  %v1788 = vunpack.c.h.b16 %v968
  %v1789 = vunpack.c.l.b16 %v969
  %v1790 = vunpack.c.h.b16 %v969
  %v1791 = vunpack.c.l.b16 %v970
  %v1792 = vunpack.c.h.b16 %v970
  %v1793 = vunpack.c.l.b16 %v971
  %v1794 = vunpack.c.h.b16 %v971
  %v1795 = vunpack.c.l.b16 %v972
  %v1796 = vunpack.c.h.b16 %v972
  %v1797 = vunpack.c.l.b16 %v973
  %v1798 = vunpack.c.h.b16 %v973
  %v1799 = vunpack.c.l.b16 %v974
  %v1800 = vunpack.c.h.b16 %v974
  %v1801 = vunpack.c.l.b16 %v975
  %v1802 = vunpack.c.h.b16 %v975
  %v1803 = vunpack.c.l.b16 %v976
  %v1804 = vunpack.c.h.b16 %v976
  %v1805 = vunpack.c.l.b16 %v977
  %v1806 = vunpack.c.h.b16 %v977
  %v1807 = vunpack.c.l.b16 %v978
  %v1808 = vunpack.c.h.b16 %v978
  %v1809 = vunpack.c.l.b16 %v979
  %v1810 = vunpack.c.h.b16 %v979
  %v1811 = vunpack.c.l.b16 %v980
  %v1812 = vunpack.c.h.b16 %v980
  %v1813 = vunpack.c.l.b16 %v981
  %v1814 = vunpack.c.h.b16 %v981
  %v1815 = vunpack.c.l.b16 %v982
  %v1816 = vunpack.c.h.b16 %v982
  %v1817 = vunpack.c.l.b16 %v983
  %v1818 = vunpack.c.h.b16 %v983
  %v1819 = vunpack.c.l.b16 %v984
  %v1820 = vunpack.c.h.b16 %v984
  %v1821 = vunpack.c.l.b16 %v985
  %v1822 = vunpack.c.h.b16 %v985
  %v1823 = vunpack.c.l.b16 %v986
  %v1824 = vunpack.c.h.b16 %v986
  %v1825 = vunpack.c.l.b16 %v987
  %v1826 = vunpack.c.h.b16 %v987
  %v1827 = vunpack.c.l.b16 %v988
  %v1828 = vunpack.c.h.b16 %v988
  %v1829 = vunpack.c.l.b16 %v989
  %v1830 = vunpack.c.h.b16 %v989
  %v1831 = vunpack.c.l.b16 %v990
  %v1832 = vunpack.c.h.b16 %v990
  %v1833 = vunpack.c.l.b16 %v991
  %v1834 = vunpack.c.h.b16 %v991
  %v1835 = vunpack.c.l.b16 %v992
  %v1836 = vunpack.c.h.b16 %v992
  %v1837 = vunpack.c.l.b16 %v993
  %v1838 = vunpack.c.h.b16 %v993
  %v1839 = vunpack.c.l.b16 %v994
  %v1840 = vunpack.c.h.b16 %v994
  %v1841 = vunpack.c.l.b16 %v995
  %v1842 = vunpack.c.h.b16 %v995
  %v1843 = vunpack.c.l.b16 %v996
  %v1844 = vunpack.c.h.b16 %v996
  %v1845 = vunpack.c.l.b16 %v997
  %v1846 = vunpack.c.h.b16 %v997
  %v1847 = vunpack.c.l.b16 %v998
  %v1848 = vunpack.c.h.b16 %v998
  %v1849 = vunpack.c.l.b16 %v999
  %v1850 = vunpack.c.h.b16 %v999
  %v1851 = vunpack.c.l.b16 %v1000
  %v1852 = vunpack.c.h.b16 %v1000
  %v1853 = vunpack.c.l.b16 %v1001
  %v1854 = vunpack.c.h.b16 %v1001
  %v1855 = vunpack.c.l.b16 %v1002
  %v1856 = vunpack.c.h.b16 %v1002
  %v1857 = vunpack.c.l.b16 %v1003
  %v1858 = vunpack.c.h.b16 %v1003
  %v1859 = vunpack.c.l.b16 %v1004
  %v1860 = vunpack.c.h.b16 %v1004
  %v1861 = vunpack.c.l.b16 %v1005
  %v1862 = vunpack.c.h.b16 %v1005
  %v1863 = vunpack.c.l.b16 %v1006
  %v1864 = vunpack.c.h.b16 %v1006
  %v1865 = vunpack.c.l.b16 %v1007
  %v1866 = vunpack.c.h.b16 %v1007
  %v1867 = vunpack.c.l.b16 %v1008
  %v1868 = vunpack.c.h.b16 %v1008
  %v1869 = vunpack.c.l.b16 %v1009
  %v1870 = vunpack.c.h.b16 %v1009
  %v1871 = vunpack.c.l.b16 %v1010
  %v1872 = vunpack.c.h.b16 %v1010
  %v1873 = vunpack.c.l.b16 %v1011
  %v1874 = vunpack.c.h.b16 %v1011
  %v1875 = vunpack.c.l.b16 %v1012
  %v1876 = vunpack.c.h.b16 %v1012
  %v1877 = vunpack.c.l.b16 %v1013
  %v1878 = vunpack.c.h.b16 %v1013
  %v1879 = vunpack.c.l.b16 %v1014
  %v1880 = vunpack.c.h.b16 %v1014
  %v1881 = vunpack.c.l.b16 %v1015
  %v1882 = vunpack.c.h.b16 %v1015
  %v1883 = vunpack.c.l.b16 %v1016
  %v1884 = vunpack.c.h.b16 %v1016
  %v1885 = vunpack.c.l.b16 %v1017
  %v1886 = vunpack.c.h.b16 %v1017
  %v1887 = vunpack.c.l.b16 %v1018
  %v1888 = vunpack.c.h.b16 %v1018
  %v1889 = vunpack.c.l.b16 %v1019
  %v1890 = vunpack.c.h.b16 %v1019
  %v1891 = vunpack.c.l.b16 %v1020
  %v1892 = vunpack.c.h.b16 %v1020
  %v1893 = vunpack.c.l.b16 %v1021
  %v1894 = vunpack.c.h.b16 %v1021
  %v1895 = vunpack.c.l.b16 %v1022
  %v1896 = vunpack.c.h.b16 %v1022
  %v1897 = vunpack.c.l.b16 %v1023
  %v1898 = vunpack.c.h.b16 %v1023
  %v1899 = vunpack.c.l.b16 %v1024
  %v1900 = vunpack.c.h.b16 %v1024
  %v1901 = vunpack.c.l.b16 %v1025
  %v1902 = vunpack.c.h.b16 %v1025
  %v1903 = vunpack.c.l.b16 %v1026
  %v1904 = vunpack.c.h.b16 %v1026
  %v1905 = vunpack.c.l.b16 %v1027
  %v1906 = vunpack.c.h.b16 %v1027
  %v1907 = vunpack.c.l.b16 %v1028
  %v1908 = vunpack.c.h.b16 %v1028
  %v1909 = vunpack.c.l.b16 %v1029
  %v1910 = vunpack.c.h.b16 %v1029
  %v1911 = vunpack.c.l.b16 %v1030
  %v1912 = vunpack.c.h.b16 %v1030
  %v1913 = vunpack.c.l.b16 %v1031
  %v1914 = vunpack.c.h.b16 %v1031
  %v1915 = vunpack.c.l.b16 %v1032
  %v1916 = vunpack.c.h.b16 %v1032
  %v1917 = vunpack.c.l.b16 %v1033
  %v1918 = vunpack.c.h.b16 %v1033
  %v1919 = vunpack.c.l.b16 %v1034
  %v1920 = vunpack.c.h.b16 %v1034
  %v1921 = vunpack.c.l.b16 %v1035
  %v1922 = vunpack.c.h.b16 %v1035
  %v1923 = vunpack.c.l.b16 %v1036
  %v1924 = vunpack.c.h.b16 %v1036
  %v1925 = vunpack.c.l.b16 %v1037
  %v1926 = vunpack.c.h.b16 %v1037
  %v1927 = vunpack.c.l.b16 %v1038
  %v1928 = vunpack.c.h.b16 %v1038
  %v1929 = vunpack.c.l.b16 %v1039
  %v1930 = vunpack.c.h.b16 %v1039
  %v1931 = vunpack.c.l.b16 %v1040
  %v1932 = vunpack.c.h.b16 %v1040
  %v1933 = vunpack.c.l.b16 %v1041
  %v1934 = vunpack.c.h.b16 %v1041
  %v1935 = vunpack.c.l.b16 %v1042
  %v1936 = vunpack.c.h.b16 %v1042
  %v1937 = vunpack.c.l.b16 %v1043
  %v1938 = vunpack.c.h.b16 %v1043
  %v1939 = vunpack.c.l.b16 %v1044
  %v1940 = vunpack.c.h.b16 %v1044
  %v1941 = vunpack.c.l.b16 %v1045
  %v1942 = vunpack.c.h.b16 %v1045
  %v1943 = vunpack.c.l.b16 %v1046
  %v1944 = vunpack.c.h.b16 %v1046
  %v1945 = vunpack.c.l.b16 %v1047
  %v1946 = vunpack.c.h.b16 %v1047
  %v1947 = vunpack.c.l.b16 %v1048
  %v1948 = vunpack.c.h.b16 %v1048
  %v1949 = vunpack.c.l.b16 %v1049
  %v1950 = vunpack.c.h.b16 %v1049
  %v1951 = vunpack.c.l.b16 %v1050
  %v1952 = vunpack.c.h.b16 %v1050
  %v1953 = vunpack.c.l.b16 %v1051
  %v1954 = vunpack.c.h.b16 %v1051
  %v1955 = vunpack.c.l.b16 %v1052
  %v1956 = vunpack.c.h.b16 %v1052
  %v1957 = vunpack.c.l.b16 %v1053
  %v1958 = vunpack.c.h.b16 %v1053
  %v1959 = vunpack.c.l.b16 %v1054
  %v1960 = vunpack.c.h.b16 %v1054
  %v1961 = vunpack.c.l.b16 %v1055
  %v1962 = vunpack.c.h.b16 %v1055
  %v1963 = vunpack.c.l.b16 %v1056
  %v1964 = vunpack.c.h.b16 %v1056
  %v1965 = vunpack.c.l.b16 %v1057
  %v1966 = vunpack.c.h.b16 %v1057
  %v1967 = vunpack.c.l.b16 %v1058
  %v1968 = vunpack.c.h.b16 %v1058
  %v1969 = vunpack.c.l.b16 %v1059
  %v1970 = vunpack.c.h.b16 %v1059
  %v1971 = vunpack.c.l.b16 %v1060
  %v1972 = vunpack.c.h.b16 %v1060
  %v1973 = vunpack.c.l.b16 %v1061
  %v1974 = vunpack.c.h.b16 %v1061
  %v1975 = vunpack.c.l.b16 %v1062
  %v1976 = vunpack.c.h.b16 %v1062
  %v1977 = vunpack.c.l.b16 %v1063
  %v1978 = vunpack.c.h.b16 %v1063
  %v1979 = vunpack.c.l.b16 %v1064
  %v1980 = vunpack.c.h.b16 %v1064
  %v1981 = vunpack.c.l.b16 %v1065
  %v1982 = vunpack.c.h.b16 %v1065
  %v1983 = vunpack.c.l.b16 %v1066
  %v1984 = vunpack.c.h.b16 %v1066
  %v1985 = vunpack.c.l.b16 %v1067
  %v1986 = vunpack.c.h.b16 %v1067
  %v1987 = vunpack.c.l.b16 %v1068
  %v1988 = vunpack.c.h.b16 %v1068
  %v1989 = vunpack.c.l.b16 %v1069
  %v1990 = vunpack.c.h.b16 %v1069
  %v1991 = vunpack.c.l.b16 %v1070
  %v1992 = vunpack.c.h.b16 %v1070
  %v1993 = vunpack.c.l.b16 %v1071
  %v1994 = vunpack.c.h.b16 %v1071
  %v1995 = vunpack.c.l.b16 %v1072
  %v1996 = vunpack.c.h.b16 %v1072
  %v1997 = vunpack.c.l.b16 %v1073
  %v1998 = vunpack.c.h.b16 %v1073
  %v1999 = vunpack.c.l.b16 %v1074
  %v2000 = vunpack.c.h.b16 %v1074
  %v2001 = vunpack.c.l.b16 %v1075
  %v2002 = vunpack.c.h.b16 %v1075
  %v2003 = vunpack.c.l.b16 %v1076
  %v2004 = vunpack.c.h.b16 %v1076
  %v2005 = vunpack.c.l.b16 %v1077
  %v2006 = vunpack.c.h.b16 %v1077
  %v2007 = vunpack.c.l.b16 %v1078
  %v2008 = vunpack.c.h.b16 %v1078
  %v2009 = vunpack.c.l.b16 %v1079
  %v2010 = vunpack.c.h.b16 %v1079
  %v2011 = vunpack.c.l.b16 %v1080
  %v2012 = vunpack.c.h.b16 %v1080
  %v2013 = vunpack.c.l.b16 %v1081
  %v2014 = vunpack.c.h.b16 %v1081
  %v2015 = vunpack.c.l.b16 %v1082
  %v2016 = vunpack.c.h.b16 %v1082
  %v2017 = vunpack.c.l.b16 %v1083
  %v2018 = vunpack.c.h.b16 %v1083
  %v2019 = vunpack.c.l.b16 %v1084
  %v2020 = vunpack.c.h.b16 %v1084
  %v2021 = vunpack.c.l.b16 %v1085
  %v2022 = vunpack.c.h.b16 %v1085
  %v2023 = vunpack.c.l.b16 %v1086
  %v2024 = vunpack.c.h.b16 %v1086
  %v2025 = vunpack.c.l.b16 %v1087
  %v2026 = vunpack.c.h.b16 %v1087
  %v2027 = vunpack.c.l.b16 %v1088
  %v2028 = vunpack.c.h.b16 %v1088
  %v2029 = vunpack.c.l.b16 %v1089
  %v2030 = vunpack.c.h.b16 %v1089
  %v2031 = vunpack.c.l.b16 %v1090
  %v2032 = vunpack.c.h.b16 %v1090
  %v2033 = vunpack.c.l.b16 %v1091
  %v2034 = vunpack.c.h.b16 %v1091
  %v2035 = vunpack.c.l.b16 %v1092
  %v2036 = vunpack.c.h.b16 %v1092
  %v2037 = vunpack.c.l.b16 %v1093
  %v2038 = vunpack.c.h.b16 %v1093
  %v2039 = vunpack.c.l.b16 %v1094
  %v2040 = vunpack.c.h.b16 %v1094
  %v2041 = vunpack.c.l.b16 %v1095
  %v2042 = vunpack.c.h.b16 %v1095
  %v2043 = vunpack.c.l.b16 %v1096
  %v2044 = vunpack.c.h.b16 %v1096
  %v2045 = vunpack.c.l.b16 %v1097
  %v2046 = vunpack.c.h.b16 %v1097
  %v2047 = vunpack.c.l.b16 %v1098
  %v2048 = vunpack.c.h.b16 %v1098
  %v2049 = vunpack.c.l.b16 %v1099
  %v2050 = vunpack.c.h.b16 %v1099
  %v2051 = vunpack.c.l.b16 %v1100
  %v2052 = vunpack.c.h.b16 %v1100
  %v2053 = vunpack.c.l.b16 %v1101
  %v2054 = vunpack.c.h.b16 %v1101
  %v2055 = vunpack.c.l.b16 %v1102
  %v2056 = vunpack.c.h.b16 %v1102
  %v2057 = vunpack.c.l.b16 %v1103
  %v2058 = vunpack.c.h.b16 %v1103
  %v2059 = vunpack.c.l.b16 %v1104
  %v2060 = vunpack.c.h.b16 %v1104
  %v2061 = vunpack.c.l.b16 %v1105
  %v2062 = vunpack.c.h.b16 %v1105
  %v2063 = vunpack.c.l.b16 %v1106
  %v2064 = vunpack.c.h.b16 %v1106
  %v2065 = vunpack.c.l.b16 %v1107
  %v2066 = vunpack.c.h.b16 %v1107
  %v2067 = vunpack.c.l.b16 %v1108
  %v2068 = vunpack.c.h.b16 %v1108
  %v2069 = vpack.c.b16 %v1439, %v1429
  %v2070 = vpack.c.b16 %v1440, %v1430
  %v2071 = vpack.c.b16 %v1441, %v1431
  %v2072 = vpack.c.b16 %v1442, %v1432
  %v2073 = vpack.c.b16 %v1443, %v1433
  %v2074 = vpack.c.b16 %v1444, %v1434
  %v2075 = vpack.c.b16 %v1445, %v1435
  %v2076 = vpack.c.b16 %v1446, %v1436
  %v2077 = vpack.c.b16 %v1447, %v1437
  %v2078 = vpack.c.b16 %v1448, %v1438
  %v2079 = vpack.c.b16 %v1459, %v1449
  %v2080 = vpack.c.b16 %v1460, %v1450
  %v2081 = vpack.c.b16 %v1461, %v1451
  %v2082 = vpack.c.b16 %v1462, %v1452
  %v2083 = vpack.c.b16 %v1463, %v1453
  %v2084 = vpack.c.b16 %v1464, %v1454
  %v2085 = vpack.c.b16 %v1465, %v1455
  %v2086 = vpack.c.b16 %v1466, %v1456
  %v2087 = vpack.c.b16 %v1467, %v1457
  %v2088 = vpack.c.b16 %v1468, %v1458
  %v2089 = vpack.c.b16 %v1479, %v1469
  %v2090 = vpack.c.b16 %v1480, %v1470
  %v2091 = vpack.c.b16 %v1481, %v1471
  %v2092 = vpack.c.b16 %v1482, %v1472
  %v2093 = vpack.c.b16 %v1483, %v1473
  %v2094 = vpack.c.b16 %v1484, %v1474
  %v2095 = vpack.c.b16 %v1485, %v1475
  %v2096 = vpack.c.b16 %v1486, %v1476
  %v2097 = vpack.c.b16 %v1487, %v1477
  %v2098 = vpack.c.b16 %v1488, %v1478
  %v2099 = vpack.c.b16 %v1499, %v1489
  %v2100 = vpack.c.b16 %v1500, %v1490
  %v2101 = vpack.c.b16 %v1501, %v1491
  %v2102 = vpack.c.b16 %v1502, %v1492
  %v2103 = vpack.c.b16 %v1503, %v1493
  %v2104 = vpack.c.b16 %v1504, %v1494
  %v2105 = vpack.c.b16 %v1505, %v1495
  %v2106 = vpack.c.b16 %v1506, %v1496
  %v2107 = vpack.c.b16 %v1507, %v1497
  %v2108 = vpack.c.b16 %v1508, %v1498
  %v2109 = vpack.c.b16 %v1519, %v1509
  %v2110 = vpack.c.b16 %v1520, %v1510
  %v2111 = vpack.c.b16 %v1521, %v1511
  %v2112 = vpack.c.b16 %v1522, %v1512
  %v2113 = vpack.c.b16 %v1523, %v1513
  %v2114 = vpack.c.b16 %v1524, %v1514
  %v2115 = vpack.c.b16 %v1525, %v1515
  %v2116 = vpack.c.b16 %v1526, %v1516
  %v2117 = vpack.c.b16 %v1527, %v1517
  %v2118 = vpack.c.b16 %v1528, %v1518
  %v2119 = vpack.c.b16 %v1539, %v1529
  %v2120 = vpack.c.b16 %v1540, %v1530
  %v2121 = vpack.c.b16 %v1541, %v1531
  %v2122 = vpack.c.b16 %v1542, %v1532
  %v2123 = vpack.c.b16 %v1543, %v1533
  %v2124 = vpack.c.b16 %v1544, %v1534
  %v2125 = vpack.c.b16 %v1545, %v1535
  %v2126 = vpack.c.b16 %v1546, %v1536
  %v2127 = vpack.c.b16 %v1547, %v1537
  %v2128 = vpack.c.b16 %v1548, %v1538
  %v2129 = vpack.c.b16 %v1559, %v1549
  %v2130 = vpack.c.b16 %v1560, %v1550
  %v2131 = vpack.c.b16 %v1561, %v1551
  %v2132 = vpack.c.b16 %v1562, %v1552
  %v2133 = vpack.c.b16 %v1563, %v1553
  %v2134 = vpack.c.b16 %v1564, %v1554
  %v2135 = vpack.c.b16 %v1565, %v1555
  %v2136 = vpack.c.b16 %v1566, %v1556
  %v2137 = vpack.c.b16 %v1567, %v1557
  %v2138 = vpack.c.b16 %v1568, %v1558
  %v2139 = vpack.c.b16 %v1579, %v1569
  %v2140 = vpack.c.b16 %v1580, %v1570
  %v2141 = vpack.c.b16 %v1581, %v1571
  %v2142 = vpack.c.b16 %v1582, %v1572
  %v2143 = vpack.c.b16 %v1583, %v1573
  %v2144 = vpack.c.b16 %v1584, %v1574
  %v2145 = vpack.c.b16 %v1585, %v1575
  %v2146 = vpack.c.b16 %v1586, %v1576
  %v2147 = vpack.c.b16 %v1587, %v1577
  %v2148 = vpack.c.b16 %v1588, %v1578
  %v2149 = vpack.c.b16 %v1599, %v1589
  %v2150 = vpack.c.b16 %v1600, %v1590
  %v2151 = vpack.c.b16 %v1601, %v1591
  %v2152 = vpack.c.b16 %v1602, %v1592
  %v2153 = vpack.c.b16 %v1603, %v1593
  %v2154 = vpack.c.b16 %v1604, %v1594
  %v2155 = vpack.c.b16 %v1605, %v1595
  %v2156 = vpack.c.b16 %v1606, %v1596
  %v2157 = vpack.c.b16 %v1607, %v1597
  %v2158 = vpack.c.b16 %v1608, %v1598
  %v2159 = vpack.c.b16 %v1619, %v1609
  %v2160 = vpack.c.b16 %v1620, %v1610
  %v2161 = vpack.c.b16 %v1621, %v1611
  %v2162 = vpack.c.b16 %v1622, %v1612
  %v2163 = vpack.c.b16 %v1623, %v1613
  %v2164 = vpack.c.b16 %v1624, %v1614
  %v2165 = vpack.c.b16 %v1625, %v1615
  %v2166 = vpack.c.b16 %v1626, %v1616
  %v2167 = vpack.c.b16 %v1627, %v1617
  %v2168 = vpack.c.b16 %v1628, %v1618
  %v2169 = vpack.c.b16 %v1639, %v1629
  %v2170 = vpack.c.b16 %v1640, %v1630
  %v2171 = vpack.c.b16 %v1641, %v1631
  %v2172 = vpack.c.b16 %v1642, %v1632
  %v2173 = vpack.c.b16 %v1643, %v1633
  %v2174 = vpack.c.b16 %v1644, %v1634
  %v2175 = vpack.c.b16 %v1645, %v1635
  %v2176 = vpack.c.b16 %v1646, %v1636
  %v2177 = vpack.c.b16 %v1647, %v1637
  %v2178 = vpack.c.b16 %v1648, %v1638
  %v2179 = vpack.c.b16 %v1659, %v1649
  %v2180 = vpack.c.b16 %v1660, %v1650
  %v2181 = vpack.c.b16 %v1661, %v1651
  %v2182 = vpack.c.b16 %v1662, %v1652
  %v2183 = vpack.c.b16 %v1663, %v1653
  %v2184 = vpack.c.b16 %v1664, %v1654
  %v2185 = vpack.c.b16 %v1665, %v1655
  %v2186 = vpack.c.b16 %v1666, %v1656
  %v2187 = vpack.c.b16 %v1667, %v1657
  %v2188 = vpack.c.b16 %v1668, %v1658
  %v2189 = vpack.c.b16 %v1679, %v1669
  %v2190 = vpack.c.b16 %v1680, %v1670
  %v2191 = vpack.c.b16 %v1681, %v1671
  %v2192 = vpack.c.b16 %v1682, %v1672
  %v2193 = vpack.c.b16 %v1683, %v1673
  %v2194 = vpack.c.b16 %v1684, %v1674
  %v2195 = vpack.c.b16 %v1685, %v1675
  %v2196 = vpack.c.b16 %v1686, %v1676
  %v2197 = vpack.c.b16 %v1687, %v1677
  %v2198 = vpack.c.b16 %v1688, %v1678
  %v2199 = vpack.c.b16 %v1699, %v1689
  %v2200 = vpack.c.b16 %v1700, %v1690
  %v2201 = vpack.c.b16 %v1701, %v1691
  %v2202 = vpack.c.b16 %v1702, %v1692
  %v2203 = vpack.c.b16 %v1703, %v1693
  %v2204 = vpack.c.b16 %v1704, %v1694
  %v2205 = vpack.c.b16 %v1705, %v1695
  %v2206 = vpack.c.b16 %v1706, %v1696
  %v2207 = vpack.c.b16 %v1707, %v1697
  %v2208 = vpack.c.b16 %v1708, %v1698
  %v2209 = vpack.c.b16 %v1719, %v1709
  %v2210 = vpack.c.b16 %v1720, %v1710
  %v2211 = vpack.c.b16 %v1721, %v1711
  %v2212 = vpack.c.b16 %v1722, %v1712
  %v2213 = vpack.c.b16 %v1723, %v1713
  %v2214 = vpack.c.b16 %v1724, %v1714
  %v2215 = vpack.c.b16 %v1725, %v1715
  %v2216 = vpack.c.b16 %v1726, %v1716
  %v2217 = vpack.c.b16 %v1727, %v1717
  %v2218 = vpack.c.b16 %v1728, %v1718
  %v2219 = vpack.c.b16 %v1739, %v1729
  %v2220 = vpack.c.b16 %v1740, %v1730
  %v2221 = vpack.c.b16 %v1741, %v1731
  %v2222 = vpack.c.b16 %v1742, %v1732
  %v2223 = vpack.c.b16 %v1743, %v1733
  %v2224 = vpack.c.b16 %v1744, %v1734
  %v2225 = vpack.c.b16 %v1745, %v1735
  %v2226 = vpack.c.b16 %v1746, %v1736
  %v2227 = vpack.c.b16 %v1747, %v1737
  %v2228 = vpack.c.b16 %v1748, %v1738
  %v2229 = vpack.c.b16 %v1759, %v1749
  %v2230 = vpack.c.b16 %v1760, %v1750
  %v2231 = vpack.c.b16 %v1761, %v1751
  %v2232 = vpack.c.b16 %v1762, %v1752
  %v2233 = vpack.c.b16 %v1763, %v1753
  %v2234 = vpack.c.b16 %v1764, %v1754
  %v2235 = vpack.c.b16 %v1765, %v1755
  %v2236 = vpack.c.b16 %v1766, %v1756
  %v2237 = vpack.c.b16 %v1767, %v1757
  %v2238 = vpack.c.b16 %v1768, %v1758
  %v2239 = vpack.c.b16 %v1779, %v1769
  %v2240 = vpack.c.b16 %v1780, %v1770
  %v2241 = vpack.c.b16 %v1781, %v1771
  %v2242 = vpack.c.b16 %v1782, %v1772
  %v2243 = vpack.c.b16 %v1783, %v1773
  %v2244 = vpack.c.b16 %v1784, %v1774
  %v2245 = vpack.c.b16 %v1785, %v1775
  %v2246 = vpack.c.b16 %v1786, %v1776
  %v2247 = vpack.c.b16 %v1787, %v1777
  %v2248 = vpack.c.b16 %v1788, %v1778
  %v2249 = vpack.c.b16 %v1799, %v1789
  %v2250 = vpack.c.b16 %v1800, %v1790
  %v2251 = vpack.c.b16 %v1801, %v1791
  %v2252 = vpack.c.b16 %v1802, %v1792
  %v2253 = vpack.c.b16 %v1803, %v1793
  %v2254 = vpack.c.b16 %v1804, %v1794
  %v2255 = vpack.c.b16 %v1805, %v1795
  %v2256 = vpack.c.b16 %v1806, %v1796
  %v2257 = vpack.c.b16 %v1807, %v1797
  %v2258 = vpack.c.b16 %v1808, %v1798
  %v2259 = vpack.c.b16 %v1819, %v1809
  %v2260 = vpack.c.b16 %v1820, %v1810
  %v2261 = vpack.c.b16 %v1821, %v1811
  %v2262 = vpack.c.b16 %v1822, %v1812
  %v2263 = vpack.c.b16 %v1823, %v1813
  %v2264 = vpack.c.b16 %v1824, %v1814
  %v2265 = vpack.c.b16 %v1825, %v1815
  %v2266 = vpack.c.b16 %v1826, %v1816
  %v2267 = vpack.c.b16 %v1827, %v1817
  %v2268 = vpack.c.b16 %v1828, %v1818
  %v2269 = vpack.c.b16 %v1839, %v1829
  %v2270 = vpack.c.b16 %v1840, %v1830
  %v2271 = vpack.c.b16 %v1841, %v1831
  %v2272 = vpack.c.b16 %v1842, %v1832
  %v2273 = vpack.c.b16 %v1843, %v1833
  %v2274 = vpack.c.b16 %v1844, %v1834
  %v2275 = vpack.c.b16 %v1845, %v1835
  %v2276 = vpack.c.b16 %v1846, %v1836
  %v2277 = vpack.c.b16 %v1847, %v1837
  %v2278 = vpack.c.b16 %v1848, %v1838
  %v2279 = vpack.c.b16 %v1859, %v1849
  %v2280 = vpack.c.b16 %v1860, %v1850
  %v2281 = vpack.c.b16 %v1861, %v1851
  %v2282 = vpack.c.b16 %v1862, %v1852
  %v2283 = vpack.c.b16 %v1863, %v1853
  %v2284 = vpack.c.b16 %v1864, %v1854
  %v2285 = vpack.c.b16 %v1865, %v1855
  %v2286 = vpack.c.b16 %v1866, %v1856
  %v2287 = vpack.c.b16 %v1867, %v1857
  %v2288 = vpack.c.b16 %v1868, %v1858
  %v2289 = vpack.c.b16 %v1879, %v1869
  %v2290 = vpack.c.b16 %v1880, %v1870
  %v2291 = vpack.c.b16 %v1881, %v1871
  %v2292 = vpack.c.b16 %v1882, %v1872
  %v2293 = vpack.c.b16 %v1883, %v1873
  %v2294 = vpack.c.b16 %v1884, %v1874
  %v2295 = vpack.c.b16 %v1885, %v1875
  %v2296 = vpack.c.b16 %v1886, %v1876
  %v2297 = vpack.c.b16 %v1887, %v1877
  %v2298 = vpack.c.b16 %v1888, %v1878
  %v2299 = vpack.c.b16 %v1899, %v1889
  %v2300 = vpack.c.b16 %v1900, %v1890
  %v2301 = vpack.c.b16 %v1901, %v1891
  %v2302 = vpack.c.b16 %v1902, %v1892
  %v2303 = vpack.c.b16 %v1903, %v1893
  %v2304 = vpack.c.b16 %v1904, %v1894
  %v2305 = vpack.c.b16 %v1905, %v1895
  %v2306 = vpack.c.b16 %v1906, %v1896
  %v2307 = vpack.c.b16 %v1907, %v1897
  %v2308 = vpack.c.b16 %v1908, %v1898
  %v2309 = vpack.c.b16 %v1919, %v1909
  %v2310 = vpack.c.b16 %v1920, %v1910
  %v2311 = vpack.c.b16 %v1921, %v1911
  %v2312 = vpack.c.b16 %v1922, %v1912
  %v2313 = vpack.c.b16 %v1923, %v1913
  %v2314 = vpack.c.b16 %v1924, %v1914
  %v2315 = vpack.c.b16 %v1925, %v1915
  %v2316 = vpack.c.b16 %v1926, %v1916
  %v2317 = vpack.c.b16 %v1927, %v1917
  %v2318 = vpack.c.b16 %v1928, %v1918
  %v2319 = vpack.c.b16 %v1939, %v1929
  %v2320 = vpack.c.b16 %v1940, %v1930
  %v2321 = vpack.c.b16 %v1941, %v1931
  %v2322 = vpack.c.b16 %v1942, %v1932
  %v2323 = vpack.c.b16 %v1943, %v1933
  %v2324 = vpack.c.b16 %v1944, %v1934
  %v2325 = vpack.c.b16 %v1945, %v1935
  %v2326 = vpack.c.b16 %v1946, %v1936
  %v2327 = vpack.c.b16 %v1947, %v1937
  %v2328 = vpack.c.b16 %v1948, %v1938
  %v2329 = vpack.c.b16 %v1959, %v1949
  %v2330 = vpack.c.b16 %v1960, %v1950
  %v2331 = vpack.c.b16 %v1961, %v1951
  %v2332 = vpack.c.b16 %v1962, %v1952
  %v2333 = vpack.c.b16 %v1963, %v1953
  %v2334 = vpack.c.b16 %v1964, %v1954
  %v2335 = vpack.c.b16 %v1965, %v1955
  %v2336 = vpack.c.b16 %v1966, %v1956
  %v2337 = vpack.c.b16 %v1967, %v1957
  %v2338 = vpack.c.b16 %v1968, %v1958
  %v2339 = vpack.c.b16 %v1979, %v1969
  %v2340 = vpack.c.b16 %v1980, %v1970
  %v2341 = vpack.c.b16 %v1981, %v1971
  %v2342 = vpack.c.b16 %v1982, %v1972
  %v2343 = vpack.c.b16 %v1983, %v1973
  %v2344 = vpack.c.b16 %v1984, %v1974
  %v2345 = vpack.c.b16 %v1985, %v1975
  %v2346 = vpack.c.b16 %v1986, %v1976
  %v2347 = vpack.c.b16 %v1987, %v1977
  %v2348 = vpack.c.b16 %v1988, %v1978
  %v2349 = vpack.c.b16 %v1999, %v1989
  %v2350 = vpack.c.b16 %v2000, %v1990
  %v2351 = vpack.c.b16 %v2001, %v1991
  %v2352 = vpack.c.b16 %v2002, %v1992
  %v2353 = vpack.c.b16 %v2003, %v1993
  %v2354 = vpack.c.b16 %v2004, %v1994
  %v2355 = vpack.c.b16 %v2005, %v1995
  %v2356 = vpack.c.b16 %v2006, %v1996
  %v2357 = vpack.c.b16 %v2007, %v1997
  %v2358 = vpack.c.b16 %v2008, %v1998
  %v2359 = vpack.c.b16 %v2019, %v2009
  %v2360 = vpack.c.b16 %v2020, %v2010
  %v2361 = vpack.c.b16 %v2021, %v2011
  %v2362 = vpack.c.b16 %v2022, %v2012
  %v2363 = vpack.c.b16 %v2023, %v2013
  %v2364 = vpack.c.b16 %v2024, %v2014
  %v2365 = vpack.c.b16 %v2025, %v2015
  %v2366 = vpack.c.b16 %v2026, %v2016
  %v2367 = vpack.c.b16 %v2027, %v2017
  %v2368 = vpack.c.b16 %v2028, %v2018
  %v2369 = vpack.c.b16 %v2039, %v2029
  %v2370 = vpack.c.b16 %v2040, %v2030
  %v2371 = vpack.c.b16 %v2041, %v2031
  %v2372 = vpack.c.b16 %v2042, %v2032
  %v2373 = vpack.c.b16 %v2043, %v2033
  %v2374 = vpack.c.b16 %v2044, %v2034
  %v2375 = vpack.c.b16 %v2045, %v2035
  %v2376 = vpack.c.b16 %v2046, %v2036
  %v2377 = vpack.c.b16 %v2047, %v2037
  %v2378 = vpack.c.b16 %v2048, %v2038
  %v2379 = vpack.c.b16 %v2059, %v2049
  %v2380 = vpack.c.b16 %v2060, %v2050
  %v2381 = vpack.c.b16 %v2061, %v2051
  %v2382 = vpack.c.b16 %v2062, %v2052
  %v2383 = vpack.c.b16 %v2063, %v2053
  %v2384 = vpack.c.b16 %v2064, %v2054
  %v2385 = vpack.c.b16 %v2065, %v2055
  %v2386 = vpack.c.b16 %v2066, %v2056
  %v2387 = vpack.c.b16 %v2067, %v2057
  %v2388 = vpack.c.b16 %v2068, %v2058
  %2709 = vmatprep.subr.bf16.mxu0 0
  %2710 = vmatpush1.bf16.msra.mxu0 %v716
  %2711 = vmatprep.subr.bf16.mxu0 0
  %2712 = vmatpush1.bf16.msra.mxu0 %v715
  %2713 = vmatprep.subr.bf16.mxu0 0
  %2714 = vmatpush1.bf16.msra.mxu0 %v714
  %2715 = vmatprep.subr.bf16.mxu0 0
  %2716 = vmatpush1.bf16.msra.mxu0 %v713
  %2717 = vmatprep.subr.bf16.mxu0 0
  %2718 = vmatpush1.bf16.msra.mxu0 %v712
  %2719 = vmatprep.subr.bf16.mxu0 0
  %2720 = vmatpush1.bf16.msra.mxu0 %v711
  %2721 = vmatprep.subr.bf16.mxu0 0
  %2722 = vmatpush1.bf16.msra.mxu0 %v710
  %2723 = vmatprep.subr.bf16.mxu0 0
  %2724 = vmatpush1.bf16.msra.mxu0 %v709
  %2725 = vmatprep.subr.bf16.mxu0 0
  %2726 = vmatpush2.bf16.msra.mxu0 %v724
  %2727 = vmatprep.subr.bf16.mxu0 0
  %2728 = vmatpush2.bf16.msra.mxu0 %v723
  %2729 = vmatprep.subr.bf16.mxu0 0
  %2730 = vmatpush2.bf16.msra.mxu0 %v722
  %2731 = vmatprep.subr.bf16.mxu0 0
  %2732 = vmatpush2.bf16.msra.mxu0 %v721
  %2733 = vmatprep.subr.bf16.mxu0 0
  %2734 = vmatpush2.bf16.msra.mxu0 %v720
  %2735 = vmatprep.subr.bf16.mxu0 0
  %2736 = vmatpush2.bf16.msra.mxu0 %v719
  %2737 = vmatprep.subr.bf16.mxu0 0
  %2738 = vmatpush2.bf16.msra.mxu0 %v718
  %2739 = vmatprep.subr.bf16.mxu0 0
  %2740 = vmatpush2.bf16.msra.mxu0 %v717
  %2741 = vmatprep.mubr.bf16.mxu0 %v2070
  %2742 = vmatmul.mubr.bf16.gmra.mxu0 %v2069
  %v2743 = vpop.f32.mrf.mxu0
  %v2744 = vadd.f32 0.0, %v2743
  %v2745 = vpop.f32.mrf.mxu0
  %v2746 = vpop.f32.mrf.mxu0
  %v2747 = vadd.f32 0.0, %v2746
  %v2748 = vpop.f32.mrf.mxu0
  %2749 = vmatprep.mubr.bf16.mxu0 %v2080
  %2750 = vmatmul.mubr.bf16.gmra.mxu0 %v2079
  %v2751 = vpop.f32.mrf.mxu0
  %v2752 = vadd.f32 0.0, %v2751
  %v2753 = vpop.f32.mrf.mxu0
  %v2754 = vpop.f32.mrf.mxu0
  %v2755 = vadd.f32 0.0, %v2754
  %v2756 = vpop.f32.mrf.mxu0
  %2757 = vmatprep.mubr.bf16.mxu0 %v2090
  %2758 = vmatmul.mubr.bf16.gmra.mxu0 %v2089
  %v2759 = vpop.f32.mrf.mxu0
  %v2760 = vadd.f32 0.0, %v2759
  %v2761 = vpop.f32.mrf.mxu0
  %v2762 = vpop.f32.mrf.mxu0
  %v2763 = vadd.f32 0.0, %v2762
  %v2764 = vpop.f32.mrf.mxu0
  %2765 = vmatprep.mubr.bf16.mxu0 %v2100
  %2766 = vmatmul.mubr.bf16.gmra.mxu0 %v2099
  %v2767 = vpop.f32.mrf.mxu0
  %v2768 = vadd.f32 0.0, %v2767
  %v2769 = vpop.f32.mrf.mxu0
  %v2770 = vpop.f32.mrf.mxu0
  %v2771 = vadd.f32 0.0, %v2770
  %v2772 = vpop.f32.mrf.mxu0
  %2773 = vmatprep.mubr.bf16.mxu0 %v2110
  %2774 = vmatmul.mubr.bf16.gmra.mxu0 %v2109
  %v2775 = vpop.f32.mrf.mxu0
  %v2776 = vadd.f32 0.0, %v2775
  %v2777 = vpop.f32.mrf.mxu0
  %v2778 = vpop.f32.mrf.mxu0
  %v2779 = vadd.f32 0.0, %v2778
  %v2780 = vpop.f32.mrf.mxu0
  %2781 = vmatprep.mubr.bf16.mxu0 %v2120
  %2782 = vmatmul.mubr.bf16.gmra.mxu0 %v2119
  %v2783 = vpop.f32.mrf.mxu0
  %v2784 = vadd.f32 0.0, %v2783
  %v2785 = vpop.f32.mrf.mxu0
  %v2786 = vpop.f32.mrf.mxu0
  %v2787 = vadd.f32 0.0, %v2786
  %v2788 = vpop.f32.mrf.mxu0
  %2789 = vmatprep.mubr.bf16.mxu0 %v2130
  %2790 = vmatmul.mubr.bf16.gmra.mxu0 %v2129
  %v2791 = vpop.f32.mrf.mxu0
  %v2792 = vadd.f32 0.0, %v2791
  %v2793 = vpop.f32.mrf.mxu0
  %v2794 = vpop.f32.mrf.mxu0
  %v2795 = vadd.f32 0.0, %v2794
  %v2796 = vpop.f32.mrf.mxu0
  %2797 = vmatprep.mubr.bf16.mxu0 %v2140
  %2798 = vmatmul.mubr.bf16.gmra.mxu0 %v2139
  %v2799 = vpop.f32.mrf.mxu0
  %v2800 = vadd.f32 0.0, %v2799
  %v2801 = vpop.f32.mrf.mxu0
  %v2802 = vpop.f32.mrf.mxu0
  %v2803 = vadd.f32 0.0, %v2802
  %v2804 = vpop.f32.mrf.mxu0
  %2805 = vmatprep.mubr.bf16.mxu0 %v2150
  %2806 = vmatmul.mubr.bf16.gmra.mxu0 %v2149
  %v2807 = vpop.f32.mrf.mxu0
  %v2808 = vadd.f32 0.0, %v2807
  %v2809 = vpop.f32.mrf.mxu0
  %v2810 = vpop.f32.mrf.mxu0
  %v2811 = vadd.f32 0.0, %v2810
  %v2812 = vpop.f32.mrf.mxu0
  %2813 = vmatprep.mubr.bf16.mxu0 %v2160
  %2814 = vmatmul.mubr.bf16.gmra.mxu0 %v2159
  %v2815 = vpop.f32.mrf.mxu0
  %v2816 = vadd.f32 0.0, %v2815
  %v2817 = vpop.f32.mrf.mxu0
  %v2818 = vpop.f32.mrf.mxu0
  %v2819 = vadd.f32 0.0, %v2818
  %v2820 = vpop.f32.mrf.mxu0
  %2821 = vmatprep.mubr.bf16.mxu0 %v2170
  %2822 = vmatmul.mubr.bf16.gmra.mxu0 %v2169
  %v2823 = vpop.f32.mrf.mxu0
  %v2824 = vadd.f32 0.0, %v2823
  %v2825 = vpop.f32.mrf.mxu0
  %v2826 = vpop.f32.mrf.mxu0
  %v2827 = vadd.f32 0.0, %v2826
  %v2828 = vpop.f32.mrf.mxu0
  %2829 = vmatprep.mubr.bf16.mxu0 %v2180
  %2830 = vmatmul.mubr.bf16.gmra.mxu0 %v2179
  %v2831 = vpop.f32.mrf.mxu0
  %v2832 = vadd.f32 0.0, %v2831
  %v2833 = vpop.f32.mrf.mxu0
  %v2834 = vpop.f32.mrf.mxu0
  %v2835 = vadd.f32 0.0, %v2834
  %v2836 = vpop.f32.mrf.mxu0
  %2837 = vmatprep.mubr.bf16.mxu0 %v2190
  %2838 = vmatmul.mubr.bf16.gmra.mxu0 %v2189
  %v2839 = vpop.f32.mrf.mxu0
  %v2840 = vadd.f32 0.0, %v2839
  %v2841 = vpop.f32.mrf.mxu0
  %v2842 = vpop.f32.mrf.mxu0
  %v2843 = vadd.f32 0.0, %v2842
  %v2844 = vpop.f32.mrf.mxu0
  %2845 = vmatprep.mubr.bf16.mxu0 %v2200
  %2846 = vmatmul.mubr.bf16.gmra.mxu0 %v2199
  %v2847 = vpop.f32.mrf.mxu0
  %v2848 = vadd.f32 0.0, %v2847
  %v2849 = vpop.f32.mrf.mxu0
  %v2850 = vpop.f32.mrf.mxu0
  %v2851 = vadd.f32 0.0, %v2850
  %v2852 = vpop.f32.mrf.mxu0
  %2853 = vmatprep.mubr.bf16.mxu0 %v2210
  %2854 = vmatmul.mubr.bf16.gmra.mxu0 %v2209
  %v2855 = vpop.f32.mrf.mxu0
  %v2856 = vadd.f32 0.0, %v2855
  %v2857 = vpop.f32.mrf.mxu0
  %v2858 = vpop.f32.mrf.mxu0
  %v2859 = vadd.f32 0.0, %v2858
  %v2860 = vpop.f32.mrf.mxu0
  %2861 = vmatprep.mubr.bf16.mxu0 %v2220
  %2862 = vmatmul.mubr.bf16.gmra.mxu0 %v2219
  %v2863 = vpop.f32.mrf.mxu0
  %v2864 = vadd.f32 0.0, %v2863
  %v2865 = vpop.f32.mrf.mxu0
  %v2866 = vpop.f32.mrf.mxu0
  %v2867 = vadd.f32 0.0, %v2866
  %v2868 = vpop.f32.mrf.mxu0
  %2869 = vmatprep.mubr.bf16.mxu0 %v2230
  %2870 = vmatmul.mubr.bf16.gmra.mxu0 %v2229
  %v2871 = vpop.f32.mrf.mxu0
  %v2872 = vadd.f32 0.0, %v2871
  %v2873 = vpop.f32.mrf.mxu0
  %v2874 = vpop.f32.mrf.mxu0
  %v2875 = vadd.f32 0.0, %v2874
  %v2876 = vpop.f32.mrf.mxu0
  %2877 = vmatprep.mubr.bf16.mxu0 %v2240
  %2878 = vmatmul.mubr.bf16.gmra.mxu0 %v2239
  %v2879 = vpop.f32.mrf.mxu0
  %v2880 = vadd.f32 0.0, %v2879
  %v2881 = vpop.f32.mrf.mxu0
  %v2882 = vpop.f32.mrf.mxu0
  %v2883 = vadd.f32 0.0, %v2882
  %v2884 = vpop.f32.mrf.mxu0
  %2885 = vmatprep.mubr.bf16.mxu0 %v2250
  %2886 = vmatmul.mubr.bf16.gmra.mxu0 %v2249
  %v2887 = vpop.f32.mrf.mxu0
  %v2888 = vadd.f32 0.0, %v2887
  %v2889 = vpop.f32.mrf.mxu0
  %v2890 = vpop.f32.mrf.mxu0
  %v2891 = vadd.f32 0.0, %v2890
  %v2892 = vpop.f32.mrf.mxu0
  %2893 = vmatprep.mubr.bf16.mxu0 %v2260
  %2894 = vmatmul.mubr.bf16.gmra.mxu0 %v2259
  %v2895 = vpop.f32.mrf.mxu0
  %v2896 = vadd.f32 0.0, %v2895
  %v2897 = vpop.f32.mrf.mxu0
  %v2898 = vpop.f32.mrf.mxu0
  %v2899 = vadd.f32 0.0, %v2898
  %v2900 = vpop.f32.mrf.mxu0
  %2901 = vmatprep.mubr.bf16.mxu0 %v2270
  %2902 = vmatmul.mubr.bf16.gmra.mxu0 %v2269
  %v2903 = vpop.f32.mrf.mxu0
  %v2904 = vadd.f32 0.0, %v2903
  %v2905 = vpop.f32.mrf.mxu0
  %v2906 = vpop.f32.mrf.mxu0
  %v2907 = vadd.f32 0.0, %v2906
  %v2908 = vpop.f32.mrf.mxu0
  %2909 = vmatprep.mubr.bf16.mxu0 %v2280
  %2910 = vmatmul.mubr.bf16.gmra.mxu0 %v2279
  %v2911 = vpop.f32.mrf.mxu0
  %v2912 = vadd.f32 0.0, %v2911
  %v2913 = vpop.f32.mrf.mxu0
  %v2914 = vpop.f32.mrf.mxu0
  %v2915 = vadd.f32 0.0, %v2914
  %v2916 = vpop.f32.mrf.mxu0
  %2917 = vmatprep.mubr.bf16.mxu0 %v2290
  %2918 = vmatmul.mubr.bf16.gmra.mxu0 %v2289
  %v2919 = vpop.f32.mrf.mxu0
  %v2920 = vadd.f32 0.0, %v2919
  %v2921 = vpop.f32.mrf.mxu0
  %v2922 = vpop.f32.mrf.mxu0
  %v2923 = vadd.f32 0.0, %v2922
  %v2924 = vpop.f32.mrf.mxu0
  %2925 = vmatprep.mubr.bf16.mxu0 %v2300
  %2926 = vmatmul.mubr.bf16.gmra.mxu0 %v2299
  %v2927 = vpop.f32.mrf.mxu0
  %v2928 = vadd.f32 0.0, %v2927
  %v2929 = vpop.f32.mrf.mxu0
  %v2930 = vpop.f32.mrf.mxu0
  %v2931 = vadd.f32 0.0, %v2930
  %v2932 = vpop.f32.mrf.mxu0
  %2933 = vmatprep.mubr.bf16.mxu0 %v2310
  %2934 = vmatmul.mubr.bf16.gmra.mxu0 %v2309
  %v2935 = vpop.f32.mrf.mxu0
  %v2936 = vadd.f32 0.0, %v2935
  %v2937 = vpop.f32.mrf.mxu0
  %v2938 = vpop.f32.mrf.mxu0
  %v2939 = vadd.f32 0.0, %v2938
  %v2940 = vpop.f32.mrf.mxu0
  %2941 = vmatprep.mubr.bf16.mxu0 %v2320
  %2942 = vmatmul.mubr.bf16.gmra.mxu0 %v2319
  %v2943 = vpop.f32.mrf.mxu0
  %v2944 = vadd.f32 0.0, %v2943
  %v2945 = vpop.f32.mrf.mxu0
  %v2946 = vpop.f32.mrf.mxu0
  %v2947 = vadd.f32 0.0, %v2946
  %v2948 = vpop.f32.mrf.mxu0
  %2949 = vmatprep.mubr.bf16.mxu0 %v2330
  %2950 = vmatmul.mubr.bf16.gmra.mxu0 %v2329
  %v2951 = vpop.f32.mrf.mxu0
  %v2952 = vadd.f32 0.0, %v2951
  %v2953 = vpop.f32.mrf.mxu0
  %v2954 = vpop.f32.mrf.mxu0
  %v2955 = vadd.f32 0.0, %v2954
  %v2956 = vpop.f32.mrf.mxu0
  %2957 = vmatprep.mubr.bf16.mxu0 %v2340
  %2958 = vmatmul.mubr.bf16.gmra.mxu0 %v2339
  %v2959 = vpop.f32.mrf.mxu0
  %v2960 = vadd.f32 0.0, %v2959
  %v2961 = vpop.f32.mrf.mxu0
  %v2962 = vpop.f32.mrf.mxu0
  %v2963 = vadd.f32 0.0, %v2962
  %v2964 = vpop.f32.mrf.mxu0
  %2965 = vmatprep.mubr.bf16.mxu0 %v2350
  %2966 = vmatmul.mubr.bf16.gmra.mxu0 %v2349
  %v2967 = vpop.f32.mrf.mxu0
  %v2968 = vadd.f32 0.0, %v2967
  %v2969 = vpop.f32.mrf.mxu0
  %v2970 = vpop.f32.mrf.mxu0
  %v2971 = vadd.f32 0.0, %v2970
  %v2972 = vpop.f32.mrf.mxu0
  %2973 = vmatprep.mubr.bf16.mxu0 %v2360
  %2974 = vmatmul.mubr.bf16.gmra.mxu0 %v2359
  %v2975 = vpop.f32.mrf.mxu0
  %v2976 = vadd.f32 0.0, %v2975
  %v2977 = vpop.f32.mrf.mxu0
  %v2978 = vpop.f32.mrf.mxu0
  %v2979 = vadd.f32 0.0, %v2978
  %v2980 = vpop.f32.mrf.mxu0
  %2981 = vmatprep.mubr.bf16.mxu0 %v2370
  %2982 = vmatmul.mubr.bf16.gmra.mxu0 %v2369
  %v2983 = vpop.f32.mrf.mxu0
  %v2984 = vadd.f32 0.0, %v2983
  %v2985 = vpop.f32.mrf.mxu0
  %v2986 = vpop.f32.mrf.mxu0
  %v2987 = vadd.f32 0.0, %v2986
  %v2988 = vpop.f32.mrf.mxu0
  %2989 = vmatprep.mubr.bf16.mxu0 %v2380
  %2990 = vmatmul.mubr.bf16.gmra.mxu0 %v2379
  %v2991 = vpop.f32.mrf.mxu0
  %v2992 = vadd.f32 0.0, %v2991
  %v2993 = vpop.f32.mrf.mxu0
  %v2994 = vpop.f32.mrf.mxu0
  %v2995 = vadd.f32 0.0, %v2994
  %v2996 = vpop.f32.mrf.mxu0
  %2997 = vdwg.mxu0
  %2998 = vmatprep.subr.bf16.mxu0 0
  %2999 = vmatpush1.bf16.msra.mxu0 %v732
  %3000 = vmatprep.subr.bf16.mxu0 0
  %3001 = vmatpush1.bf16.msra.mxu0 %v731
  %3002 = vmatprep.subr.bf16.mxu0 0
  %3003 = vmatpush1.bf16.msra.mxu0 %v730
  %3004 = vmatprep.subr.bf16.mxu0 0
  %3005 = vmatpush1.bf16.msra.mxu0 %v729
  %3006 = vmatprep.subr.bf16.mxu0 0
  %3007 = vmatpush1.bf16.msra.mxu0 %v728
  %3008 = vmatprep.subr.bf16.mxu0 0
  %3009 = vmatpush1.bf16.msra.mxu0 %v727
  %3010 = vmatprep.subr.bf16.mxu0 0
  %3011 = vmatpush1.bf16.msra.mxu0 %v726
  %3012 = vmatprep.subr.bf16.mxu0 0
  %3013 = vmatpush1.bf16.msra.mxu0 %v725
  %3014 = vmatprep.subr.bf16.mxu0 0
  %3015 = vmatpush2.bf16.msra.mxu0 %v740
  %3016 = vmatprep.subr.bf16.mxu0 0
  %3017 = vmatpush2.bf16.msra.mxu0 %v739
  %3018 = vmatprep.subr.bf16.mxu0 0
  %3019 = vmatpush2.bf16.msra.mxu0 %v738
  %3020 = vmatprep.subr.bf16.mxu0 0
  %3021 = vmatpush2.bf16.msra.mxu0 %v737
  %3022 = vmatprep.subr.bf16.mxu0 0
  %3023 = vmatpush2.bf16.msra.mxu0 %v736
  %3024 = vmatprep.subr.bf16.mxu0 0
  %3025 = vmatpush2.bf16.msra.mxu0 %v735
  %3026 = vmatprep.subr.bf16.mxu0 0
  %3027 = vmatpush2.bf16.msra.mxu0 %v734
  %3028 = vmatprep.subr.bf16.mxu0 0
  %3029 = vmatpush2.bf16.msra.mxu0 %v733
  %3030 = vmatprep.mubr.bf16.mxu0 %v2072
  %3031 = vmatmul.mubr.bf16.gmra.mxu0 %v2071
  %v3032 = vpop.f32.mrf.mxu0
  %v3033 = vadd.f32 %v2744, %v3032
  %v3034 = vpop.f32.mrf.mxu0
  %v3035 = vpop.f32.mrf.mxu0
  %v3036 = vadd.f32 %v2747, %v3035
  %v3037 = vpop.f32.mrf.mxu0
  %3038 = vmatprep.mubr.bf16.mxu0 %v2082
  %3039 = vmatmul.mubr.bf16.gmra.mxu0 %v2081
  %v3040 = vpop.f32.mrf.mxu0
  %v3041 = vadd.f32 %v2752, %v3040
  %v3042 = vpop.f32.mrf.mxu0
  %v3043 = vpop.f32.mrf.mxu0
  %v3044 = vadd.f32 %v2755, %v3043
  %v3045 = vpop.f32.mrf.mxu0
  %3046 = vmatprep.mubr.bf16.mxu0 %v2092
  %3047 = vmatmul.mubr.bf16.gmra.mxu0 %v2091
  %v3048 = vpop.f32.mrf.mxu0
  %v3049 = vadd.f32 %v2760, %v3048
  %v3050 = vpop.f32.mrf.mxu0
  %v3051 = vpop.f32.mrf.mxu0
  %v3052 = vadd.f32 %v2763, %v3051
  %v3053 = vpop.f32.mrf.mxu0
  %3054 = vmatprep.mubr.bf16.mxu0 %v2102
  %3055 = vmatmul.mubr.bf16.gmra.mxu0 %v2101
  %v3056 = vpop.f32.mrf.mxu0
  %v3057 = vadd.f32 %v2768, %v3056
  %v3058 = vpop.f32.mrf.mxu0
  %v3059 = vpop.f32.mrf.mxu0
  %v3060 = vadd.f32 %v2771, %v3059
  %v3061 = vpop.f32.mrf.mxu0
  %3062 = vmatprep.mubr.bf16.mxu0 %v2112
  %3063 = vmatmul.mubr.bf16.gmra.mxu0 %v2111
  %v3064 = vpop.f32.mrf.mxu0
  %v3065 = vadd.f32 %v2776, %v3064
  %v3066 = vpop.f32.mrf.mxu0
  %v3067 = vpop.f32.mrf.mxu0
  %v3068 = vadd.f32 %v2779, %v3067
  %v3069 = vpop.f32.mrf.mxu0
  %3070 = vmatprep.mubr.bf16.mxu0 %v2122
  %3071 = vmatmul.mubr.bf16.gmra.mxu0 %v2121
  %v3072 = vpop.f32.mrf.mxu0
  %v3073 = vadd.f32 %v2784, %v3072
  %v3074 = vpop.f32.mrf.mxu0
  %v3075 = vpop.f32.mrf.mxu0
  %v3076 = vadd.f32 %v2787, %v3075
  %v3077 = vpop.f32.mrf.mxu0
  %3078 = vmatprep.mubr.bf16.mxu0 %v2132
  %3079 = vmatmul.mubr.bf16.gmra.mxu0 %v2131
  %v3080 = vpop.f32.mrf.mxu0
  %v3081 = vadd.f32 %v2792, %v3080
  %v3082 = vpop.f32.mrf.mxu0
  %v3083 = vpop.f32.mrf.mxu0
  %v3084 = vadd.f32 %v2795, %v3083
  %v3085 = vpop.f32.mrf.mxu0
  %3086 = vmatprep.mubr.bf16.mxu0 %v2142
  %3087 = vmatmul.mubr.bf16.gmra.mxu0 %v2141
  %v3088 = vpop.f32.mrf.mxu0
  %v3089 = vadd.f32 %v2800, %v3088
  %v3090 = vpop.f32.mrf.mxu0
  %v3091 = vpop.f32.mrf.mxu0
  %v3092 = vadd.f32 %v2803, %v3091
  %v3093 = vpop.f32.mrf.mxu0
  %3094 = vmatprep.mubr.bf16.mxu0 %v2152
  %3095 = vmatmul.mubr.bf16.gmra.mxu0 %v2151
  %v3096 = vpop.f32.mrf.mxu0
  %v3097 = vadd.f32 %v2808, %v3096
  %v3098 = vpop.f32.mrf.mxu0
  %v3099 = vpop.f32.mrf.mxu0
  %v3100 = vadd.f32 %v2811, %v3099
  %v3101 = vpop.f32.mrf.mxu0
  %3102 = vmatprep.mubr.bf16.mxu0 %v2162
  %3103 = vmatmul.mubr.bf16.gmra.mxu0 %v2161
  %v3104 = vpop.f32.mrf.mxu0
  %v3105 = vadd.f32 %v2816, %v3104
  %v3106 = vpop.f32.mrf.mxu0
  %v3107 = vpop.f32.mrf.mxu0
  %v3108 = vadd.f32 %v2819, %v3107
  %v3109 = vpop.f32.mrf.mxu0
  %3110 = vmatprep.mubr.bf16.mxu0 %v2172
  %3111 = vmatmul.mubr.bf16.gmra.mxu0 %v2171
  %v3112 = vpop.f32.mrf.mxu0
  %v3113 = vadd.f32 %v2824, %v3112
  %v3114 = vpop.f32.mrf.mxu0
  %v3115 = vpop.f32.mrf.mxu0
  %v3116 = vadd.f32 %v2827, %v3115
  %v3117 = vpop.f32.mrf.mxu0
  %3118 = vmatprep.mubr.bf16.mxu0 %v2182
  %3119 = vmatmul.mubr.bf16.gmra.mxu0 %v2181
  %v3120 = vpop.f32.mrf.mxu0
  %v3121 = vadd.f32 %v2832, %v3120
  %v3122 = vpop.f32.mrf.mxu0
  %v3123 = vpop.f32.mrf.mxu0
  %v3124 = vadd.f32 %v2835, %v3123
  %v3125 = vpop.f32.mrf.mxu0
  %3126 = vmatprep.mubr.bf16.mxu0 %v2192
  %3127 = vmatmul.mubr.bf16.gmra.mxu0 %v2191
  %v3128 = vpop.f32.mrf.mxu0
  %v3129 = vadd.f32 %v2840, %v3128
  %v3130 = vpop.f32.mrf.mxu0
  %v3131 = vpop.f32.mrf.mxu0
  %v3132 = vadd.f32 %v2843, %v3131
  %v3133 = vpop.f32.mrf.mxu0
  %3134 = vmatprep.mubr.bf16.mxu0 %v2202
  %3135 = vmatmul.mubr.bf16.gmra.mxu0 %v2201
  %v3136 = vpop.f32.mrf.mxu0
  %v3137 = vadd.f32 %v2848, %v3136
  %v3138 = vpop.f32.mrf.mxu0
  %v3139 = vpop.f32.mrf.mxu0
  %v3140 = vadd.f32 %v2851, %v3139
  %v3141 = vpop.f32.mrf.mxu0
  %3142 = vmatprep.mubr.bf16.mxu0 %v2212
  %3143 = vmatmul.mubr.bf16.gmra.mxu0 %v2211
  %v3144 = vpop.f32.mrf.mxu0
  %v3145 = vadd.f32 %v2856, %v3144
  %v3146 = vpop.f32.mrf.mxu0
  %v3147 = vpop.f32.mrf.mxu0
  %v3148 = vadd.f32 %v2859, %v3147
  %v3149 = vpop.f32.mrf.mxu0
  %3150 = vmatprep.mubr.bf16.mxu0 %v2222
  %3151 = vmatmul.mubr.bf16.gmra.mxu0 %v2221
  %v3152 = vpop.f32.mrf.mxu0
  %v3153 = vadd.f32 %v2864, %v3152
  %v3154 = vpop.f32.mrf.mxu0
  %v3155 = vpop.f32.mrf.mxu0
  %v3156 = vadd.f32 %v2867, %v3155
  %v3157 = vpop.f32.mrf.mxu0
  %3158 = vmatprep.mubr.bf16.mxu0 %v2232
  %3159 = vmatmul.mubr.bf16.gmra.mxu0 %v2231
  %v3160 = vpop.f32.mrf.mxu0
  %v3161 = vadd.f32 %v2872, %v3160
  %v3162 = vpop.f32.mrf.mxu0
  %v3163 = vpop.f32.mrf.mxu0
  %v3164 = vadd.f32 %v2875, %v3163
  %v3165 = vpop.f32.mrf.mxu0
  %3166 = vmatprep.mubr.bf16.mxu0 %v2242
  %3167 = vmatmul.mubr.bf16.gmra.mxu0 %v2241
  %v3168 = vpop.f32.mrf.mxu0
  %v3169 = vadd.f32 %v2880, %v3168
  %v3170 = vpop.f32.mrf.mxu0
  %v3171 = vpop.f32.mrf.mxu0
  %v3172 = vadd.f32 %v2883, %v3171
  %v3173 = vpop.f32.mrf.mxu0
  %3174 = vmatprep.mubr.bf16.mxu0 %v2252
  %3175 = vmatmul.mubr.bf16.gmra.mxu0 %v2251
  %v3176 = vpop.f32.mrf.mxu0
  %v3177 = vadd.f32 %v2888, %v3176
  %v3178 = vpop.f32.mrf.mxu0
  %v3179 = vpop.f32.mrf.mxu0
  %v3180 = vadd.f32 %v2891, %v3179
  %v3181 = vpop.f32.mrf.mxu0
  %3182 = vmatprep.mubr.bf16.mxu0 %v2262
  %3183 = vmatmul.mubr.bf16.gmra.mxu0 %v2261
  %v3184 = vpop.f32.mrf.mxu0
  %v3185 = vadd.f32 %v2896, %v3184
  %v3186 = vpop.f32.mrf.mxu0
  %v3187 = vpop.f32.mrf.mxu0
  %v3188 = vadd.f32 %v2899, %v3187
  %v3189 = vpop.f32.mrf.mxu0
  %3190 = vmatprep.mubr.bf16.mxu0 %v2272
  %3191 = vmatmul.mubr.bf16.gmra.mxu0 %v2271
  %v3192 = vpop.f32.mrf.mxu0
  %v3193 = vadd.f32 %v2904, %v3192
  %v3194 = vpop.f32.mrf.mxu0
  %v3195 = vpop.f32.mrf.mxu0
  %v3196 = vadd.f32 %v2907, %v3195
  %v3197 = vpop.f32.mrf.mxu0
  %3198 = vmatprep.mubr.bf16.mxu0 %v2282
  %3199 = vmatmul.mubr.bf16.gmra.mxu0 %v2281
  %v3200 = vpop.f32.mrf.mxu0
  %v3201 = vadd.f32 %v2912, %v3200
  %v3202 = vpop.f32.mrf.mxu0
  %v3203 = vpop.f32.mrf.mxu0
  %v3204 = vadd.f32 %v2915, %v3203
  %v3205 = vpop.f32.mrf.mxu0
  %3206 = vmatprep.mubr.bf16.mxu0 %v2292
  %3207 = vmatmul.mubr.bf16.gmra.mxu0 %v2291
  %v3208 = vpop.f32.mrf.mxu0
  %v3209 = vadd.f32 %v2920, %v3208
  %v3210 = vpop.f32.mrf.mxu0
  %v3211 = vpop.f32.mrf.mxu0
  %v3212 = vadd.f32 %v2923, %v3211
  %v3213 = vpop.f32.mrf.mxu0
  %3214 = vmatprep.mubr.bf16.mxu0 %v2302
  %3215 = vmatmul.mubr.bf16.gmra.mxu0 %v2301
  %v3216 = vpop.f32.mrf.mxu0
  %v3217 = vadd.f32 %v2928, %v3216
  %v3218 = vpop.f32.mrf.mxu0
  %v3219 = vpop.f32.mrf.mxu0
  %v3220 = vadd.f32 %v2931, %v3219
  %v3221 = vpop.f32.mrf.mxu0
  %3222 = vmatprep.mubr.bf16.mxu0 %v2312
  %3223 = vmatmul.mubr.bf16.gmra.mxu0 %v2311
  %v3224 = vpop.f32.mrf.mxu0
  %v3225 = vadd.f32 %v2936, %v3224
  %v3226 = vpop.f32.mrf.mxu0
  %v3227 = vpop.f32.mrf.mxu0
  %v3228 = vadd.f32 %v2939, %v3227
  %v3229 = vpop.f32.mrf.mxu0
  %3230 = vmatprep.mubr.bf16.mxu0 %v2322
  %3231 = vmatmul.mubr.bf16.gmra.mxu0 %v2321
  %v3232 = vpop.f32.mrf.mxu0
  %v3233 = vadd.f32 %v2944, %v3232
  %v3234 = vpop.f32.mrf.mxu0
  %v3235 = vpop.f32.mrf.mxu0
  %v3236 = vadd.f32 %v2947, %v3235
  %v3237 = vpop.f32.mrf.mxu0
  %3238 = vmatprep.mubr.bf16.mxu0 %v2332
  %3239 = vmatmul.mubr.bf16.gmra.mxu0 %v2331
  %v3240 = vpop.f32.mrf.mxu0
  %v3241 = vadd.f32 %v2952, %v3240
  %v3242 = vpop.f32.mrf.mxu0
  %v3243 = vpop.f32.mrf.mxu0
  %v3244 = vadd.f32 %v2955, %v3243
  %v3245 = vpop.f32.mrf.mxu0
  %3246 = vmatprep.mubr.bf16.mxu0 %v2342
  %3247 = vmatmul.mubr.bf16.gmra.mxu0 %v2341
  %v3248 = vpop.f32.mrf.mxu0
  %v3249 = vadd.f32 %v2960, %v3248
  %v3250 = vpop.f32.mrf.mxu0
  %v3251 = vpop.f32.mrf.mxu0
  %v3252 = vadd.f32 %v2963, %v3251
  %v3253 = vpop.f32.mrf.mxu0
  %3254 = vmatprep.mubr.bf16.mxu0 %v2352
  %3255 = vmatmul.mubr.bf16.gmra.mxu0 %v2351
  %v3256 = vpop.f32.mrf.mxu0
  %v3257 = vadd.f32 %v2968, %v3256
  %v3258 = vpop.f32.mrf.mxu0
  %v3259 = vpop.f32.mrf.mxu0
  %v3260 = vadd.f32 %v2971, %v3259
  %v3261 = vpop.f32.mrf.mxu0
  %3262 = vmatprep.mubr.bf16.mxu0 %v2362
  %3263 = vmatmul.mubr.bf16.gmra.mxu0 %v2361
  %v3264 = vpop.f32.mrf.mxu0
  %v3265 = vadd.f32 %v2976, %v3264
  %v3266 = vpop.f32.mrf.mxu0
  %v3267 = vpop.f32.mrf.mxu0
  %v3268 = vadd.f32 %v2979, %v3267
  %v3269 = vpop.f32.mrf.mxu0
  %3270 = vmatprep.mubr.bf16.mxu0 %v2372
  %3271 = vmatmul.mubr.bf16.gmra.mxu0 %v2371
  %v3272 = vpop.f32.mrf.mxu0
  %v3273 = vadd.f32 %v2984, %v3272
  %v3274 = vpop.f32.mrf.mxu0
  %v3275 = vpop.f32.mrf.mxu0
  %v3276 = vadd.f32 %v2987, %v3275
  %v3277 = vpop.f32.mrf.mxu0
  %3278 = vmatprep.mubr.bf16.mxu0 %v2382
  %3279 = vmatmul.mubr.bf16.gmra.mxu0 %v2381
  %v3280 = vpop.f32.mrf.mxu0
  %v3281 = vadd.f32 %v2992, %v3280
  %v3282 = vpop.f32.mrf.mxu0
  %v3283 = vpop.f32.mrf.mxu0
  %v3284 = vadd.f32 %v2995, %v3283
  %v3285 = vpop.f32.mrf.mxu0
  %3286 = vdwg.mxu0
  %3287 = vmatprep.subr.bf16.mxu0 0
  %3288 = vmatpush1.bf16.msra.mxu0 %v748
  %3289 = vmatprep.subr.bf16.mxu0 0
  %3290 = vmatpush1.bf16.msra.mxu0 %v747
  %3291 = vmatprep.subr.bf16.mxu0 0
  %3292 = vmatpush1.bf16.msra.mxu0 %v746
  %3293 = vmatprep.subr.bf16.mxu0 0
  %3294 = vmatpush1.bf16.msra.mxu0 %v745
  %3295 = vmatprep.subr.bf16.mxu0 0
  %3296 = vmatpush1.bf16.msra.mxu0 %v744
  %3297 = vmatprep.subr.bf16.mxu0 0
  %3298 = vmatpush1.bf16.msra.mxu0 %v743
  %3299 = vmatprep.subr.bf16.mxu0 0
  %3300 = vmatpush1.bf16.msra.mxu0 %v742
  %3301 = vmatprep.subr.bf16.mxu0 0
  %3302 = vmatpush1.bf16.msra.mxu0 %v741
  %3303 = vmatprep.subr.bf16.mxu0 0
  %3304 = vmatpush2.bf16.msra.mxu0 %v756
  %3305 = vmatprep.subr.bf16.mxu0 0
  %3306 = vmatpush2.bf16.msra.mxu0 %v755
  %3307 = vmatprep.subr.bf16.mxu0 0
  %3308 = vmatpush2.bf16.msra.mxu0 %v754
  %3309 = vmatprep.subr.bf16.mxu0 0
  %3310 = vmatpush2.bf16.msra.mxu0 %v753
  %3311 = vmatprep.subr.bf16.mxu0 0
  %3312 = vmatpush2.bf16.msra.mxu0 %v752
  %3313 = vmatprep.subr.bf16.mxu0 0
  %3314 = vmatpush2.bf16.msra.mxu0 %v751
  %3315 = vmatprep.subr.bf16.mxu0 0
  %3316 = vmatpush2.bf16.msra.mxu0 %v750
  %3317 = vmatprep.subr.bf16.mxu0 0
  %3318 = vmatpush2.bf16.msra.mxu0 %v749
  %3319 = vmatprep.mubr.bf16.mxu0 %v2074
  %3320 = vmatmul.mubr.bf16.gmra.mxu0 %v2073
  %v3321 = vpop.f32.mrf.mxu0
  %v3322 = vadd.f32 %v3033, %v3321
  %v3323 = vpop.f32.mrf.mxu0
  %v3324 = vpop.f32.mrf.mxu0
  %v3325 = vadd.f32 %v3036, %v3324
  %v3326 = vpop.f32.mrf.mxu0
  %3327 = vmatprep.mubr.bf16.mxu0 %v2084
  %3328 = vmatmul.mubr.bf16.gmra.mxu0 %v2083
  %v3329 = vpop.f32.mrf.mxu0
  %v3330 = vadd.f32 %v3041, %v3329
  %v3331 = vpop.f32.mrf.mxu0
  %v3332 = vpop.f32.mrf.mxu0
  %v3333 = vadd.f32 %v3044, %v3332
  %v3334 = vpop.f32.mrf.mxu0
  %3335 = vmatprep.mubr.bf16.mxu0 %v2094
  %3336 = vmatmul.mubr.bf16.gmra.mxu0 %v2093
  %v3337 = vpop.f32.mrf.mxu0
  %v3338 = vadd.f32 %v3049, %v3337
  %v3339 = vpop.f32.mrf.mxu0
  %v3340 = vpop.f32.mrf.mxu0
  %v3341 = vadd.f32 %v3052, %v3340
  %v3342 = vpop.f32.mrf.mxu0
  %3343 = vmatprep.mubr.bf16.mxu0 %v2104
  %3344 = vmatmul.mubr.bf16.gmra.mxu0 %v2103
  %v3345 = vpop.f32.mrf.mxu0
  %v3346 = vadd.f32 %v3057, %v3345
  %v3347 = vpop.f32.mrf.mxu0
  %v3348 = vpop.f32.mrf.mxu0
  %v3349 = vadd.f32 %v3060, %v3348
  %v3350 = vpop.f32.mrf.mxu0
  %3351 = vmatprep.mubr.bf16.mxu0 %v2114
  %3352 = vmatmul.mubr.bf16.gmra.mxu0 %v2113
  %v3353 = vpop.f32.mrf.mxu0
  %v3354 = vadd.f32 %v3065, %v3353
  %v3355 = vpop.f32.mrf.mxu0
  %v3356 = vpop.f32.mrf.mxu0
  %v3357 = vadd.f32 %v3068, %v3356
  %v3358 = vpop.f32.mrf.mxu0
  %3359 = vmatprep.mubr.bf16.mxu0 %v2124
  %3360 = vmatmul.mubr.bf16.gmra.mxu0 %v2123
  %v3361 = vpop.f32.mrf.mxu0
  %v3362 = vadd.f32 %v3073, %v3361
  %v3363 = vpop.f32.mrf.mxu0
  %v3364 = vpop.f32.mrf.mxu0
  %v3365 = vadd.f32 %v3076, %v3364
  %v3366 = vpop.f32.mrf.mxu0
  %3367 = vmatprep.mubr.bf16.mxu0 %v2134
  %3368 = vmatmul.mubr.bf16.gmra.mxu0 %v2133
  %v3369 = vpop.f32.mrf.mxu0
  %v3370 = vadd.f32 %v3081, %v3369
  %v3371 = vpop.f32.mrf.mxu0
  %v3372 = vpop.f32.mrf.mxu0
  %v3373 = vadd.f32 %v3084, %v3372
  %v3374 = vpop.f32.mrf.mxu0
  %3375 = vmatprep.mubr.bf16.mxu0 %v2144
  %3376 = vmatmul.mubr.bf16.gmra.mxu0 %v2143
  %v3377 = vpop.f32.mrf.mxu0
  %v3378 = vadd.f32 %v3089, %v3377
  %v3379 = vpop.f32.mrf.mxu0
  %v3380 = vpop.f32.mrf.mxu0
  %v3381 = vadd.f32 %v3092, %v3380
  %v3382 = vpop.f32.mrf.mxu0
  %3383 = vmatprep.mubr.bf16.mxu0 %v2154
  %3384 = vmatmul.mubr.bf16.gmra.mxu0 %v2153
  %v3385 = vpop.f32.mrf.mxu0
  %v3386 = vadd.f32 %v3097, %v3385
  %v3387 = vpop.f32.mrf.mxu0
  %v3388 = vpop.f32.mrf.mxu0
  %v3389 = vadd.f32 %v3100, %v3388
  %v3390 = vpop.f32.mrf.mxu0
  %3391 = vmatprep.mubr.bf16.mxu0 %v2164
  %3392 = vmatmul.mubr.bf16.gmra.mxu0 %v2163
  %v3393 = vpop.f32.mrf.mxu0
  %v3394 = vadd.f32 %v3105, %v3393
  %v3395 = vpop.f32.mrf.mxu0
  %v3396 = vpop.f32.mrf.mxu0
  %v3397 = vadd.f32 %v3108, %v3396
  %v3398 = vpop.f32.mrf.mxu0
  %3399 = vmatprep.mubr.bf16.mxu0 %v2174
  %3400 = vmatmul.mubr.bf16.gmra.mxu0 %v2173
  %v3401 = vpop.f32.mrf.mxu0
  %v3402 = vadd.f32 %v3113, %v3401
  %v3403 = vpop.f32.mrf.mxu0
  %v3404 = vpop.f32.mrf.mxu0
  %v3405 = vadd.f32 %v3116, %v3404
  %v3406 = vpop.f32.mrf.mxu0
  %3407 = vmatprep.mubr.bf16.mxu0 %v2184
  %3408 = vmatmul.mubr.bf16.gmra.mxu0 %v2183
  %v3409 = vpop.f32.mrf.mxu0
  %v3410 = vadd.f32 %v3121, %v3409
  %v3411 = vpop.f32.mrf.mxu0
  %v3412 = vpop.f32.mrf.mxu0
  %v3413 = vadd.f32 %v3124, %v3412
  %v3414 = vpop.f32.mrf.mxu0
  %3415 = vmatprep.mubr.bf16.mxu0 %v2194
  %3416 = vmatmul.mubr.bf16.gmra.mxu0 %v2193
  %v3417 = vpop.f32.mrf.mxu0
  %v3418 = vadd.f32 %v3129, %v3417
  %v3419 = vpop.f32.mrf.mxu0
  %v3420 = vpop.f32.mrf.mxu0
  %v3421 = vadd.f32 %v3132, %v3420
  %v3422 = vpop.f32.mrf.mxu0
  %3423 = vmatprep.mubr.bf16.mxu0 %v2204
  %3424 = vmatmul.mubr.bf16.gmra.mxu0 %v2203
  %v3425 = vpop.f32.mrf.mxu0
  %v3426 = vadd.f32 %v3137, %v3425
  %v3427 = vpop.f32.mrf.mxu0
  %v3428 = vpop.f32.mrf.mxu0
  %v3429 = vadd.f32 %v3140, %v3428
  %v3430 = vpop.f32.mrf.mxu0
  %3431 = vmatprep.mubr.bf16.mxu0 %v2214
  %3432 = vmatmul.mubr.bf16.gmra.mxu0 %v2213
  %v3433 = vpop.f32.mrf.mxu0
  %v3434 = vadd.f32 %v3145, %v3433
  %v3435 = vpop.f32.mrf.mxu0
  %v3436 = vpop.f32.mrf.mxu0
  %v3437 = vadd.f32 %v3148, %v3436
  %v3438 = vpop.f32.mrf.mxu0
  %3439 = vmatprep.mubr.bf16.mxu0 %v2224
  %3440 = vmatmul.mubr.bf16.gmra.mxu0 %v2223
  %v3441 = vpop.f32.mrf.mxu0
  %v3442 = vadd.f32 %v3153, %v3441
  %v3443 = vpop.f32.mrf.mxu0
  %v3444 = vpop.f32.mrf.mxu0
  %v3445 = vadd.f32 %v3156, %v3444
  %v3446 = vpop.f32.mrf.mxu0
  %3447 = vmatprep.mubr.bf16.mxu0 %v2234
  %3448 = vmatmul.mubr.bf16.gmra.mxu0 %v2233
  %v3449 = vpop.f32.mrf.mxu0
  %v3450 = vadd.f32 %v3161, %v3449
  %v3451 = vpop.f32.mrf.mxu0
  %v3452 = vpop.f32.mrf.mxu0
  %v3453 = vadd.f32 %v3164, %v3452
  %v3454 = vpop.f32.mrf.mxu0
  %3455 = vmatprep.mubr.bf16.mxu0 %v2244
  %3456 = vmatmul.mubr.bf16.gmra.mxu0 %v2243
  %v3457 = vpop.f32.mrf.mxu0
  %v3458 = vadd.f32 %v3169, %v3457
  %v3459 = vpop.f32.mrf.mxu0
  %v3460 = vpop.f32.mrf.mxu0
  %v3461 = vadd.f32 %v3172, %v3460
  %v3462 = vpop.f32.mrf.mxu0
  %3463 = vmatprep.mubr.bf16.mxu0 %v2254
  %3464 = vmatmul.mubr.bf16.gmra.mxu0 %v2253
  %v3465 = vpop.f32.mrf.mxu0
  %v3466 = vadd.f32 %v3177, %v3465
  %v3467 = vpop.f32.mrf.mxu0
  %v3468 = vpop.f32.mrf.mxu0
  %v3469 = vadd.f32 %v3180, %v3468
  %v3470 = vpop.f32.mrf.mxu0
  %3471 = vmatprep.mubr.bf16.mxu0 %v2264
  %3472 = vmatmul.mubr.bf16.gmra.mxu0 %v2263
  %v3473 = vpop.f32.mrf.mxu0
  %v3474 = vadd.f32 %v3185, %v3473
  %v3475 = vpop.f32.mrf.mxu0
  %v3476 = vpop.f32.mrf.mxu0
  %v3477 = vadd.f32 %v3188, %v3476
  %v3478 = vpop.f32.mrf.mxu0
  %3479 = vmatprep.mubr.bf16.mxu0 %v2274
  %3480 = vmatmul.mubr.bf16.gmra.mxu0 %v2273
  %v3481 = vpop.f32.mrf.mxu0
  %v3482 = vadd.f32 %v3193, %v3481
  %v3483 = vpop.f32.mrf.mxu0
  %v3484 = vpop.f32.mrf.mxu0
  %v3485 = vadd.f32 %v3196, %v3484
  %v3486 = vpop.f32.mrf.mxu0
  %3487 = vmatprep.mubr.bf16.mxu0 %v2284
  %3488 = vmatmul.mubr.bf16.gmra.mxu0 %v2283
  %v3489 = vpop.f32.mrf.mxu0
  %v3490 = vadd.f32 %v3201, %v3489
  %v3491 = vpop.f32.mrf.mxu0
  %v3492 = vpop.f32.mrf.mxu0
  %v3493 = vadd.f32 %v3204, %v3492
  %v3494 = vpop.f32.mrf.mxu0
  %3495 = vmatprep.mubr.bf16.mxu0 %v2294
  %3496 = vmatmul.mubr.bf16.gmra.mxu0 %v2293
  %v3497 = vpop.f32.mrf.mxu0
  %v3498 = vadd.f32 %v3209, %v3497
  %v3499 = vpop.f32.mrf.mxu0
  %v3500 = vpop.f32.mrf.mxu0
  %v3501 = vadd.f32 %v3212, %v3500
  %v3502 = vpop.f32.mrf.mxu0
  %3503 = vmatprep.mubr.bf16.mxu0 %v2304
  %3504 = vmatmul.mubr.bf16.gmra.mxu0 %v2303
  %v3505 = vpop.f32.mrf.mxu0
  %v3506 = vadd.f32 %v3217, %v3505
  %v3507 = vpop.f32.mrf.mxu0
  %v3508 = vpop.f32.mrf.mxu0
  %v3509 = vadd.f32 %v3220, %v3508
  %v3510 = vpop.f32.mrf.mxu0
  %3511 = vmatprep.mubr.bf16.mxu0 %v2314
  %3512 = vmatmul.mubr.bf16.gmra.mxu0 %v2313
  %v3513 = vpop.f32.mrf.mxu0
  %v3514 = vadd.f32 %v3225, %v3513
  %v3515 = vpop.f32.mrf.mxu0
  %v3516 = vpop.f32.mrf.mxu0
  %v3517 = vadd.f32 %v3228, %v3516
  %v3518 = vpop.f32.mrf.mxu0
  %3519 = vmatprep.mubr.bf16.mxu0 %v2324
  %3520 = vmatmul.mubr.bf16.gmra.mxu0 %v2323
  %v3521 = vpop.f32.mrf.mxu0
  %v3522 = vadd.f32 %v3233, %v3521
  %v3523 = vpop.f32.mrf.mxu0
  %v3524 = vpop.f32.mrf.mxu0
  %v3525 = vadd.f32 %v3236, %v3524
  %v3526 = vpop.f32.mrf.mxu0
  %3527 = vmatprep.mubr.bf16.mxu0 %v2334
  %3528 = vmatmul.mubr.bf16.gmra.mxu0 %v2333
  %v3529 = vpop.f32.mrf.mxu0
  %v3530 = vadd.f32 %v3241, %v3529
  %v3531 = vpop.f32.mrf.mxu0
  %v3532 = vpop.f32.mrf.mxu0
  %v3533 = vadd.f32 %v3244, %v3532
  %v3534 = vpop.f32.mrf.mxu0
  %3535 = vmatprep.mubr.bf16.mxu0 %v2344
  %3536 = vmatmul.mubr.bf16.gmra.mxu0 %v2343
  %v3537 = vpop.f32.mrf.mxu0
  %v3538 = vadd.f32 %v3249, %v3537
  %v3539 = vpop.f32.mrf.mxu0
  %v3540 = vpop.f32.mrf.mxu0
  %v3541 = vadd.f32 %v3252, %v3540
  %v3542 = vpop.f32.mrf.mxu0
  %3543 = vmatprep.mubr.bf16.mxu0 %v2354
  %3544 = vmatmul.mubr.bf16.gmra.mxu0 %v2353
  %v3545 = vpop.f32.mrf.mxu0
  %v3546 = vadd.f32 %v3257, %v3545
  %v3547 = vpop.f32.mrf.mxu0
  %v3548 = vpop.f32.mrf.mxu0
  %v3549 = vadd.f32 %v3260, %v3548
  %v3550 = vpop.f32.mrf.mxu0
  %3551 = vmatprep.mubr.bf16.mxu0 %v2364
  %3552 = vmatmul.mubr.bf16.gmra.mxu0 %v2363
  %v3553 = vpop.f32.mrf.mxu0
  %v3554 = vadd.f32 %v3265, %v3553
  %v3555 = vpop.f32.mrf.mxu0
  %v3556 = vpop.f32.mrf.mxu0
  %v3557 = vadd.f32 %v3268, %v3556
  %v3558 = vpop.f32.mrf.mxu0
  %3559 = vmatprep.mubr.bf16.mxu0 %v2374
  %3560 = vmatmul.mubr.bf16.gmra.mxu0 %v2373
  %v3561 = vpop.f32.mrf.mxu0
  %v3562 = vadd.f32 %v3273, %v3561
  %v3563 = vpop.f32.mrf.mxu0
  %v3564 = vpop.f32.mrf.mxu0
  %v3565 = vadd.f32 %v3276, %v3564
  %v3566 = vpop.f32.mrf.mxu0
  %3567 = vmatprep.mubr.bf16.mxu0 %v2384
  %3568 = vmatmul.mubr.bf16.gmra.mxu0 %v2383
  %v3569 = vpop.f32.mrf.mxu0
  %v3570 = vadd.f32 %v3281, %v3569
  %v3571 = vpop.f32.mrf.mxu0
  %v3572 = vpop.f32.mrf.mxu0
  %v3573 = vadd.f32 %v3284, %v3572
  %v3574 = vpop.f32.mrf.mxu0
  %3575 = vdwg.mxu0
  %3576 = vmatprep.subr.bf16.mxu0 0
  %3577 = vmatpush1.bf16.msra.mxu0 %v764
  %3578 = vmatprep.subr.bf16.mxu0 0
  %3579 = vmatpush1.bf16.msra.mxu0 %v763
  %3580 = vmatprep.subr.bf16.mxu0 0
  %3581 = vmatpush1.bf16.msra.mxu0 %v762
  %3582 = vmatprep.subr.bf16.mxu0 0
  %3583 = vmatpush1.bf16.msra.mxu0 %v761
  %3584 = vmatprep.subr.bf16.mxu0 0
  %3585 = vmatpush1.bf16.msra.mxu0 %v760
  %3586 = vmatprep.subr.bf16.mxu0 0
  %3587 = vmatpush1.bf16.msra.mxu0 %v759
  %3588 = vmatprep.subr.bf16.mxu0 0
  %3589 = vmatpush1.bf16.msra.mxu0 %v758
  %3590 = vmatprep.subr.bf16.mxu0 0
  %3591 = vmatpush1.bf16.msra.mxu0 %v757
  %3592 = vmatprep.subr.bf16.mxu0 0
  %3593 = vmatpush2.bf16.msra.mxu0 %v772
  %3594 = vmatprep.subr.bf16.mxu0 0
  %3595 = vmatpush2.bf16.msra.mxu0 %v771
  %3596 = vmatprep.subr.bf16.mxu0 0
  %3597 = vmatpush2.bf16.msra.mxu0 %v770
  %3598 = vmatprep.subr.bf16.mxu0 0
  %3599 = vmatpush2.bf16.msra.mxu0 %v769
  %3600 = vmatprep.subr.bf16.mxu0 0
  %3601 = vmatpush2.bf16.msra.mxu0 %v768
  %3602 = vmatprep.subr.bf16.mxu0 0
  %3603 = vmatpush2.bf16.msra.mxu0 %v767
  %3604 = vmatprep.subr.bf16.mxu0 0
  %3605 = vmatpush2.bf16.msra.mxu0 %v766
  %3606 = vmatprep.subr.bf16.mxu0 0
  %3607 = vmatpush2.bf16.msra.mxu0 %v765
  %3608 = vmatprep.mubr.bf16.mxu0 %v2076
  %3609 = vmatmul.mubr.bf16.gmra.mxu0 %v2075
  %v3610 = vpop.f32.mrf.mxu0
  %v3611 = vadd.f32 %v3322, %v3610
  %v3612 = vpop.f32.mrf.mxu0
  %v3613 = vpop.f32.mrf.mxu0
  %v3614 = vadd.f32 %v3325, %v3613
  %v3615 = vpop.f32.mrf.mxu0
  %3616 = vmatprep.mubr.bf16.mxu0 %v2086
  %3617 = vmatmul.mubr.bf16.gmra.mxu0 %v2085
  %v3618 = vpop.f32.mrf.mxu0
  %v3619 = vadd.f32 %v3330, %v3618
  %v3620 = vpop.f32.mrf.mxu0
  %v3621 = vpop.f32.mrf.mxu0
  %v3622 = vadd.f32 %v3333, %v3621
  %v3623 = vpop.f32.mrf.mxu0
  %3624 = vmatprep.mubr.bf16.mxu0 %v2096
  %3625 = vmatmul.mubr.bf16.gmra.mxu0 %v2095
  %v3626 = vpop.f32.mrf.mxu0
  %v3627 = vadd.f32 %v3338, %v3626
  %v3628 = vpop.f32.mrf.mxu0
  %v3629 = vpop.f32.mrf.mxu0
  %v3630 = vadd.f32 %v3341, %v3629
  %v3631 = vpop.f32.mrf.mxu0
  %3632 = vmatprep.mubr.bf16.mxu0 %v2106
  %3633 = vmatmul.mubr.bf16.gmra.mxu0 %v2105
  %v3634 = vpop.f32.mrf.mxu0
  %v3635 = vadd.f32 %v3346, %v3634
  %v3636 = vpop.f32.mrf.mxu0
  %v3637 = vpop.f32.mrf.mxu0
  %v3638 = vadd.f32 %v3349, %v3637
  %v3639 = vpop.f32.mrf.mxu0
  %3640 = vmatprep.mubr.bf16.mxu0 %v2116
  %3641 = vmatmul.mubr.bf16.gmra.mxu0 %v2115
  %v3642 = vpop.f32.mrf.mxu0
  %v3643 = vadd.f32 %v3354, %v3642
  %v3644 = vpop.f32.mrf.mxu0
  %v3645 = vpop.f32.mrf.mxu0
  %v3646 = vadd.f32 %v3357, %v3645
  %v3647 = vpop.f32.mrf.mxu0
  %3648 = vmatprep.mubr.bf16.mxu0 %v2126
  %3649 = vmatmul.mubr.bf16.gmra.mxu0 %v2125
  %v3650 = vpop.f32.mrf.mxu0
  %v3651 = vadd.f32 %v3362, %v3650
  %v3652 = vpop.f32.mrf.mxu0
  %v3653 = vpop.f32.mrf.mxu0
  %v3654 = vadd.f32 %v3365, %v3653
  %v3655 = vpop.f32.mrf.mxu0
  %3656 = vmatprep.mubr.bf16.mxu0 %v2136
  %3657 = vmatmul.mubr.bf16.gmra.mxu0 %v2135
  %v3658 = vpop.f32.mrf.mxu0
  %v3659 = vadd.f32 %v3370, %v3658
  %v3660 = vpop.f32.mrf.mxu0
  %v3661 = vpop.f32.mrf.mxu0
  %v3662 = vadd.f32 %v3373, %v3661
  %v3663 = vpop.f32.mrf.mxu0
  %3664 = vmatprep.mubr.bf16.mxu0 %v2146
  %3665 = vmatmul.mubr.bf16.gmra.mxu0 %v2145
  %v3666 = vpop.f32.mrf.mxu0
  %v3667 = vadd.f32 %v3378, %v3666
  %v3668 = vpop.f32.mrf.mxu0
  %v3669 = vpop.f32.mrf.mxu0
  %v3670 = vadd.f32 %v3381, %v3669
  %v3671 = vpop.f32.mrf.mxu0
  %3672 = vmatprep.mubr.bf16.mxu0 %v2156
  %3673 = vmatmul.mubr.bf16.gmra.mxu0 %v2155
  %v3674 = vpop.f32.mrf.mxu0
  %v3675 = vadd.f32 %v3386, %v3674
  %v3676 = vpop.f32.mrf.mxu0
  %v3677 = vpop.f32.mrf.mxu0
  %v3678 = vadd.f32 %v3389, %v3677
  %v3679 = vpop.f32.mrf.mxu0
  %3680 = vmatprep.mubr.bf16.mxu0 %v2166
  %3681 = vmatmul.mubr.bf16.gmra.mxu0 %v2165
  %v3682 = vpop.f32.mrf.mxu0
  %v3683 = vadd.f32 %v3394, %v3682
  %v3684 = vpop.f32.mrf.mxu0
  %v3685 = vpop.f32.mrf.mxu0
  %v3686 = vadd.f32 %v3397, %v3685
  %v3687 = vpop.f32.mrf.mxu0
  %3688 = vmatprep.mubr.bf16.mxu0 %v2176
  %3689 = vmatmul.mubr.bf16.gmra.mxu0 %v2175
  %v3690 = vpop.f32.mrf.mxu0
  %v3691 = vadd.f32 %v3402, %v3690
  %v3692 = vpop.f32.mrf.mxu0
  %v3693 = vpop.f32.mrf.mxu0
  %v3694 = vadd.f32 %v3405, %v3693
  %v3695 = vpop.f32.mrf.mxu0
  %3696 = vmatprep.mubr.bf16.mxu0 %v2186
  %3697 = vmatmul.mubr.bf16.gmra.mxu0 %v2185
  %v3698 = vpop.f32.mrf.mxu0
  %v3699 = vadd.f32 %v3410, %v3698
  %v3700 = vpop.f32.mrf.mxu0
  %v3701 = vpop.f32.mrf.mxu0
  %v3702 = vadd.f32 %v3413, %v3701
  %v3703 = vpop.f32.mrf.mxu0
  %3704 = vmatprep.mubr.bf16.mxu0 %v2196
  %3705 = vmatmul.mubr.bf16.gmra.mxu0 %v2195
  %v3706 = vpop.f32.mrf.mxu0
  %v3707 = vadd.f32 %v3418, %v3706
  %v3708 = vpop.f32.mrf.mxu0
  %v3709 = vpop.f32.mrf.mxu0
  %v3710 = vadd.f32 %v3421, %v3709
  %v3711 = vpop.f32.mrf.mxu0
  %3712 = vmatprep.mubr.bf16.mxu0 %v2206
  %3713 = vmatmul.mubr.bf16.gmra.mxu0 %v2205
  %v3714 = vpop.f32.mrf.mxu0
  %v3715 = vadd.f32 %v3426, %v3714
  %v3716 = vpop.f32.mrf.mxu0
  %v3717 = vpop.f32.mrf.mxu0
  %v3718 = vadd.f32 %v3429, %v3717
  %v3719 = vpop.f32.mrf.mxu0
  %3720 = vmatprep.mubr.bf16.mxu0 %v2216
  %3721 = vmatmul.mubr.bf16.gmra.mxu0 %v2215
  %v3722 = vpop.f32.mrf.mxu0
  %v3723 = vadd.f32 %v3434, %v3722
  %v3724 = vpop.f32.mrf.mxu0
  %v3725 = vpop.f32.mrf.mxu0
  %v3726 = vadd.f32 %v3437, %v3725
  %v3727 = vpop.f32.mrf.mxu0
  %3728 = vmatprep.mubr.bf16.mxu0 %v2226
  %3729 = vmatmul.mubr.bf16.gmra.mxu0 %v2225
  %v3730 = vpop.f32.mrf.mxu0
  %v3731 = vadd.f32 %v3442, %v3730
  %v3732 = vpop.f32.mrf.mxu0
  %v3733 = vpop.f32.mrf.mxu0
  %v3734 = vadd.f32 %v3445, %v3733
  %v3735 = vpop.f32.mrf.mxu0
  %3736 = vmatprep.mubr.bf16.mxu0 %v2236
  %3737 = vmatmul.mubr.bf16.gmra.mxu0 %v2235
  %v3738 = vpop.f32.mrf.mxu0
  %v3739 = vadd.f32 %v3450, %v3738
  %v3740 = vpop.f32.mrf.mxu0
  %v3741 = vpop.f32.mrf.mxu0
  %v3742 = vadd.f32 %v3453, %v3741
  %v3743 = vpop.f32.mrf.mxu0
  %3744 = vmatprep.mubr.bf16.mxu0 %v2246
  %3745 = vmatmul.mubr.bf16.gmra.mxu0 %v2245
  %v3746 = vpop.f32.mrf.mxu0
  %v3747 = vadd.f32 %v3458, %v3746
  %v3748 = vpop.f32.mrf.mxu0
  %v3749 = vpop.f32.mrf.mxu0
  %v3750 = vadd.f32 %v3461, %v3749
  %v3751 = vpop.f32.mrf.mxu0
  %3752 = vmatprep.mubr.bf16.mxu0 %v2256
  %3753 = vmatmul.mubr.bf16.gmra.mxu0 %v2255
  %v3754 = vpop.f32.mrf.mxu0
  %v3755 = vadd.f32 %v3466, %v3754
  %v3756 = vpop.f32.mrf.mxu0
  %v3757 = vpop.f32.mrf.mxu0
  %v3758 = vadd.f32 %v3469, %v3757
  %v3759 = vpop.f32.mrf.mxu0
  %3760 = vmatprep.mubr.bf16.mxu0 %v2266
  %3761 = vmatmul.mubr.bf16.gmra.mxu0 %v2265
  %v3762 = vpop.f32.mrf.mxu0
  %v3763 = vadd.f32 %v3474, %v3762
  %v3764 = vpop.f32.mrf.mxu0
  %v3765 = vpop.f32.mrf.mxu0
  %v3766 = vadd.f32 %v3477, %v3765
  %v3767 = vpop.f32.mrf.mxu0
  %3768 = vmatprep.mubr.bf16.mxu0 %v2276
  %3769 = vmatmul.mubr.bf16.gmra.mxu0 %v2275
  %v3770 = vpop.f32.mrf.mxu0
  %v3771 = vadd.f32 %v3482, %v3770
  %v3772 = vpop.f32.mrf.mxu0
  %v3773 = vpop.f32.mrf.mxu0
  %v3774 = vadd.f32 %v3485, %v3773
  %v3775 = vpop.f32.mrf.mxu0
  %3776 = vmatprep.mubr.bf16.mxu0 %v2286
  %3777 = vmatmul.mubr.bf16.gmra.mxu0 %v2285
  %v3778 = vpop.f32.mrf.mxu0
  %v3779 = vadd.f32 %v3490, %v3778
  %v3780 = vpop.f32.mrf.mxu0
  %v3781 = vpop.f32.mrf.mxu0
  %v3782 = vadd.f32 %v3493, %v3781
  %v3783 = vpop.f32.mrf.mxu0
  %3784 = vmatprep.mubr.bf16.mxu0 %v2296
  %3785 = vmatmul.mubr.bf16.gmra.mxu0 %v2295
  %v3786 = vpop.f32.mrf.mxu0
  %v3787 = vadd.f32 %v3498, %v3786
  %v3788 = vpop.f32.mrf.mxu0
  %v3789 = vpop.f32.mrf.mxu0
  %v3790 = vadd.f32 %v3501, %v3789
  %v3791 = vpop.f32.mrf.mxu0
  %3792 = vmatprep.mubr.bf16.mxu0 %v2306
  %3793 = vmatmul.mubr.bf16.gmra.mxu0 %v2305
  %v3794 = vpop.f32.mrf.mxu0
  %v3795 = vadd.f32 %v3506, %v3794
  %v3796 = vpop.f32.mrf.mxu0
  %v3797 = vpop.f32.mrf.mxu0
  %v3798 = vadd.f32 %v3509, %v3797
  %v3799 = vpop.f32.mrf.mxu0
  %3800 = vmatprep.mubr.bf16.mxu0 %v2316
  %3801 = vmatmul.mubr.bf16.gmra.mxu0 %v2315
  %v3802 = vpop.f32.mrf.mxu0
  %v3803 = vadd.f32 %v3514, %v3802
  %v3804 = vpop.f32.mrf.mxu0
  %v3805 = vpop.f32.mrf.mxu0
  %v3806 = vadd.f32 %v3517, %v3805
  %v3807 = vpop.f32.mrf.mxu0
  %3808 = vmatprep.mubr.bf16.mxu0 %v2326
  %3809 = vmatmul.mubr.bf16.gmra.mxu0 %v2325
  %v3810 = vpop.f32.mrf.mxu0
  %v3811 = vadd.f32 %v3522, %v3810
  %v3812 = vpop.f32.mrf.mxu0
  %v3813 = vpop.f32.mrf.mxu0
  %v3814 = vadd.f32 %v3525, %v3813
  %v3815 = vpop.f32.mrf.mxu0
  %3816 = vmatprep.mubr.bf16.mxu0 %v2336
  %3817 = vmatmul.mubr.bf16.gmra.mxu0 %v2335
  %v3818 = vpop.f32.mrf.mxu0
  %v3819 = vadd.f32 %v3530, %v3818
  %v3820 = vpop.f32.mrf.mxu0
  %v3821 = vpop.f32.mrf.mxu0
  %v3822 = vadd.f32 %v3533, %v3821
  %v3823 = vpop.f32.mrf.mxu0
  %3824 = vmatprep.mubr.bf16.mxu0 %v2346
  %3825 = vmatmul.mubr.bf16.gmra.mxu0 %v2345
  %v3826 = vpop.f32.mrf.mxu0
  %v3827 = vadd.f32 %v3538, %v3826
  %v3828 = vpop.f32.mrf.mxu0
  %v3829 = vpop.f32.mrf.mxu0
  %v3830 = vadd.f32 %v3541, %v3829
  %v3831 = vpop.f32.mrf.mxu0
  %3832 = vmatprep.mubr.bf16.mxu0 %v2356
  %3833 = vmatmul.mubr.bf16.gmra.mxu0 %v2355
  %v3834 = vpop.f32.mrf.mxu0
  %v3835 = vadd.f32 %v3546, %v3834
  %v3836 = vpop.f32.mrf.mxu0
  %v3837 = vpop.f32.mrf.mxu0
  %v3838 = vadd.f32 %v3549, %v3837
  %v3839 = vpop.f32.mrf.mxu0
  %3840 = vmatprep.mubr.bf16.mxu0 %v2366
  %3841 = vmatmul.mubr.bf16.gmra.mxu0 %v2365
  %v3842 = vpop.f32.mrf.mxu0
  %v3843 = vadd.f32 %v3554, %v3842
  %v3844 = vpop.f32.mrf.mxu0
  %v3845 = vpop.f32.mrf.mxu0
  %v3846 = vadd.f32 %v3557, %v3845
  %v3847 = vpop.f32.mrf.mxu0
  %3848 = vmatprep.mubr.bf16.mxu0 %v2376
  %3849 = vmatmul.mubr.bf16.gmra.mxu0 %v2375
  %v3850 = vpop.f32.mrf.mxu0
  %v3851 = vadd.f32 %v3562, %v3850
  %v3852 = vpop.f32.mrf.mxu0
  %v3853 = vpop.f32.mrf.mxu0
  %v3854 = vadd.f32 %v3565, %v3853
  %v3855 = vpop.f32.mrf.mxu0
  %3856 = vmatprep.mubr.bf16.mxu0 %v2386
  %3857 = vmatmul.mubr.bf16.gmra.mxu0 %v2385
  %v3858 = vpop.f32.mrf.mxu0
  %v3859 = vadd.f32 %v3570, %v3858
  %v3860 = vpop.f32.mrf.mxu0
  %v3861 = vpop.f32.mrf.mxu0
  %v3862 = vadd.f32 %v3573, %v3861
  %v3863 = vpop.f32.mrf.mxu0
  %3864 = vdwg.mxu0
  %3865 = vmatprep.subr.bf16.mxu0 0
  %3866 = vmatpush1.bf16.msra.mxu0 %v780
  %3867 = vmatprep.subr.bf16.mxu0 0
  %3868 = vmatpush1.bf16.msra.mxu0 %v779
  %3869 = vmatprep.subr.bf16.mxu0 0
  %3870 = vmatpush1.bf16.msra.mxu0 %v778
  %3871 = vmatprep.subr.bf16.mxu0 0
  %3872 = vmatpush1.bf16.msra.mxu0 %v777
  %3873 = vmatprep.subr.bf16.mxu0 0
  %3874 = vmatpush1.bf16.msra.mxu0 %v776
  %3875 = vmatprep.subr.bf16.mxu0 0
  %3876 = vmatpush1.bf16.msra.mxu0 %v775
  %3877 = vmatprep.subr.bf16.mxu0 0
  %3878 = vmatpush1.bf16.msra.mxu0 %v774
  %3879 = vmatprep.subr.bf16.mxu0 0
  %3880 = vmatpush1.bf16.msra.mxu0 %v773
  %3881 = vmatprep.subr.bf16.mxu0 0
  %3882 = vmatpush2.bf16.msra.mxu0 %v788
  %3883 = vmatprep.subr.bf16.mxu0 0
  %3884 = vmatpush2.bf16.msra.mxu0 %v787
  %3885 = vmatprep.subr.bf16.mxu0 0
  %3886 = vmatpush2.bf16.msra.mxu0 %v786
  %3887 = vmatprep.subr.bf16.mxu0 0
  %3888 = vmatpush2.bf16.msra.mxu0 %v785
  %3889 = vmatprep.subr.bf16.mxu0 0
  %3890 = vmatpush2.bf16.msra.mxu0 %v784
  %3891 = vmatprep.subr.bf16.mxu0 0
  %3892 = vmatpush2.bf16.msra.mxu0 %v783
  %3893 = vmatprep.subr.bf16.mxu0 0
  %3894 = vmatpush2.bf16.msra.mxu0 %v782
  %3895 = vmatprep.subr.bf16.mxu0 0
  %3896 = vmatpush2.bf16.msra.mxu0 %v781
  %3897 = vmatprep.mubr.bf16.mxu0 %v2078
  %3898 = vmatmul.mubr.bf16.gmra.mxu0 %v2077
  %v3899 = vpop.f32.mrf.mxu0
  %v3900 = vadd.f32 %v3611, %v3899
  %v3901 = vpop.f32.mrf.mxu0
  %v3902 = vpop.f32.mrf.mxu0
  %v3903 = vadd.f32 %v3614, %v3902
  %v3904 = vpop.f32.mrf.mxu0
  %3905 = vmatprep.mubr.bf16.mxu0 %v2088
  %3906 = vmatmul.mubr.bf16.gmra.mxu0 %v2087
  %v3907 = vpop.f32.mrf.mxu0
  %v3908 = vadd.f32 %v3619, %v3907
  %v3909 = vpop.f32.mrf.mxu0
  %v3910 = vpop.f32.mrf.mxu0
  %v3911 = vadd.f32 %v3622, %v3910
  %v3912 = vpop.f32.mrf.mxu0
  %3913 = vmatprep.mubr.bf16.mxu0 %v2098
  %3914 = vmatmul.mubr.bf16.gmra.mxu0 %v2097
  %v3915 = vpop.f32.mrf.mxu0
  %v3916 = vadd.f32 %v3627, %v3915
  %v3917 = vpop.f32.mrf.mxu0
  %v3918 = vpop.f32.mrf.mxu0
  %v3919 = vadd.f32 %v3630, %v3918
  %v3920 = vpop.f32.mrf.mxu0
  %3921 = vmatprep.mubr.bf16.mxu0 %v2108
  %3922 = vmatmul.mubr.bf16.gmra.mxu0 %v2107
  %v3923 = vpop.f32.mrf.mxu0
  %v3924 = vadd.f32 %v3635, %v3923
  %v3925 = vpop.f32.mrf.mxu0
  %v3926 = vpop.f32.mrf.mxu0
  %v3927 = vadd.f32 %v3638, %v3926
  %v3928 = vpop.f32.mrf.mxu0
  %3929 = vmatprep.mubr.bf16.mxu0 %v2118
  %3930 = vmatmul.mubr.bf16.gmra.mxu0 %v2117
  %v3931 = vpop.f32.mrf.mxu0
  %v3932 = vadd.f32 %v3643, %v3931
  %v3933 = vpop.f32.mrf.mxu0
  %v3934 = vpop.f32.mrf.mxu0
  %v3935 = vadd.f32 %v3646, %v3934
  %v3936 = vpop.f32.mrf.mxu0
  %3937 = vmatprep.mubr.bf16.mxu0 %v2128
  %3938 = vmatmul.mubr.bf16.gmra.mxu0 %v2127
  %v3939 = vpop.f32.mrf.mxu0
  %v3940 = vadd.f32 %v3651, %v3939
  %v3941 = vpop.f32.mrf.mxu0
  %v3942 = vpop.f32.mrf.mxu0
  %v3943 = vadd.f32 %v3654, %v3942
  %v3944 = vpop.f32.mrf.mxu0
  %3945 = vmatprep.mubr.bf16.mxu0 %v2138
  %3946 = vmatmul.mubr.bf16.gmra.mxu0 %v2137
  %v3947 = vpop.f32.mrf.mxu0
  %v3948 = vadd.f32 %v3659, %v3947
  %v3949 = vpop.f32.mrf.mxu0
  %v3950 = vpop.f32.mrf.mxu0
  %v3951 = vadd.f32 %v3662, %v3950
  %v3952 = vpop.f32.mrf.mxu0
  %3953 = vmatprep.mubr.bf16.mxu0 %v2148
  %3954 = vmatmul.mubr.bf16.gmra.mxu0 %v2147
  %v3955 = vpop.f32.mrf.mxu0
  %v3956 = vadd.f32 %v3667, %v3955
  %v3957 = vpop.f32.mrf.mxu0
  %v3958 = vpop.f32.mrf.mxu0
  %v3959 = vadd.f32 %v3670, %v3958
  %v3960 = vpop.f32.mrf.mxu0
  %3961 = vmatprep.mubr.bf16.mxu0 %v2158
  %3962 = vmatmul.mubr.bf16.gmra.mxu0 %v2157
  %v3963 = vpop.f32.mrf.mxu0
  %v3964 = vadd.f32 %v3675, %v3963
  %v3965 = vpop.f32.mrf.mxu0
  %v3966 = vpop.f32.mrf.mxu0
  %v3967 = vadd.f32 %v3678, %v3966
  %v3968 = vpop.f32.mrf.mxu0
  %3969 = vmatprep.mubr.bf16.mxu0 %v2168
  %3970 = vmatmul.mubr.bf16.gmra.mxu0 %v2167
  %v3971 = vpop.f32.mrf.mxu0
  %v3972 = vadd.f32 %v3683, %v3971
  %v3973 = vpop.f32.mrf.mxu0
  %v3974 = vpop.f32.mrf.mxu0
  %v3975 = vadd.f32 %v3686, %v3974
  %v3976 = vpop.f32.mrf.mxu0
  %3977 = vmatprep.mubr.bf16.mxu0 %v2178
  %3978 = vmatmul.mubr.bf16.gmra.mxu0 %v2177
  %v3979 = vpop.f32.mrf.mxu0
  %v3980 = vadd.f32 %v3691, %v3979
  %v3981 = vpop.f32.mrf.mxu0
  %v3982 = vpop.f32.mrf.mxu0
  %v3983 = vadd.f32 %v3694, %v3982
  %v3984 = vpop.f32.mrf.mxu0
  %3985 = vmatprep.mubr.bf16.mxu0 %v2188
  %3986 = vmatmul.mubr.bf16.gmra.mxu0 %v2187
  %v3987 = vpop.f32.mrf.mxu0
  %v3988 = vadd.f32 %v3699, %v3987
  %v3989 = vpop.f32.mrf.mxu0
  %v3990 = vpop.f32.mrf.mxu0
  %v3991 = vadd.f32 %v3702, %v3990
  %v3992 = vpop.f32.mrf.mxu0
  %3993 = vmatprep.mubr.bf16.mxu0 %v2198
  %3994 = vmatmul.mubr.bf16.gmra.mxu0 %v2197
  %v3995 = vpop.f32.mrf.mxu0
  %v3996 = vadd.f32 %v3707, %v3995
  %v3997 = vpop.f32.mrf.mxu0
  %v3998 = vpop.f32.mrf.mxu0
  %v3999 = vadd.f32 %v3710, %v3998
  %v4000 = vpop.f32.mrf.mxu0
  %4001 = vmatprep.mubr.bf16.mxu0 %v2208
  %4002 = vmatmul.mubr.bf16.gmra.mxu0 %v2207
  %v4003 = vpop.f32.mrf.mxu0
  %v4004 = vadd.f32 %v3715, %v4003
  %v4005 = vpop.f32.mrf.mxu0
  %v4006 = vpop.f32.mrf.mxu0
  %v4007 = vadd.f32 %v3718, %v4006
  %v4008 = vpop.f32.mrf.mxu0
  %4009 = vmatprep.mubr.bf16.mxu0 %v2218
  %4010 = vmatmul.mubr.bf16.gmra.mxu0 %v2217
  %v4011 = vpop.f32.mrf.mxu0
  %v4012 = vadd.f32 %v3723, %v4011
  %v4013 = vpop.f32.mrf.mxu0
  %v4014 = vpop.f32.mrf.mxu0
  %v4015 = vadd.f32 %v3726, %v4014
  %v4016 = vpop.f32.mrf.mxu0
  %4017 = vmatprep.mubr.bf16.mxu0 %v2228
  %4018 = vmatmul.mubr.bf16.gmra.mxu0 %v2227
  %v4019 = vpop.f32.mrf.mxu0
  %v4020 = vadd.f32 %v3731, %v4019
  %v4021 = vpop.f32.mrf.mxu0
  %v4022 = vpop.f32.mrf.mxu0
  %v4023 = vadd.f32 %v3734, %v4022
  %v4024 = vpop.f32.mrf.mxu0
  %4025 = vmatprep.mubr.bf16.mxu0 %v2238
  %4026 = vmatmul.mubr.bf16.gmra.mxu0 %v2237
  %v4027 = vpop.f32.mrf.mxu0
  %v4028 = vadd.f32 %v3739, %v4027
  %v4029 = vpop.f32.mrf.mxu0
  %v4030 = vpop.f32.mrf.mxu0
  %v4031 = vadd.f32 %v3742, %v4030
  %v4032 = vpop.f32.mrf.mxu0
  %4033 = vmatprep.mubr.bf16.mxu0 %v2248
  %4034 = vmatmul.mubr.bf16.gmra.mxu0 %v2247
  %v4035 = vpop.f32.mrf.mxu0
  %v4036 = vadd.f32 %v3747, %v4035
  %v4037 = vpop.f32.mrf.mxu0
  %v4038 = vpop.f32.mrf.mxu0
  %v4039 = vadd.f32 %v3750, %v4038
  %v4040 = vpop.f32.mrf.mxu0
  %4041 = vmatprep.mubr.bf16.mxu0 %v2258
  %4042 = vmatmul.mubr.bf16.gmra.mxu0 %v2257
  %v4043 = vpop.f32.mrf.mxu0
  %v4044 = vadd.f32 %v3755, %v4043
  %v4045 = vpop.f32.mrf.mxu0
  %v4046 = vpop.f32.mrf.mxu0
  %v4047 = vadd.f32 %v3758, %v4046
  %v4048 = vpop.f32.mrf.mxu0
  %4049 = vmatprep.mubr.bf16.mxu0 %v2268
  %4050 = vmatmul.mubr.bf16.gmra.mxu0 %v2267
  %v4051 = vpop.f32.mrf.mxu0
  %v4052 = vadd.f32 %v3763, %v4051
  %v4053 = vpop.f32.mrf.mxu0
  %v4054 = vpop.f32.mrf.mxu0
  %v4055 = vadd.f32 %v3766, %v4054
  %v4056 = vpop.f32.mrf.mxu0
  %4057 = vmatprep.mubr.bf16.mxu0 %v2278
  %4058 = vmatmul.mubr.bf16.gmra.mxu0 %v2277
  %v4059 = vpop.f32.mrf.mxu0
  %v4060 = vadd.f32 %v3771, %v4059
  %v4061 = vpop.f32.mrf.mxu0
  %v4062 = vpop.f32.mrf.mxu0
  %v4063 = vadd.f32 %v3774, %v4062
  %v4064 = vpop.f32.mrf.mxu0
  %4065 = vmatprep.mubr.bf16.mxu0 %v2288
  %4066 = vmatmul.mubr.bf16.gmra.mxu0 %v2287
  %v4067 = vpop.f32.mrf.mxu0
  %v4068 = vadd.f32 %v3779, %v4067
  %v4069 = vpop.f32.mrf.mxu0
  %v4070 = vpop.f32.mrf.mxu0
  %v4071 = vadd.f32 %v3782, %v4070
  %v4072 = vpop.f32.mrf.mxu0
  %4073 = vmatprep.mubr.bf16.mxu0 %v2298
  %4074 = vmatmul.mubr.bf16.gmra.mxu0 %v2297
  %v4075 = vpop.f32.mrf.mxu0
  %v4076 = vadd.f32 %v3787, %v4075
  %v4077 = vpop.f32.mrf.mxu0
  %v4078 = vpop.f32.mrf.mxu0
  %v4079 = vadd.f32 %v3790, %v4078
  %v4080 = vpop.f32.mrf.mxu0
  %4081 = vmatprep.mubr.bf16.mxu0 %v2308
  %4082 = vmatmul.mubr.bf16.gmra.mxu0 %v2307
  %v4083 = vpop.f32.mrf.mxu0
  %v4084 = vadd.f32 %v3795, %v4083
  %v4085 = vpop.f32.mrf.mxu0
  %v4086 = vpop.f32.mrf.mxu0
  %v4087 = vadd.f32 %v3798, %v4086
  %v4088 = vpop.f32.mrf.mxu0
  %4089 = vmatprep.mubr.bf16.mxu0 %v2318
  %4090 = vmatmul.mubr.bf16.gmra.mxu0 %v2317
  %v4091 = vpop.f32.mrf.mxu0
  %v4092 = vadd.f32 %v3803, %v4091
  %v4093 = vpop.f32.mrf.mxu0
  %v4094 = vpop.f32.mrf.mxu0
  %v4095 = vadd.f32 %v3806, %v4094
  %v4096 = vpop.f32.mrf.mxu0
  %4097 = vmatprep.mubr.bf16.mxu0 %v2328
  %4098 = vmatmul.mubr.bf16.gmra.mxu0 %v2327
  %v4099 = vpop.f32.mrf.mxu0
  %v4100 = vadd.f32 %v3811, %v4099
  %v4101 = vpop.f32.mrf.mxu0
  %v4102 = vpop.f32.mrf.mxu0
  %v4103 = vadd.f32 %v3814, %v4102
  %v4104 = vpop.f32.mrf.mxu0
  %4105 = vmatprep.mubr.bf16.mxu0 %v2338
  %4106 = vmatmul.mubr.bf16.gmra.mxu0 %v2337
  %v4107 = vpop.f32.mrf.mxu0
  %v4108 = vadd.f32 %v3819, %v4107
  %v4109 = vpop.f32.mrf.mxu0
  %v4110 = vpop.f32.mrf.mxu0
  %v4111 = vadd.f32 %v3822, %v4110
  %v4112 = vpop.f32.mrf.mxu0
  %4113 = vmatprep.mubr.bf16.mxu0 %v2348
  %4114 = vmatmul.mubr.bf16.gmra.mxu0 %v2347
  %v4115 = vpop.f32.mrf.mxu0
  %v4116 = vadd.f32 %v3827, %v4115
  %v4117 = vpop.f32.mrf.mxu0
  %v4118 = vpop.f32.mrf.mxu0
  %v4119 = vadd.f32 %v3830, %v4118
  %v4120 = vpop.f32.mrf.mxu0
  %4121 = vmatprep.mubr.bf16.mxu0 %v2358
  %4122 = vmatmul.mubr.bf16.gmra.mxu0 %v2357
  %v4123 = vpop.f32.mrf.mxu0
  %v4124 = vadd.f32 %v3835, %v4123
  %v4125 = vpop.f32.mrf.mxu0
  %v4126 = vpop.f32.mrf.mxu0
  %v4127 = vadd.f32 %v3838, %v4126
  %v4128 = vpop.f32.mrf.mxu0
  %4129 = vmatprep.mubr.bf16.mxu0 %v2368
  %4130 = vmatmul.mubr.bf16.gmra.mxu0 %v2367
  %v4131 = vpop.f32.mrf.mxu0
  %v4132 = vadd.f32 %v3843, %v4131
  %v4133 = vpop.f32.mrf.mxu0
  %v4134 = vpop.f32.mrf.mxu0
  %v4135 = vadd.f32 %v3846, %v4134
  %v4136 = vpop.f32.mrf.mxu0
  %4137 = vmatprep.mubr.bf16.mxu0 %v2378
  %4138 = vmatmul.mubr.bf16.gmra.mxu0 %v2377
  %v4139 = vpop.f32.mrf.mxu0
  %v4140 = vadd.f32 %v3851, %v4139
  %v4141 = vpop.f32.mrf.mxu0
  %v4142 = vpop.f32.mrf.mxu0
  %v4143 = vadd.f32 %v3854, %v4142
  %v4144 = vpop.f32.mrf.mxu0
  %4145 = vmatprep.mubr.bf16.mxu0 %v2388
  %4146 = vmatmul.mubr.bf16.gmra.mxu0 %v2387
  %v4147 = vpop.f32.mrf.mxu0
  %v4148 = vadd.f32 %v3859, %v4147
  %v4149 = vpop.f32.mrf.mxu0
  %v4150 = vpop.f32.mrf.mxu0
  %v4151 = vadd.f32 %v3862, %v4150
  %v4152 = vpop.f32.mrf.mxu0
  %4153 = vdwg.mxu0
  %v4154 = vmax.f32 %v3900, %v3916
  %v4155 = vmax.f32 %v3903, %v3919
  %v4156 = vmax.f32 %v3908, %v3924
  %v4157 = vmax.f32 %v3911, %v3927
  %v4158 = vmax.f32 %v4154, %v3932
  %v4159 = vmax.f32 %v4155, %v3935
  %v4160 = vmax.f32 %v4156, %v3940
  %v4161 = vmax.f32 %v4157, %v3943
  %v4162 = vmax.f32 %v4158, %v3948
  %v4163 = vmax.f32 %v4159, %v3951
  %v4164 = vmax.f32 %v4160, %v3956
  %v4165 = vmax.f32 %v4161, %v3959
  %v4166 = vmax.f32 %v4162, %v3964
  %v4167 = vmax.f32 %v4163, %v3967
  %v4168 = vmax.f32 %v4164, %v3972
  %v4169 = vmax.f32 %v4165, %v3975
  %v4170 = vmax.f32 %v4166, %v3980
  %v4171 = vmax.f32 %v4167, %v3983
  %v4172 = vmax.f32 %v4168, %v3988
  %v4173 = vmax.f32 %v4169, %v3991
  %v4174 = vmax.f32 %v4170, %v3996
  %v4175 = vmax.f32 %v4171, %v3999
  %v4176 = vmax.f32 %v4172, %v4004
  %v4177 = vmax.f32 %v4173, %v4007
  %v4178 = vmax.f32 %v4174, %v4012
  %v4179 = vmax.f32 %v4175, %v4015
  %v4180 = vmax.f32 %v4176, %v4020
  %v4181 = vmax.f32 %v4177, %v4023
  %v4182 = vmax.f32 %v4178, %v4028
  %v4183 = vmax.f32 %v4179, %v4031
  %v4184 = vmax.f32 %v4180, %v4036
  %v4185 = vmax.f32 %v4181, %v4039
  %v4186 = vmax.f32 %v4182, %v4044
  %v4187 = vmax.f32 %v4183, %v4047
  %v4188 = vmax.f32 %v4184, %v4052
  %v4189 = vmax.f32 %v4185, %v4055
  %v4190 = vmax.f32 %v4186, %v4060
  %v4191 = vmax.f32 %v4187, %v4063
  %v4192 = vmax.f32 %v4188, %v4068
  %v4193 = vmax.f32 %v4189, %v4071
  %v4194 = vmax.f32 %v4190, %v4076
  %v4195 = vmax.f32 %v4191, %v4079
  %v4196 = vmax.f32 %v4192, %v4084
  %v4197 = vmax.f32 %v4193, %v4087
  %v4198 = vmax.f32 %v4194, %v4092
  %v4199 = vmax.f32 %v4195, %v4095
  %v4200 = vmax.f32 %v4196, %v4100
  %v4201 = vmax.f32 %v4197, %v4103
  %v4202 = vmax.f32 %v4198, %v4108
  %v4203 = vmax.f32 %v4199, %v4111
  %v4204 = vmax.f32 %v4200, %v4116
  %v4205 = vmax.f32 %v4201, %v4119
  %v4206 = vmax.f32 %v4202, %v4124
  %v4207 = vmax.f32 %v4203, %v4127
  %v4208 = vmax.f32 %v4204, %v4132
  %v4209 = vmax.f32 %v4205, %v4135
  %v4210 = vmax.f32 %v4206, %v4140
  %v4211 = vmax.f32 %v4207, %v4143
  %v4212 = vmax.f32 %v4208, %v4148
  %v4213 = vmax.f32 %v4209, %v4151
  %v4214 = vld [vmem:[%s2] sm:$0xff]
  %v4215 = vld [vmem:[%s2 + $0x8] sm:$0xff]
  %v4216 = vld [vmem:[%s2 + $0x10] sm:$0xff]
  %v4217 = vld [vmem:[%s2 + $0x18] sm:$0xff]
  %4219 = vset.pattern.permute.xlu0 0
  %4220 = vperm.xlu0 %4219, %v4214
  %v4221 = vpop.permute.xlu0 %4220
  %4224 = vset.pattern.permute.xlu0 0
  %4225 = vperm.xlu0 %4224, %v4215
  %v4226 = vpop.permute.xlu0 %4225
  %4229 = vset.pattern.permute.xlu0 0
  %4230 = vperm.xlu0 %4229, %v4216
  %v4231 = vpop.permute.xlu0 %4230
  %4234 = vset.pattern.permute.xlu0 0
  %4235 = vperm.xlu0 %4234, %v4217
  %v4236 = vpop.permute.xlu0 %4235
  %v4238 = vadd.f32 %v4210, %v4221
  %v4239 = vadd.f32 %v4211, %v4226
  %v4240 = vadd.f32 %v4212, %v4231
  %v4241 = vadd.f32 %v4213, %v4236
  %vm4242 = vcmp.gt.f32.partialorder %v4238, 0.0
  %vm4243 = vcmp.gt.f32.partialorder %v4239, 0.0
  %vm4244 = vcmp.gt.f32.partialorder %v4240, 0.0
  %vm4245 = vcmp.gt.f32.partialorder %v4241, 0.0
  %v4246 = vmul.f32 %v4238, 0.01
  %v4247 = vmul.f32 %v4239, 0.01
  %v4248 = vmul.f32 %v4240, 0.01
  %v4249 = vmul.f32 %v4241, 0.01
  %v4250 = vsel %vm4242, %v4238, %v4246
  %v4251 = vsel %vm4243, %v4239, %v4247
  %v4252 = vsel %vm4244, %v4240, %v4248
  %v4253 = vsel %vm4245, %v4241, %v4249
  %4254 = vst [vmem:[%s3] sm:$0xff] %v4250
  %4255 = vst [vmem:[%s3 + $0x8] sm:$0xff] %v4251
  %4256 = vst [vmem:[%s3 + $0x10] sm:$0xff] %v4252
  %4257 = vst [vmem:[%s3 + $0x18] sm:$0xff] %v4253
  // Predicated region
  $region14: #{charcnn_forward.1} parent=0 // pred_check
    _
  $region15: #{charcnn_forward.1} parent=0 // pred_check_branch
    %4259 = sbr.rel (0) target = $region17
  $region16: #{charcnn_forward.1} parent=0 // pred_region
    _
  $region17: #{charcnn_forward.1} parent=0 // pred_fallthru
    _
  // Predicated region
  $region18: #{charcnn_forward.1} parent=0 // pred_check
    _
  $region19: #{charcnn_forward.1} parent=0 // pred_check_branch
    %4261 = sbr.rel (0) target = $region21
  $region20: #{charcnn_forward.1} parent=0 // pred_region
    _
  $region21: #{charcnn_forward.1} parent=0 // pred_fallthru
    _

</llo_original>
